<compile_context>
chip_gen: v6e
topology: v6e:2x2x1
jax: 0.10.0
libtpu: 0.0.40
codegen_flags: <defaults>
</compile_context>

<pallas_src>
from functools import partial

import jax
import jax.numpy as jnp
from jax.experimental import pallas as pl
from jax.experimental.pallas import tpu as pltpu


# ----------------------------------------------------------------------------
# Fused kernel (one batch tile per grid step; rows are TIME-MAJOR: n = t*TB+b)
# ----------------------------------------------------------------------------
def content_kernel(x_ref, eps_ref, len_ref,
                   wcat_ref, bcat_ref, w2_ref, b2_ref, w3_ref, b3_ref,
                   wih_ref, whh_ref, bih_ref, bhh_ref,
                   wfc2_ref, bfc2_ref, wf_ref, bf_ref,
                   out_ref, gi_scr):
    T, TB, Din = x_ref.shape
    E = wih_ref.shape[0]
    H = whh_ref.shape[0]
    K = eps_ref.shape[2]
    N = T * TB
    C = wf_ref.shape[1]
    bf16 = jnp.bfloat16

    x = x_ref[...].reshape(N, Din)                                    # bf16, time-major

    # --- one wide bf16 matmul for everything that consumes x (f32 accumulate) -
    xcat = jnp.dot(x, wcat_ref[...],
                   preferred_element_type=jnp.float32) + bcat_ref[...]   # [N, E+H+K]
    emb = jnp.maximum(xcat[:, :E], 0.0)           # Content.fc1 + relu  -> GRU input
    h1 = jnp.maximum(xcat[:, E:E + H], 0.0)       # rn.fc1 + relu
    lb = xcat[:, E + H:]                          # rn.fc4

    # --- RecognitionNetwork tail ---------------------------------------------
    h2 = jnp.maximum(
        jnp.dot(h1.astype(bf16), w2_ref[...],
                preferred_element_type=jnp.float32) + b2_ref[...], 0.0)
    mlv = jnp.dot(h2.astype(bf16), w3_ref[...],
                  preferred_element_type=jnp.float32) + b3_ref[...]
    mu = mlv[:, :K]
    logvar = mlv[:, K:]
    th = mu + logvar * eps_ref[...].reshape(N, K)
    theta_col = jnp.sum(lb * th, axis=-1, keepdims=True) * (1.0 / K)     # [N, 1]

    # --- in-kernel validity mask + per-batch segment reduction against Wf -----
    #   contrib[b, c] = sum_t [t < len[b]] * theta[t, b] * Wf[t, c]
    t_idx = jax.lax.broadcasted_iota(jnp.int32, (T, TB, 1), 0)
    valid = (t_idx < len_ref[...]).astype(jnp.float32)                   # [T, TB, 1]
    theta_m = theta_col.reshape(T, TB, 1) * valid                        # [T, TB, 1]
    wf3 = wf_ref[...].reshape(T, 1, C)
    contrib = jnp.sum(theta_m * wf3, axis=0)                             # [TB, C]

    # --- GRU: input projection hoisted out of the recurrence ------------------
    gi_scr[...] = (jnp.dot(emb.astype(bf16), wih_ref[...],
                           preferred_element_type=jnp.float32) + bih_ref[...])

    whh = whh_ref[...]                                                   # f32
    bhh = bhh_ref[...]
    len_m1 = len_ref[...] - 1                                            # [TB, 1]

    def gru_step(t, carry):
        h, h_last = carry
        base = pl.multiple_of(t * TB, TB)
        gi_t = gi_scr[pl.ds(base, TB), :]                                # [TB, 3H] contiguous
        gh = jnp.dot(h, whh, preferred_element_type=jnp.float32) + bhh   # [TB, 3H]
        rz = jax.nn.sigmoid(gi_t[:, :2 * H] + gh[:, :2 * H])             # one wide EUP push
        r = rz[:, :H]
        z = rz[:, H:]
        n = jnp.tanh(gi_t[:, 2 * H:] + r * gh[:, 2 * H:])
        h_new = (1.0 - z) * n + z * h
        # capture hidden state at the last valid timestep of each sequence
        h_last = jnp.where(len_m1 == t, h_new, h_last)
        return h_new, h_last

    h0 = jnp.zeros((TB, H), jnp.float32)
    _, h_last = jax.lax.fori_loop(0, T, gru_step, (h0, h0),
                                  unroll=True if T <= 16 else 8)

    # --- heads: fc2 as VPU multiply + lane reduction, then final linear -------
    o = jnp.sum(h_last * wfc2_ref[...], axis=-1, keepdims=True) + bfc2_ref[...]  # [TB,1]
    wf_colsum = jnp.sum(wf_ref[...], axis=0, keepdims=True)                      # [1, C]
    out_ref[...] = o * wf_colsum + contrib + bf_ref[...]                          # [TB,C]


# ----------------------------------------------------------------------------
# Wrapper
# ----------------------------------------------------------------------------
@partial(jax.jit, static_argnames=("block_b",))
def content_forward_pallas(seqs, lengths, eps, params, block_b=None):
    B, T, Din = seqs.shape
    K = params["w4"].shape[1]
    H = params["whh"].shape[0]
    C = params["wf"].shape[1]
    TB = B if block_b is None else block_b
    if B % TB != 0:
        raise ValueError(f"block_b={TB} must divide batch={B}")
    lengths = lengths.astype(jnp.int32)
    bf16 = jnp.bfloat16

    # time-major data so each GRU step reads one contiguous [TB, 3H] block
    x_tm = jnp.transpose(seqs, (1, 0, 2)).astype(bf16)       # (T, B, Din)
    eps_tm = jnp.transpose(eps, (1, 0, 2))                   # (T, B, K), f32
    len2 = lengths.reshape(B, 1)

    # tiny parameter-side layout plumbing (weights only; no data-sized arrays)
    wcat = jnp.concatenate([params["wc1"], params["w1"], params["w4"]],
                           axis=1).astype(bf16)
    bcat = jnp.concatenate([params["bc1"], params["b1"], params["b4"]], axis=1)
    weights = (wcat, bcat,
               params["w2"].astype(bf16), params["b2"],
               params["w3"].astype(bf16), params["b3"],
               params["wih"].astype(bf16), params["whh"],     # recurrence stays f32
               params["bih"], params["bhh"],
               params["wfc2"].reshape(1, H), params["bfc2"],
               params["wf"], params["bf"])

    def wspec(a):  # grid-invariant weight: constant index map, stays VMEM-resident
        nd = a.ndim
        return pl.BlockSpec(a.shape, lambda i, _nd=nd: (0,) * _nd)

    in_specs = ([pl.BlockSpec((T, TB, Din), lambda i: (0, i, 0)),
                 pl.BlockSpec((T, TB, K), lambda i: (0, i, 0)),
                 pl.BlockSpec((TB, 1), lambda i: (i, 0))]
                + [wspec(w) for w in weights])

    return pl.pallas_call(
        content_kernel,
        out_shape=jax.ShapeDtypeStruct((B, C), jnp.float32),
        grid=(B // TB,),
        in_specs=in_specs,
        out_specs=pl.BlockSpec((TB, C), lambda i: (i, 0)),
        scratch_shapes=[pltpu.VMEM((T * TB, 3 * H), jnp.float32)],
        compiler_params=pltpu.CompilerParams(
            dimension_semantics=("parallel",),
            vmem_limit_bytes=64 * 1024 * 1024),
    )(x_tm, eps_tm, len2, *weights)


# ----------------------------------------------------------------------------
# Pure-JAX reference (mirrors the PyTorch module in eval mode, f32)
# ----------------------------------------------------------------------------
def content_forward_ref(seqs, lengths, eps, params):
    relu = jax.nn.relu
    B, T, _ = seqs.shape
    K = params["w4"].shape[1]
    # RecognitionNetwork
    h1 = relu(seqs @ params["w1"] + params["b1"])
    h2 = relu(h1 @ params["w2"] + params["b2"])
    mlv = h2 @ params["w3"] + params["b3"]
    mu, logvar = mlv[..., :K], mlv[..., K:]
    lb = seqs @ params["w4"] + params["b4"]
    theta = jnp.mean(lb * (mu + logvar * eps), axis=-1)              # [B, T]
    mask = (jnp.arange(T)[None, :] < lengths[:, None]).astype(jnp.float32)
    theta = theta * mask
    # embedding + GRU
    emb = relu(seqs @ params["wc1"] + params["bc1"])                 # [B, T, E]
    H = params["whh"].shape[0]

    def step(h, x_t):
        gi = x_t @ params["wih"] + params["bih"]
        gh = h @ params["whh"] + params["bhh"]
        r = jax.nn.sigmoid(gi[:, :H] + gh[:, :H])
        z = jax.nn.sigmoid(gi[:, H:2 * H] + gh[:, H:2 * H])
        n = jnp.tanh(gi[:, 2 * H:] + r * gh[:, 2 * H:])
        h_new = (1.0 - z) * n + z * h
        return h_new, h_new

    h0 = jnp.zeros((B, H), jnp.float32)
    _, hs = jax.lax.scan(step, h0, jnp.swapaxes(emb, 0, 1))          # [T, B, H]
    h_last = hs[lengths - 1, jnp.arange(B)]                          # [B, H]
    o = h_last @ params["wfc2"] + params["bfc2"]                     # [B, 1]
    fo = o + theta                                                   # [B, T]
    return fo @ params["wf"] + params["bf"]                          # [B, C]


def init_params(key, input_size, hidden_size, embedding_dim, num_topic, T, num_classes):
    ks = jax.random.split(key, 16)
    s = 0.1
    n = jax.random.normal
    return {
        # Content.fc1
        "wc1": s * n(ks[0], (input_size, embedding_dim), jnp.float32),
        "bc1": s * n(ks[1], (1, embedding_dim), jnp.float32),
        # RecognitionNetwork
        "w1": s * n(ks[2], (input_size, hidden_size), jnp.float32),
        "b1": s * n(ks[3], (1, hidden_size), jnp.float32),
        "w2": s * n(ks[4], (hidden_size, hidden_size), jnp.float32),
        "b2": s * n(ks[5], (1, hidden_size), jnp.float32),
        "w3": s * n(ks[6], (hidden_size, 2 * num_topic), jnp.float32),
        "b3": s * n(ks[7], (1, 2 * num_topic), jnp.float32),
        "w4": s * n(ks[8], (input_size, num_topic), jnp.float32),
        "b4": s * n(ks[9], (1, num_topic), jnp.float32),
        # GRU (single layer, unidirectional), stored as [in, 3H] / [H, 3H]
        "wih": s * n(ks[10], (embedding_dim, 3 * hidden_size), jnp.float32),
        "whh": s * n(ks[11], (hidden_size, 3 * hidden_size), jnp.float32),
        "bih": s * n(ks[12], (1, 3 * hidden_size), jnp.float32),
        "bhh": s * n(ks[13], (1, 3 * hidden_size), jnp.float32),
        # Content.fc2 (hidden_size * num_layers -> 1), num_layers = 1
        "wfc2": s * n(ks[14], (hidden_size, 1), jnp.float32),
        "bfc2": jnp.zeros((1, 1), jnp.float32),
        # final Linear(T_max, num_classes) created in forward()
        "wf": s * n(ks[15], (T, num_classes), jnp.float32),
        "bf": jnp.zeros((1, num_classes), jnp.float32),
    }


if __name__ == "__main__":
    B, T = 32, 8
    input_size = 16
    hidden_size = 32
    embedding_dim = 32
    num_topic = 8
    num_classes = 4
    TB = 16          # batch tile -> grid=(2,), exercises DMA/compute pipelining
    # num_layers = 1 required for the original module's fc2 to be consistent

    key = jax.random.PRNGKey(0)
    k_params, k_x, k_eps = jax.random.split(key, 3)

    params = init_params(k_params, input_size, hidden_size, embedding_dim,
                         num_topic, T, num_classes)

    seqs = jax.random.normal(k_x, (B, T, input_size), jnp.float32)
    # sorted descending, 1 <= len <= T, max == T
    lengths = jnp.maximum(T - (jnp.arange(B) // 4), 1).astype(jnp.int32)
    eps = jax.random.normal(k_eps, (B, T, num_topic), jnp.float32)

    out = content_forward_pallas(seqs, lengths, eps, params, block_b=TB)
    out = jax.block_until_ready(out)

    ref = content_forward_ref(seqs, lengths, eps, params)
    assert out.shape == (B, num_classes)
    # bf16 operands on the big matmuls (f32 accumulation) -> looser tolerance
    assert jnp.allclose(out, ref, atol=2e-2, rtol=2e-2), (out, ref)

    print("KERNEL_OK")
</pallas_src>

<mosaic_0001>
module attributes {stable_mosaic.version = 11 : i64} {
  func.func @content_kernel(%arg0: i32, %arg1: memref<8x16x16xbf16, #tpu.memory_space<vmem>>, %arg2: memref<8x16x8xf32, #tpu.memory_space<vmem>>, %arg3: memref<16x1xi32, #tpu.memory_space<vmem>>, %arg4: memref<16x72xbf16, #tpu.memory_space<vmem>>, %arg5: memref<1x72xf32, #tpu.memory_space<vmem>>, %arg6: memref<32x32xbf16, #tpu.memory_space<vmem>>, %arg7: memref<1x32xf32, #tpu.memory_space<vmem>>, %arg8: memref<32x16xbf16, #tpu.memory_space<vmem>>, %arg9: memref<1x16xf32, #tpu.memory_space<vmem>>, %arg10: memref<32x96xbf16, #tpu.memory_space<vmem>>, %arg11: memref<32x96xf32, #tpu.memory_space<vmem>>, %arg12: memref<1x96xf32, #tpu.memory_space<vmem>>, %arg13: memref<1x96xf32, #tpu.memory_space<vmem>>, %arg14: memref<1x32xf32, #tpu.memory_space<vmem>>, %arg15: memref<1x1xf32, #tpu.memory_space<vmem>>, %arg16: memref<8x4xf32, #tpu.memory_space<vmem>>, %arg17: memref<1x4xf32, #tpu.memory_space<vmem>>, %arg18: memref<16x4xf32, #tpu.memory_space<vmem>>, %arg19: memref<128x96xf32, #tpu.memory_space<vmem>>) attributes {dimension_semantics = [#tpu.dimension_semantics<parallel>], iteration_bounds = array<i64: 2>, scalar_prefetch = 0 : i64, scratch_operands = 1 : i64, tpu.core_type = #tpu.core_type<tc>, window_params = [{transform_indices = @transform_0, window_bounds = array<i64: 8, 16, 16>}, {transform_indices = @transform_1, window_bounds = array<i64: 8, 16, 8>}, {transform_indices = @transform_2, window_bounds = array<i64: 16, 1>}, {pipeline_mode = #tpu.pipeline_mode<synchronous>, transform_indices = @transform_3, window_bounds = array<i64: 16, 72>}, {pipeline_mode = #tpu.pipeline_mode<synchronous>, transform_indices = @transform_4, window_bounds = array<i64: 1, 72>}, {pipeline_mode = #tpu.pipeline_mode<synchronous>, transform_indices = @transform_5, window_bounds = array<i64: 32, 32>}, {pipeline_mode = #tpu.pipeline_mode<synchronous>, transform_indices = @transform_6, window_bounds = array<i64: 1, 32>}, {pipeline_mode = #tpu.pipeline_mode<synchronous>, transform_indices = @transform_7, window_bounds = array<i64: 32, 16>}, {pipeline_mode = #tpu.pipeline_mode<synchronous>, transform_indices = @transform_8, window_bounds = array<i64: 1, 16>}, {pipeline_mode = #tpu.pipeline_mode<synchronous>, transform_indices = @transform_9, window_bounds = array<i64: 32, 96>}, {pipeline_mode = #tpu.pipeline_mode<synchronous>, transform_indices = @transform_10, window_bounds = array<i64: 32, 96>}, {pipeline_mode = #tpu.pipeline_mode<synchronous>, transform_indices = @transform_11, window_bounds = array<i64: 1, 96>}, {pipeline_mode = #tpu.pipeline_mode<synchronous>, transform_indices = @transform_12, window_bounds = array<i64: 1, 96>}, {pipeline_mode = #tpu.pipeline_mode<synchronous>, transform_indices = @transform_13, window_bounds = array<i64: 1, 32>}, {pipeline_mode = #tpu.pipeline_mode<synchronous>, transform_indices = @transform_14, window_bounds = array<i64: 1, 1>}, {pipeline_mode = #tpu.pipeline_mode<synchronous>, transform_indices = @transform_15, window_bounds = array<i64: 8, 4>}, {pipeline_mode = #tpu.pipeline_mode<synchronous>, transform_indices = @transform_16, window_bounds = array<i64: 1, 4>}, {transform_indices = @transform_17, window_bounds = array<i64: 16, 4>}]} {
    %c0 = arith.constant 0 : index
    %c0_0 = arith.constant 0 : index
    %c0_1 = arith.constant 0 : index
    %0 = vector.load %arg1[%c0, %c0_0, %c0_1] : memref<8x16x16xbf16, #tpu.memory_space<vmem>>, vector<8x16x16xbf16>
    %1 = vector.shape_cast %0 : vector<8x16x16xbf16> to vector<128x16xbf16>
    %c0_2 = arith.constant 0 : index
    %c0_3 = arith.constant 0 : index
    %2 = vector.load %arg4[%c0_2, %c0_3] : memref<16x72xbf16, #tpu.memory_space<vmem>>, vector<16x72xbf16>
    %cst = arith.constant dense<0.000000e+00> : vector<128x72xf32>
    %3 = tpu.matmul %1, %2, %cst {dimension_numbers = #tpu.dot_dimension_numbers<[1], [0], [0], [1], [0, 0, 1, 1], [], []>} : vector<128x16xbf16>, vector<16x72xbf16>, vector<128x72xf32> -> vector<128x72xf32>
    %c0_4 = arith.constant 0 : index
    %c0_5 = arith.constant 0 : index
    %4 = vector.load %arg5[%c0_4, %c0_5] : memref<1x72xf32, #tpu.memory_space<vmem>>, vector<1x72xf32>
    %5 = vector.broadcast %4 : vector<1x72xf32> to vector<128x72xf32>
    %6 = arith.addf %3, %5 : vector<128x72xf32>
    %7 = vector.extract_strided_slice %6 {offsets = [0, 0], sizes = [128, 32], strides = [1, 1]} : vector<128x72xf32> to vector<128x32xf32>
    %cst_6 = arith.constant 0.000000e+00 : f32
    %8 = vector.broadcast %cst_6 : f32 to vector<128x32xf32>
    %9 = arith.maximumf %7, %8 : vector<128x32xf32>
    %10 = vector.extract_strided_slice %6 {offsets = [0, 32], sizes = [128, 32], strides = [1, 1]} : vector<128x72xf32> to vector<128x32xf32>
    %cst_7 = arith.constant 0.000000e+00 : f32
    %11 = vector.broadcast %cst_7 : f32 to vector<128x32xf32>
    %12 = arith.maximumf %10, %11 : vector<128x32xf32>
    %13 = vector.extract_strided_slice %6 {offsets = [0, 64], sizes = [128, 8], strides = [1, 1]} : vector<128x72xf32> to vector<128x8xf32>
    %14 = arith.truncf %12 : vector<128x32xf32> to vector<128x32xbf16>
    %c0_8 = arith.constant 0 : index
    %c0_9 = arith.constant 0 : index
    %15 = vector.load %arg6[%c0_8, %c0_9] : memref<32x32xbf16, #tpu.memory_space<vmem>>, vector<32x32xbf16>
    %cst_10 = arith.constant dense<0.000000e+00> : vector<128x32xf32>
    %16 = tpu.matmul %14, %15, %cst_10 {dimension_numbers = #tpu.dot_dimension_numbers<[1], [0], [0], [1], [0, 0, 1, 1], [], []>} : vector<128x32xbf16>, vector<32x32xbf16>, vector<128x32xf32> -> vector<128x32xf32>
    %c0_11 = arith.constant 0 : index
    %c0_12 = arith.constant 0 : index
    %17 = vector.load %arg7[%c0_11, %c0_12] : memref<1x32xf32, #tpu.memory_space<vmem>>, vector<1x32xf32>
    %18 = vector.broadcast %17 : vector<1x32xf32> to vector<128x32xf32>
    %19 = arith.addf %16, %18 : vector<128x32xf32>
    %cst_13 = arith.constant 0.000000e+00 : f32
    %20 = vector.broadcast %cst_13 : f32 to vector<128x32xf32>
    %21 = arith.maximumf %19, %20 : vector<128x32xf32>
    %22 = arith.truncf %21 : vector<128x32xf32> to vector<128x32xbf16>
    %c0_14 = arith.constant 0 : index
    %c0_15 = arith.constant 0 : index
    %23 = vector.load %arg8[%c0_14, %c0_15] : memref<32x16xbf16, #tpu.memory_space<vmem>>, vector<32x16xbf16>
    %cst_16 = arith.constant dense<0.000000e+00> : vector<128x16xf32>
    %24 = tpu.matmul %22, %23, %cst_16 {dimension_numbers = #tpu.dot_dimension_numbers<[1], [0], [0], [1], [0, 0, 1, 1], [], []>} : vector<128x32xbf16>, vector<32x16xbf16>, vector<128x16xf32> -> vector<128x16xf32>
    %c0_17 = arith.constant 0 : index
    %c0_18 = arith.constant 0 : index
    %25 = vector.load %arg9[%c0_17, %c0_18] : memref<1x16xf32, #tpu.memory_space<vmem>>, vector<1x16xf32>
    %26 = vector.broadcast %25 : vector<1x16xf32> to vector<128x16xf32>
    %27 = arith.addf %24, %26 : vector<128x16xf32>
    %28 = vector.extract_strided_slice %27 {offsets = [0, 0], sizes = [128, 8], strides = [1, 1]} : vector<128x16xf32> to vector<128x8xf32>
    %29 = vector.extract_strided_slice %27 {offsets = [0, 8], sizes = [128, 8], strides = [1, 1]} : vector<128x16xf32> to vector<128x8xf32>
    %c0_19 = arith.constant 0 : index
    %c0_20 = arith.constant 0 : index
    %c0_21 = arith.constant 0 : index
    %30 = vector.load %arg2[%c0_19, %c0_20, %c0_21] : memref<8x16x8xf32, #tpu.memory_space<vmem>>, vector<8x16x8xf32>
    %31 = vector.shape_cast %30 : vector<8x16x8xf32> to vector<128x8xf32>
    %32 = arith.mulf %29, %31 : vector<128x8xf32>
    %33 = arith.addf %28, %32 : vector<128x8xf32>
    %34 = arith.mulf %13, %33 : vector<128x8xf32>
    %cst_22 = arith.constant dense<0.000000e+00> : vector<128xf32>
    %35 = vector.multi_reduction <add>, %34, %cst_22 [1] : vector<128x8xf32> to vector<128xf32>
    %36 = vector.shape_cast %35 : vector<128xf32> to vector<128x1xf32>
    %cst_23 = arith.constant 1.250000e-01 : f32
    %37 = vector.broadcast %cst_23 : f32 to vector<128x1xf32>
    %38 = arith.mulf %36, %37 : vector<128x1xf32>
    %39 = tpu.iota {dimensions = array<i32: 0>} : vector<8x16x1xi32>
    %c0_24 = arith.constant 0 : index
    %c0_25 = arith.constant 0 : index
    %40 = vector.load %arg3[%c0_24, %c0_25] : memref<16x1xi32, #tpu.memory_space<vmem>>, vector<16x1xi32>
    %41 = vector.shape_cast %40 : vector<16x1xi32> to vector<1x16x1xi32>
    %42 = vector.broadcast %41 : vector<1x16x1xi32> to vector<8x16x1xi32>
    %43 = arith.cmpi slt, %39, %42 : vector<8x16x1xi32>
    %44 = arith.extui %43 : vector<8x16x1xi1> to vector<8x16x1xi32>
    %45 = arith.sitofp %44 : vector<8x16x1xi32> to vector<8x16x1xf32>
    %46 = vector.shape_cast %38 : vector<128x1xf32> to vector<8x16x1xf32>
    %47 = arith.mulf %46, %45 : vector<8x16x1xf32>
    %c0_26 = arith.constant 0 : index
    %c0_27 = arith.constant 0 : index
    %48 = vector.load %arg16[%c0_26, %c0_27] : memref<8x4xf32, #tpu.memory_space<vmem>>, vector<8x4xf32>
    %49 = vector.shape_cast %48 : vector<8x4xf32> to vector<8x1x4xf32>
    %50 = vector.broadcast %47 : vector<8x16x1xf32> to vector<8x16x4xf32>
    %51 = vector.broadcast %49 : vector<8x1x4xf32> to vector<8x16x4xf32>
    %52 = arith.mulf %50, %51 : vector<8x16x4xf32>
    %cst_28 = arith.constant dense<0.000000e+00> : vector<16x4xf32>
    %53 = vector.multi_reduction <add>, %52, %cst_28 [0] : vector<8x16x4xf32> to vector<16x4xf32>
    %54 = arith.truncf %9 : vector<128x32xf32> to vector<128x32xbf16>
    %c0_29 = arith.constant 0 : index
    %c0_30 = arith.constant 0 : index
    %55 = vector.load %arg10[%c0_29, %c0_30] : memref<32x96xbf16, #tpu.memory_space<vmem>>, vector<32x96xbf16>
    %cst_31 = arith.constant dense<0.000000e+00> : vector<128x96xf32>
    %56 = tpu.matmul %54, %55, %cst_31 {dimension_numbers = #tpu.dot_dimension_numbers<[1], [0], [0], [1], [0, 0, 1, 1], [], []>} : vector<128x32xbf16>, vector<32x96xbf16>, vector<128x96xf32> -> vector<128x96xf32>
    %c0_32 = arith.constant 0 : index
    %c0_33 = arith.constant 0 : index
    %57 = vector.load %arg12[%c0_32, %c0_33] : memref<1x96xf32, #tpu.memory_space<vmem>>, vector<1x96xf32>
    %58 = vector.broadcast %57 : vector<1x96xf32> to vector<128x96xf32>
    %59 = arith.addf %56, %58 : vector<128x96xf32>
    %c0_34 = arith.constant 0 : index
    %c0_35 = arith.constant 0 : index
    %60 = vector.load %arg19[%c0_34, %c0_35] : memref<128x96xf32, #tpu.memory_space<vmem>>, vector<128x96xf32>
    tpu.vector_store %arg19[%c0_34, %c0_35], %59 {strides = array<i32>} : memref<128x96xf32, #tpu.memory_space<vmem>>, vector<128x96xf32>,
    %c0_36 = arith.constant 0 : index
    %c0_37 = arith.constant 0 : index
    %61 = vector.load %arg11[%c0_36, %c0_37] : memref<32x96xf32, #tpu.memory_space<vmem>>, vector<32x96xf32>
    %c0_38 = arith.constant 0 : index
    %c0_39 = arith.constant 0 : index
    %62 = vector.load %arg13[%c0_38, %c0_39] : memref<1x96xf32, #tpu.memory_space<vmem>>, vector<1x96xf32>
    %c0_40 = arith.constant 0 : index
    %c0_41 = arith.constant 0 : index
    %63 = vector.load %arg3[%c0_40, %c0_41] : memref<16x1xi32, #tpu.memory_space<vmem>>, vector<16x1xi32>
    %c1_i32 = arith.constant 1 : i32
    %64 = vector.broadcast %c1_i32 : i32 to vector<16x1xi32>
    %65 = arith.subi %63, %64 : vector<16x1xi32>
    %cst_42 = arith.constant 0.000000e+00 : f32
    %66 = vector.broadcast %cst_42 : f32 to vector<16x32xf32>
    %c0_i32 = arith.constant 0 : i32
    %c16_i32 = arith.constant 16 : i32
    %67 = arith.muli %c0_i32, %c16_i32 : i32
    %68 = tpu.assume_multiple %67, 16 : i32
    %69 = arith.index_cast %68 : i32 to index
    %c0_43 = arith.constant 0 : index
    %70 = vector.load %arg19[%69, %c0_43] : memref<128x96xf32, #tpu.memory_space<vmem>>, vector<16x96xf32>
    %cst_44 = arith.constant dense<0.000000e+00> : vector<16x96xf32>
    %71 = tpu.matmul %66, %61, %cst_44 {dimension_numbers = #tpu.dot_dimension_numbers<[1], [0], [0], [1], [0, 0, 1, 1], [], []>} : vector<16x32xf32>, vector<32x96xf32>, vector<16x96xf32> -> vector<16x96xf32>
    %72 = vector.broadcast %62 : vector<1x96xf32> to vector<16x96xf32>
    %73 = arith.addf %71, %72 : vector<16x96xf32>
    %74 = vector.extract_strided_slice %70 {offsets = [0, 0], sizes = [16, 64], strides = [1, 1]} : vector<16x96xf32> to vector<16x64xf32>
    %75 = vector.extract_strided_slice %73 {offsets = [0, 0], sizes = [16, 64], strides = [1, 1]} : vector<16x96xf32> to vector<16x64xf32>
    %76 = arith.addf %74, %75 : vector<16x64xf32>
    %77 = arith.negf %76 : vector<16x64xf32>
    %78 = math.exp %77 : vector<16x64xf32>
    %cst_45 = arith.constant 1.000000e+00 : f32
    %79 = vector.broadcast %cst_45 : f32 to vector<16x64xf32>
    %80 = arith.addf %79, %78 : vector<16x64xf32>
    %81 = arith.divf %79, %80 : vector<16x64xf32>
    %82 = vector.extract_strided_slice %81 {offsets = [0, 0], sizes = [16, 32], strides = [1, 1]} : vector<16x64xf32> to vector<16x32xf32>
    %83 = vector.extract_strided_slice %81 {offsets = [0, 32], sizes = [16, 32], strides = [1, 1]} : vector<16x64xf32> to vector<16x32xf32>
    %84 = vector.extract_strided_slice %70 {offsets = [0, 64], sizes = [16, 32], strides = [1, 1]} : vector<16x96xf32> to vector<16x32xf32>
    %85 = vector.extract_strided_slice %73 {offsets = [0, 64], sizes = [16, 32], strides = [1, 1]} : vector<16x96xf32> to vector<16x32xf32>
    %86 = arith.mulf %82, %85 : vector<16x32xf32>
    %87 = arith.addf %84, %86 : vector<16x32xf32>
    %88 = math.tanh %87 : vector<16x32xf32>
    %cst_46 = arith.constant 1.000000e+00 : f32
    %89 = vector.broadcast %cst_46 : f32 to vector<16x32xf32>
    %90 = arith.subf %89, %83 : vector<16x32xf32>
    %91 = arith.mulf %90, %88 : vector<16x32xf32>
    %92 = arith.mulf %83, %66 : vector<16x32xf32>
    %93 = arith.addf %91, %92 : vector<16x32xf32>
    %94 = vector.broadcast %c0_i32 : i32 to vector<16x1xi32>
    %95 = arith.cmpi eq, %65, %94 : vector<16x1xi32>
    %96 = vector.shape_cast %95 : vector<16x1xi1> to vector<16x1xi1>
    %97 = vector.broadcast %96 : vector<16x1xi1> to vector<16x32xi1>
    %98 = arith.select %97, %93, %66 : vector<16x32xi1>, vector<16x32xf32>
    %c1_i32_47 = arith.constant 1 : i32
    %c16_i32_48 = arith.constant 16 : i32
    %99 = arith.muli %c1_i32_47, %c16_i32_48 : i32
    %100 = tpu.assume_multiple %99, 16 : i32
    %101 = arith.index_cast %100 : i32 to index
    %c0_49 = arith.constant 0 : index
    %102 = vector.load %arg19[%101, %c0_49] : memref<128x96xf32, #tpu.memory_space<vmem>>, vector<16x96xf32>
    %cst_50 = arith.constant dense<0.000000e+00> : vector<16x96xf32>
    %103 = tpu.matmul %93, %61, %cst_50 {dimension_numbers = #tpu.dot_dimension_numbers<[1], [0], [0], [1], [0, 0, 1, 1], [], []>} : vector<16x32xf32>, vector<32x96xf32>, vector<16x96xf32> -> vector<16x96xf32>
    %104 = vector.broadcast %62 : vector<1x96xf32> to vector<16x96xf32>
    %105 = arith.addf %103, %104 : vector<16x96xf32>
    %106 = vector.extract_strided_slice %102 {offsets = [0, 0], sizes = [16, 64], strides = [1, 1]} : vector<16x96xf32> to vector<16x64xf32>
    %107 = vector.extract_strided_slice %105 {offsets = [0, 0], sizes = [16, 64], strides = [1, 1]} : vector<16x96xf32> to vector<16x64xf32>
    %108 = arith.addf %106, %107 : vector<16x64xf32>
    %109 = arith.negf %108 : vector<16x64xf32>
    %110 = math.exp %109 : vector<16x64xf32>
    %cst_51 = arith.constant 1.000000e+00 : f32
    %111 = vector.broadcast %cst_51 : f32 to vector<16x64xf32>
    %112 = arith.addf %111, %110 : vector<16x64xf32>
    %113 = arith.divf %111, %112 : vector<16x64xf32>
    %114 = vector.extract_strided_slice %113 {offsets = [0, 0], sizes = [16, 32], strides = [1, 1]} : vector<16x64xf32> to vector<16x32xf32>
    %115 = vector.extract_strided_slice %113 {offsets = [0, 32], sizes = [16, 32], strides = [1, 1]} : vector<16x64xf32> to vector<16x32xf32>
    %116 = vector.extract_strided_slice %102 {offsets = [0, 64], sizes = [16, 32], strides = [1, 1]} : vector<16x96xf32> to vector<16x32xf32>
    %117 = vector.extract_strided_slice %105 {offsets = [0, 64], sizes = [16, 32], strides = [1, 1]} : vector<16x96xf32> to vector<16x32xf32>
    %118 = arith.mulf %114, %117 : vector<16x32xf32>
    %119 = arith.addf %116, %118 : vector<16x32xf32>
    %120 = math.tanh %119 : vector<16x32xf32>
    %cst_52 = arith.constant 1.000000e+00 : f32
    %121 = vector.broadcast %cst_52 : f32 to vector<16x32xf32>
    %122 = arith.subf %121, %115 : vector<16x32xf32>
    %123 = arith.mulf %122, %120 : vector<16x32xf32>
    %124 = arith.mulf %115, %93 : vector<16x32xf32>
    %125 = arith.addf %123, %124 : vector<16x32xf32>
    %126 = vector.broadcast %c1_i32_47 : i32 to vector<16x1xi32>
    %127 = arith.cmpi eq, %65, %126 : vector<16x1xi32>
    %128 = vector.shape_cast %127 : vector<16x1xi1> to vector<16x1xi1>
    %129 = vector.broadcast %128 : vector<16x1xi1> to vector<16x32xi1>
    %130 = arith.select %129, %125, %98 : vector<16x32xi1>, vector<16x32xf32>
    %c2_i32 = arith.constant 2 : i32
    %c16_i32_53 = arith.constant 16 : i32
    %131 = arith.muli %c2_i32, %c16_i32_53 : i32
    %132 = tpu.assume_multiple %131, 16 : i32
    %133 = arith.index_cast %132 : i32 to index
    %c0_54 = arith.constant 0 : index
    %134 = vector.load %arg19[%133, %c0_54] : memref<128x96xf32, #tpu.memory_space<vmem>>, vector<16x96xf32>
    %cst_55 = arith.constant dense<0.000000e+00> : vector<16x96xf32>
    %135 = tpu.matmul %125, %61, %cst_55 {dimension_numbers = #tpu.dot_dimension_numbers<[1], [0], [0], [1], [0, 0, 1, 1], [], []>} : vector<16x32xf32>, vector<32x96xf32>, vector<16x96xf32> -> vector<16x96xf32>
    %136 = vector.broadcast %62 : vector<1x96xf32> to vector<16x96xf32>
    %137 = arith.addf %135, %136 : vector<16x96xf32>
    %138 = vector.extract_strided_slice %134 {offsets = [0, 0], sizes = [16, 64], strides = [1, 1]} : vector<16x96xf32> to vector<16x64xf32>
    %139 = vector.extract_strided_slice %137 {offsets = [0, 0], sizes = [16, 64], strides = [1, 1]} : vector<16x96xf32> to vector<16x64xf32>
    %140 = arith.addf %138, %139 : vector<16x64xf32>
    %141 = arith.negf %140 : vector<16x64xf32>
    %142 = math.exp %141 : vector<16x64xf32>
    %cst_56 = arith.constant 1.000000e+00 : f32
    %143 = vector.broadcast %cst_56 : f32 to vector<16x64xf32>
    %144 = arith.addf %143, %142 : vector<16x64xf32>
    %145 = arith.divf %143, %144 : vector<16x64xf32>
    %146 = vector.extract_strided_slice %145 {offsets = [0, 0], sizes = [16, 32], strides = [1, 1]} : vector<16x64xf32> to vector<16x32xf32>
    %147 = vector.extract_strided_slice %145 {offsets = [0, 32], sizes = [16, 32], strides = [1, 1]} : vector<16x64xf32> to vector<16x32xf32>
    %148 = vector.extract_strided_slice %134 {offsets = [0, 64], sizes = [16, 32], strides = [1, 1]} : vector<16x96xf32> to vector<16x32xf32>
    %149 = vector.extract_strided_slice %137 {offsets = [0, 64], sizes = [16, 32], strides = [1, 1]} : vector<16x96xf32> to vector<16x32xf32>
    %150 = arith.mulf %146, %149 : vector<16x32xf32>
    %151 = arith.addf %148, %150 : vector<16x32xf32>
    %152 = math.tanh %151 : vector<16x32xf32>
    %cst_57 = arith.constant 1.000000e+00 : f32
    %153 = vector.broadcast %cst_57 : f32 to vector<16x32xf32>
    %154 = arith.subf %153, %147 : vector<16x32xf32>
    %155 = arith.mulf %154, %152 : vector<16x32xf32>
    %156 = arith.mulf %147, %125 : vector<16x32xf32>
    %157 = arith.addf %155, %156 : vector<16x32xf32>
    %158 = vector.broadcast %c2_i32 : i32 to vector<16x1xi32>
    %159 = arith.cmpi eq, %65, %158 : vector<16x1xi32>
    %160 = vector.shape_cast %159 : vector<16x1xi1> to vector<16x1xi1>
    %161 = vector.broadcast %160 : vector<16x1xi1> to vector<16x32xi1>
    %162 = arith.select %161, %157, %130 : vector<16x32xi1>, vector<16x32xf32>
    %c3_i32 = arith.constant 3 : i32
    %c16_i32_58 = arith.constant 16 : i32
    %163 = arith.muli %c3_i32, %c16_i32_58 : i32
    %164 = tpu.assume_multiple %163, 16 : i32
    %165 = arith.index_cast %164 : i32 to index
    %c0_59 = arith.constant 0 : index
    %166 = vector.load %arg19[%165, %c0_59] : memref<128x96xf32, #tpu.memory_space<vmem>>, vector<16x96xf32>
    %cst_60 = arith.constant dense<0.000000e+00> : vector<16x96xf32>
    %167 = tpu.matmul %157, %61, %cst_60 {dimension_numbers = #tpu.dot_dimension_numbers<[1], [0], [0], [1], [0, 0, 1, 1], [], []>} : vector<16x32xf32>, vector<32x96xf32>, vector<16x96xf32> -> vector<16x96xf32>
    %168 = vector.broadcast %62 : vector<1x96xf32> to vector<16x96xf32>
    %169 = arith.addf %167, %168 : vector<16x96xf32>
    %170 = vector.extract_strided_slice %166 {offsets = [0, 0], sizes = [16, 64], strides = [1, 1]} : vector<16x96xf32> to vector<16x64xf32>
    %171 = vector.extract_strided_slice %169 {offsets = [0, 0], sizes = [16, 64], strides = [1, 1]} : vector<16x96xf32> to vector<16x64xf32>
    %172 = arith.addf %170, %171 : vector<16x64xf32>
    %173 = arith.negf %172 : vector<16x64xf32>
    %174 = math.exp %173 : vector<16x64xf32>
    %cst_61 = arith.constant 1.000000e+00 : f32
    %175 = vector.broadcast %cst_61 : f32 to vector<16x64xf32>
    %176 = arith.addf %175, %174 : vector<16x64xf32>
    %177 = arith.divf %175, %176 : vector<16x64xf32>
    %178 = vector.extract_strided_slice %177 {offsets = [0, 0], sizes = [16, 32], strides = [1, 1]} : vector<16x64xf32> to vector<16x32xf32>
    %179 = vector.extract_strided_slice %177 {offsets = [0, 32], sizes = [16, 32], strides = [1, 1]} : vector<16x64xf32> to vector<16x32xf32>
    %180 = vector.extract_strided_slice %166 {offsets = [0, 64], sizes = [16, 32], strides = [1, 1]} : vector<16x96xf32> to vector<16x32xf32>
    %181 = vector.extract_strided_slice %169 {offsets = [0, 64], sizes = [16, 32], strides = [1, 1]} : vector<16x96xf32> to vector<16x32xf32>
    %182 = arith.mulf %178, %181 : vector<16x32xf32>
    %183 = arith.addf %180, %182 : vector<16x32xf32>
    %184 = math.tanh %183 : vector<16x32xf32>
    %cst_62 = arith.constant 1.000000e+00 : f32
    %185 = vector.broadcast %cst_62 : f32 to vector<16x32xf32>
    %186 = arith.subf %185, %179 : vector<16x32xf32>
    %187 = arith.mulf %186, %184 : vector<16x32xf32>
    %188 = arith.mulf %179, %157 : vector<16x32xf32>
    %189 = arith.addf %187, %188 : vector<16x32xf32>
    %190 = vector.broadcast %c3_i32 : i32 to vector<16x1xi32>
    %191 = arith.cmpi eq, %65, %190 : vector<16x1xi32>
    %192 = vector.shape_cast %191 : vector<16x1xi1> to vector<16x1xi1>
    %193 = vector.broadcast %192 : vector<16x1xi1> to vector<16x32xi1>
    %194 = arith.select %193, %189, %162 : vector<16x32xi1>, vector<16x32xf32>
    %c4_i32 = arith.constant 4 : i32
    %c16_i32_63 = arith.constant 16 : i32
    %195 = arith.muli %c4_i32, %c16_i32_63 : i32
    %196 = tpu.assume_multiple %195, 16 : i32
    %197 = arith.index_cast %196 : i32 to index
    %c0_64 = arith.constant 0 : index
    %198 = vector.load %arg19[%197, %c0_64] : memref<128x96xf32, #tpu.memory_space<vmem>>, vector<16x96xf32>
    %cst_65 = arith.constant dense<0.000000e+00> : vector<16x96xf32>
    %199 = tpu.matmul %189, %61, %cst_65 {dimension_numbers = #tpu.dot_dimension_numbers<[1], [0], [0], [1], [0, 0, 1, 1], [], []>} : vector<16x32xf32>, vector<32x96xf32>, vector<16x96xf32> -> vector<16x96xf32>
    %200 = vector.broadcast %62 : vector<1x96xf32> to vector<16x96xf32>
    %201 = arith.addf %199, %200 : vector<16x96xf32>
    %202 = vector.extract_strided_slice %198 {offsets = [0, 0], sizes = [16, 64], strides = [1, 1]} : vector<16x96xf32> to vector<16x64xf32>
    %203 = vector.extract_strided_slice %201 {offsets = [0, 0], sizes = [16, 64], strides = [1, 1]} : vector<16x96xf32> to vector<16x64xf32>
    %204 = arith.addf %202, %203 : vector<16x64xf32>
    %205 = arith.negf %204 : vector<16x64xf32>
    %206 = math.exp %205 : vector<16x64xf32>
    %cst_66 = arith.constant 1.000000e+00 : f32
    %207 = vector.broadcast %cst_66 : f32 to vector<16x64xf32>
    %208 = arith.addf %207, %206 : vector<16x64xf32>
    %209 = arith.divf %207, %208 : vector<16x64xf32>
    %210 = vector.extract_strided_slice %209 {offsets = [0, 0], sizes = [16, 32], strides = [1, 1]} : vector<16x64xf32> to vector<16x32xf32>
    %211 = vector.extract_strided_slice %209 {offsets = [0, 32], sizes = [16, 32], strides = [1, 1]} : vector<16x64xf32> to vector<16x32xf32>
    %212 = vector.extract_strided_slice %198 {offsets = [0, 64], sizes = [16, 32], strides = [1, 1]} : vector<16x96xf32> to vector<16x32xf32>
    %213 = vector.extract_strided_slice %201 {offsets = [0, 64], sizes = [16, 32], strides = [1, 1]} : vector<16x96xf32> to vector<16x32xf32>
    %214 = arith.mulf %210, %213 : vector<16x32xf32>
    %215 = arith.addf %212, %214 : vector<16x32xf32>
    %216 = math.tanh %215 : vector<16x32xf32>
    %cst_67 = arith.constant 1.000000e+00 : f32
    %217 = vector.broadcast %cst_67 : f32 to vector<16x32xf32>
    %218 = arith.subf %217, %211 : vector<16x32xf32>
    %219 = arith.mulf %218, %216 : vector<16x32xf32>
    %220 = arith.mulf %211, %189 : vector<16x32xf32>
    %221 = arith.addf %219, %220 : vector<16x32xf32>
    %222 = vector.broadcast %c4_i32 : i32 to vector<16x1xi32>
    %223 = arith.cmpi eq, %65, %222 : vector<16x1xi32>
    %224 = vector.shape_cast %223 : vector<16x1xi1> to vector<16x1xi1>
    %225 = vector.broadcast %224 : vector<16x1xi1> to vector<16x32xi1>
    %226 = arith.select %225, %221, %194 : vector<16x32xi1>, vector<16x32xf32>
    %c5_i32 = arith.constant 5 : i32
    %c16_i32_68 = arith.constant 16 : i32
    %227 = arith.muli %c5_i32, %c16_i32_68 : i32
    %228 = tpu.assume_multiple %227, 16 : i32
    %229 = arith.index_cast %228 : i32 to index
    %c0_69 = arith.constant 0 : index
    %230 = vector.load %arg19[%229, %c0_69] : memref<128x96xf32, #tpu.memory_space<vmem>>, vector<16x96xf32>
    %cst_70 = arith.constant dense<0.000000e+00> : vector<16x96xf32>
    %231 = tpu.matmul %221, %61, %cst_70 {dimension_numbers = #tpu.dot_dimension_numbers<[1], [0], [0], [1], [0, 0, 1, 1], [], []>} : vector<16x32xf32>, vector<32x96xf32>, vector<16x96xf32> -> vector<16x96xf32>
    %232 = vector.broadcast %62 : vector<1x96xf32> to vector<16x96xf32>
    %233 = arith.addf %231, %232 : vector<16x96xf32>
    %234 = vector.extract_strided_slice %230 {offsets = [0, 0], sizes = [16, 64], strides = [1, 1]} : vector<16x96xf32> to vector<16x64xf32>
    %235 = vector.extract_strided_slice %233 {offsets = [0, 0], sizes = [16, 64], strides = [1, 1]} : vector<16x96xf32> to vector<16x64xf32>
    %236 = arith.addf %234, %235 : vector<16x64xf32>
    %237 = arith.negf %236 : vector<16x64xf32>
    %238 = math.exp %237 : vector<16x64xf32>
    %cst_71 = arith.constant 1.000000e+00 : f32
    %239 = vector.broadcast %cst_71 : f32 to vector<16x64xf32>
    %240 = arith.addf %239, %238 : vector<16x64xf32>
    %241 = arith.divf %239, %240 : vector<16x64xf32>
    %242 = vector.extract_strided_slice %241 {offsets = [0, 0], sizes = [16, 32], strides = [1, 1]} : vector<16x64xf32> to vector<16x32xf32>
    %243 = vector.extract_strided_slice %241 {offsets = [0, 32], sizes = [16, 32], strides = [1, 1]} : vector<16x64xf32> to vector<16x32xf32>
    %244 = vector.extract_strided_slice %230 {offsets = [0, 64], sizes = [16, 32], strides = [1, 1]} : vector<16x96xf32> to vector<16x32xf32>
    %245 = vector.extract_strided_slice %233 {offsets = [0, 64], sizes = [16, 32], strides = [1, 1]} : vector<16x96xf32> to vector<16x32xf32>
    %246 = arith.mulf %242, %245 : vector<16x32xf32>
    %247 = arith.addf %244, %246 : vector<16x32xf32>
    %248 = math.tanh %247 : vector<16x32xf32>
    %cst_72 = arith.constant 1.000000e+00 : f32
    %249 = vector.broadcast %cst_72 : f32 to vector<16x32xf32>
    %250 = arith.subf %249, %243 : vector<16x32xf32>
    %251 = arith.mulf %250, %248 : vector<16x32xf32>
    %252 = arith.mulf %243, %221 : vector<16x32xf32>
    %253 = arith.addf %251, %252 : vector<16x32xf32>
    %254 = vector.broadcast %c5_i32 : i32 to vector<16x1xi32>
    %255 = arith.cmpi eq, %65, %254 : vector<16x1xi32>
    %256 = vector.shape_cast %255 : vector<16x1xi1> to vector<16x1xi1>
    %257 = vector.broadcast %256 : vector<16x1xi1> to vector<16x32xi1>
    %258 = arith.select %257, %253, %226 : vector<16x32xi1>, vector<16x32xf32>
    %c6_i32 = arith.constant 6 : i32
    %c16_i32_73 = arith.constant 16 : i32
    %259 = arith.muli %c6_i32, %c16_i32_73 : i32
    %260 = tpu.assume_multiple %259, 16 : i32
    %261 = arith.index_cast %260 : i32 to index
    %c0_74 = arith.constant 0 : index
    %262 = vector.load %arg19[%261, %c0_74] : memref<128x96xf32, #tpu.memory_space<vmem>>, vector<16x96xf32>
    %cst_75 = arith.constant dense<0.000000e+00> : vector<16x96xf32>
    %263 = tpu.matmul %253, %61, %cst_75 {dimension_numbers = #tpu.dot_dimension_numbers<[1], [0], [0], [1], [0, 0, 1, 1], [], []>} : vector<16x32xf32>, vector<32x96xf32>, vector<16x96xf32> -> vector<16x96xf32>
    %264 = vector.broadcast %62 : vector<1x96xf32> to vector<16x96xf32>
    %265 = arith.addf %263, %264 : vector<16x96xf32>
    %266 = vector.extract_strided_slice %262 {offsets = [0, 0], sizes = [16, 64], strides = [1, 1]} : vector<16x96xf32> to vector<16x64xf32>
    %267 = vector.extract_strided_slice %265 {offsets = [0, 0], sizes = [16, 64], strides = [1, 1]} : vector<16x96xf32> to vector<16x64xf32>
    %268 = arith.addf %266, %267 : vector<16x64xf32>
    %269 = arith.negf %268 : vector<16x64xf32>
    %270 = math.exp %269 : vector<16x64xf32>
    %cst_76 = arith.constant 1.000000e+00 : f32
    %271 = vector.broadcast %cst_76 : f32 to vector<16x64xf32>
    %272 = arith.addf %271, %270 : vector<16x64xf32>
    %273 = arith.divf %271, %272 : vector<16x64xf32>
    %274 = vector.extract_strided_slice %273 {offsets = [0, 0], sizes = [16, 32], strides = [1, 1]} : vector<16x64xf32> to vector<16x32xf32>
    %275 = vector.extract_strided_slice %273 {offsets = [0, 32], sizes = [16, 32], strides = [1, 1]} : vector<16x64xf32> to vector<16x32xf32>
    %276 = vector.extract_strided_slice %262 {offsets = [0, 64], sizes = [16, 32], strides = [1, 1]} : vector<16x96xf32> to vector<16x32xf32>
    %277 = vector.extract_strided_slice %265 {offsets = [0, 64], sizes = [16, 32], strides = [1, 1]} : vector<16x96xf32> to vector<16x32xf32>
    %278 = arith.mulf %274, %277 : vector<16x32xf32>
    %279 = arith.addf %276, %278 : vector<16x32xf32>
    %280 = math.tanh %279 : vector<16x32xf32>
    %cst_77 = arith.constant 1.000000e+00 : f32
    %281 = vector.broadcast %cst_77 : f32 to vector<16x32xf32>
    %282 = arith.subf %281, %275 : vector<16x32xf32>
    %283 = arith.mulf %282, %280 : vector<16x32xf32>
    %284 = arith.mulf %275, %253 : vector<16x32xf32>
    %285 = arith.addf %283, %284 : vector<16x32xf32>
    %286 = vector.broadcast %c6_i32 : i32 to vector<16x1xi32>
    %287 = arith.cmpi eq, %65, %286 : vector<16x1xi32>
    %288 = vector.shape_cast %287 : vector<16x1xi1> to vector<16x1xi1>
    %289 = vector.broadcast %288 : vector<16x1xi1> to vector<16x32xi1>
    %290 = arith.select %289, %285, %258 : vector<16x32xi1>, vector<16x32xf32>
    %c7_i32 = arith.constant 7 : i32
    %c16_i32_78 = arith.constant 16 : i32
    %291 = arith.muli %c7_i32, %c16_i32_78 : i32
    %292 = tpu.assume_multiple %291, 16 : i32
    %293 = arith.index_cast %292 : i32 to index
    %c0_79 = arith.constant 0 : index
    %294 = vector.load %arg19[%293, %c0_79] : memref<128x96xf32, #tpu.memory_space<vmem>>, vector<16x96xf32>
    %cst_80 = arith.constant dense<0.000000e+00> : vector<16x96xf32>
    %295 = tpu.matmul %285, %61, %cst_80 {dimension_numbers = #tpu.dot_dimension_numbers<[1], [0], [0], [1], [0, 0, 1, 1], [], []>} : vector<16x32xf32>, vector<32x96xf32>, vector<16x96xf32> -> vector<16x96xf32>
    %296 = vector.broadcast %62 : vector<1x96xf32> to vector<16x96xf32>
    %297 = arith.addf %295, %296 : vector<16x96xf32>
    %298 = vector.extract_strided_slice %294 {offsets = [0, 0], sizes = [16, 64], strides = [1, 1]} : vector<16x96xf32> to vector<16x64xf32>
    %299 = vector.extract_strided_slice %297 {offsets = [0, 0], sizes = [16, 64], strides = [1, 1]} : vector<16x96xf32> to vector<16x64xf32>
    %300 = arith.addf %298, %299 : vector<16x64xf32>
    %301 = arith.negf %300 : vector<16x64xf32>
    %302 = math.exp %301 : vector<16x64xf32>
    %cst_81 = arith.constant 1.000000e+00 : f32
    %303 = vector.broadcast %cst_81 : f32 to vector<16x64xf32>
    %304 = arith.addf %303, %302 : vector<16x64xf32>
    %305 = arith.divf %303, %304 : vector<16x64xf32>
    %306 = vector.extract_strided_slice %305 {offsets = [0, 0], sizes = [16, 32], strides = [1, 1]} : vector<16x64xf32> to vector<16x32xf32>
    %307 = vector.extract_strided_slice %305 {offsets = [0, 32], sizes = [16, 32], strides = [1, 1]} : vector<16x64xf32> to vector<16x32xf32>
    %308 = vector.extract_strided_slice %294 {offsets = [0, 64], sizes = [16, 32], strides = [1, 1]} : vector<16x96xf32> to vector<16x32xf32>
    %309 = vector.extract_strided_slice %297 {offsets = [0, 64], sizes = [16, 32], strides = [1, 1]} : vector<16x96xf32> to vector<16x32xf32>
    %310 = arith.mulf %306, %309 : vector<16x32xf32>
    %311 = arith.addf %308, %310 : vector<16x32xf32>
    %312 = math.tanh %311 : vector<16x32xf32>
    %cst_82 = arith.constant 1.000000e+00 : f32
    %313 = vector.broadcast %cst_82 : f32 to vector<16x32xf32>
    %314 = arith.subf %313, %307 : vector<16x32xf32>
    %315 = arith.mulf %314, %312 : vector<16x32xf32>
    %316 = arith.mulf %307, %285 : vector<16x32xf32>
    %317 = arith.addf %315, %316 : vector<16x32xf32>
    %318 = vector.broadcast %c7_i32 : i32 to vector<16x1xi32>
    %319 = arith.cmpi eq, %65, %318 : vector<16x1xi32>
    %320 = vector.shape_cast %319 : vector<16x1xi1> to vector<16x1xi1>
    %321 = vector.broadcast %320 : vector<16x1xi1> to vector<16x32xi1>
    %322 = arith.select %321, %317, %290 : vector<16x32xi1>, vector<16x32xf32>
    %c8_i32 = arith.constant 8 : i32
    %c0_83 = arith.constant 0 : index
    %c0_84 = arith.constant 0 : index
    %323 = vector.load %arg14[%c0_83, %c0_84] : memref<1x32xf32, #tpu.memory_space<vmem>>, vector<1x32xf32>
    %324 = vector.broadcast %323 : vector<1x32xf32> to vector<16x32xf32>
    %325 = arith.mulf %322, %324 : vector<16x32xf32>
    %cst_85 = arith.constant dense<0.000000e+00> : vector<16xf32>
    %326 = vector.multi_reduction <add>, %325, %cst_85 [1] : vector<16x32xf32> to vector<16xf32>
    %327 = vector.shape_cast %326 : vector<16xf32> to vector<16x1xf32>
    %c0_86 = arith.constant 0 : index
    %c0_87 = arith.constant 0 : index
    %328 = vector.load %arg15[%c0_86, %c0_87] : memref<1x1xf32, #tpu.memory_space<vmem>>, vector<1x1xf32>
    %329 = vector.broadcast %328 : vector<1x1xf32> to vector<16x1xf32>
    %330 = arith.addf %327, %329 : vector<16x1xf32>
    %c0_88 = arith.constant 0 : index
    %c0_89 = arith.constant 0 : index
    %331 = vector.load %arg16[%c0_88, %c0_89] : memref<8x4xf32, #tpu.memory_space<vmem>>, vector<8x4xf32>
    %cst_90 = arith.constant dense<0.000000e+00> : vector<4xf32>
    %332 = vector.multi_reduction <add>, %331, %cst_90 [0] : vector<8x4xf32> to vector<4xf32>
    %333 = vector.shape_cast %332 : vector<4xf32> to vector<1x4xf32>
    %334 = vector.broadcast %330 : vector<16x1xf32> to vector<16x4xf32>
    %335 = vector.broadcast %333 : vector<1x4xf32> to vector<16x4xf32>
    %336 = arith.mulf %334, %335 : vector<16x4xf32>
    %337 = arith.addf %336, %53 : vector<16x4xf32>
    %c0_91 = arith.constant 0 : index
    %c0_92 = arith.constant 0 : index
    %338 = vector.load %arg17[%c0_91, %c0_92] : memref<1x4xf32, #tpu.memory_space<vmem>>, vector<1x4xf32>
    %339 = vector.broadcast %338 : vector<1x4xf32> to vector<16x4xf32>
    %340 = arith.addf %337, %339 : vector<16x4xf32>
    %c0_93 = arith.constant 0 : index
    %c0_94 = arith.constant 0 : index
    %341 = vector.load %arg18[%c0_93, %c0_94] : memref<16x4xf32, #tpu.memory_space<vmem>>, vector<16x4xf32>
    tpu.vector_store %arg18[%c0_93, %c0_94], %340 {strides = array<i32>} : memref<16x4xf32, #tpu.memory_space<vmem>>, vector<16x4xf32>,
    return
  }
  func.func @transform_0(%arg0: i32) -> (i32, i32, i32) {
    %c0_i32 = arith.constant 0 : i32
    %c0_i32_0 = arith.constant 0 : i32
    %c0_i32_1 = arith.constant 0 : i32
    return %c0_i32, %arg0, %c0_i32_0 : i32, i32, i32
  }
  func.func @transform_1(%arg0: i32) -> (i32, i32, i32) {
    %c0_i32 = arith.constant 0 : i32
    %c0_i32_0 = arith.constant 0 : i32
    %c0_i32_1 = arith.constant 0 : i32
    return %c0_i32, %arg0, %c0_i32_0 : i32, i32, i32
  }
  func.func @transform_2(%arg0: i32) -> (i32, i32) {
    %c0_i32 = arith.constant 0 : i32
    %c0_i32_0 = arith.constant 0 : i32
    return %arg0, %c0_i32 : i32, i32
  }
  func.func @transform_3(%arg0: i32) -> (i32, i32) {
    %c0_i32 = arith.constant 0 : i32
    %c0_i32_0 = arith.constant 0 : i32
    %c0_i32_1 = arith.constant 0 : i32
    return %c0_i32, %c0_i32_0 : i32, i32
  }
  func.func @transform_4(%arg0: i32) -> (i32, i32) {
    %c0_i32 = arith.constant 0 : i32
    %c0_i32_0 = arith.constant 0 : i32
    %c0_i32_1 = arith.constant 0 : i32
    return %c0_i32, %c0_i32_0 : i32, i32
  }
  func.func @transform_5(%arg0: i32) -> (i32, i32) {
    %c0_i32 = arith.constant 0 : i32
    %c0_i32_0 = arith.constant 0 : i32
    %c0_i32_1 = arith.constant 0 : i32
    return %c0_i32, %c0_i32_0 : i32, i32
  }
  func.func @transform_6(%arg0: i32) -> (i32, i32) {
    %c0_i32 = arith.constant 0 : i32
    %c0_i32_0 = arith.constant 0 : i32
    %c0_i32_1 = arith.constant 0 : i32
    return %c0_i32, %c0_i32_0 : i32, i32
  }
  func.func @transform_7(%arg0: i32) -> (i32, i32) {
    %c0_i32 = arith.constant 0 : i32
    %c0_i32_0 = arith.constant 0 : i32
    %c0_i32_1 = arith.constant 0 : i32
    return %c0_i32, %c0_i32_0 : i32, i32
  }
  func.func @transform_8(%arg0: i32) -> (i32, i32) {
    %c0_i32 = arith.constant 0 : i32
    %c0_i32_0 = arith.constant 0 : i32
    %c0_i32_1 = arith.constant 0 : i32
    return %c0_i32, %c0_i32_0 : i32, i32
  }
  func.func @transform_9(%arg0: i32) -> (i32, i32) {
    %c0_i32 = arith.constant 0 : i32
    %c0_i32_0 = arith.constant 0 : i32
    %c0_i32_1 = arith.constant 0 : i32
    return %c0_i32, %c0_i32_0 : i32, i32
  }
  func.func @transform_10(%arg0: i32) -> (i32, i32) {
    %c0_i32 = arith.constant 0 : i32
    %c0_i32_0 = arith.constant 0 : i32
    %c0_i32_1 = arith.constant 0 : i32
    return %c0_i32, %c0_i32_0 : i32, i32
  }
  func.func @transform_11(%arg0: i32) -> (i32, i32) {
    %c0_i32 = arith.constant 0 : i32
    %c0_i32_0 = arith.constant 0 : i32
    %c0_i32_1 = arith.constant 0 : i32
    return %c0_i32, %c0_i32_0 : i32, i32
  }
  func.func @transform_12(%arg0: i32) -> (i32, i32) {
    %c0_i32 = arith.constant 0 : i32
    %c0_i32_0 = arith.constant 0 : i32
    %c0_i32_1 = arith.constant 0 : i32
    return %c0_i32, %c0_i32_0 : i32, i32
  }
  func.func @transform_13(%arg0: i32) -> (i32, i32) {
    %c0_i32 = arith.constant 0 : i32
    %c0_i32_0 = arith.constant 0 : i32
    %c0_i32_1 = arith.constant 0 : i32
    return %c0_i32, %c0_i32_0 : i32, i32
  }
  func.func @transform_14(%arg0: i32) -> (i32, i32) {
    %c0_i32 = arith.constant 0 : i32
    %c0_i32_0 = arith.constant 0 : i32
    %c0_i32_1 = arith.constant 0 : i32
    return %c0_i32, %c0_i32_0 : i32, i32
  }
  func.func @transform_15(%arg0: i32) -> (i32, i32) {
    %c0_i32 = arith.constant 0 : i32
    %c0_i32_0 = arith.constant 0 : i32
    %c0_i32_1 = arith.constant 0 : i32
    return %c0_i32, %c0_i32_0 : i32, i32
  }
  func.func @transform_16(%arg0: i32) -> (i32, i32) {
    %c0_i32 = arith.constant 0 : i32
    %c0_i32_0 = arith.constant 0 : i32
    %c0_i32_1 = arith.constant 0 : i32
    return %c0_i32, %c0_i32_0 : i32, i32
  }
  func.func @transform_17(%arg0: i32) -> (i32, i32) {
    %c0_i32 = arith.constant 0 : i32
    %c0_i32_0 = arith.constant 0 : i32
    return %arg0, %c0_i32 : i32, i32
  }
}

</mosaic_0001>

<llo_original>
// kernel: content_forward_pallas.1
$region0: #{content_forward_pallas.1}
  #allocation0 [shape = 'u32[]', space=smem, size = 0x4, offset = 0x4, fixed_abs, tag = 'smem constant byte address 0x4 - core index']
  #allocation1 [shape = 'u32[144,128]{1,0:T(1,128)}', space=vmem, size = 0x12000, scoped, tag = 'internal scratch']
  #allocation2 [shape = 'f32[128,96]{1,0:T(8,128)}', space=vmem, size = 0x10000, scoped, tag = 'scratch operand']
  #allocation3 [shape = 'f32[1,1]{1,0:T(1,128)S(1)}', space=vmem, size = 0x200, scoped, tag = 'scoped memory for content_forward_pallas.1']
  %s0 = inlined_call_operand.vmem [shape: bf16[8,32,16], index: 0, kind: input, shape index: {}]
  %s1 = inlined_call_operand.vmem [shape: f32[8,32,8], index: 1, kind: input, shape index: {}]
  %s2 = inlined_call_operand.vmem [shape: s32[32,1], index: 2, kind: input, shape index: {}]
  %s3 = inlined_call_operand.vmem [shape: bf16[16,72], index: 3, kind: input, shape index: {}]
  %s4 = inlined_call_operand.vmem [shape: f32[1,72], index: 4, kind: input, shape index: {}]
  %s5 = inlined_call_operand.vmem [shape: bf16[32,32], index: 5, kind: input, shape index: {}]
  %s6 = inlined_call_operand.vmem [shape: f32[1,32], index: 6, kind: input, shape index: {}]
  %s7 = inlined_call_operand.vmem [shape: bf16[32,16], index: 7, kind: input, shape index: {}]
  %s8 = inlined_call_operand.vmem [shape: f32[1,16], index: 8, kind: input, shape index: {}]
  %s9 = inlined_call_operand.vmem [shape: bf16[32,96], index: 9, kind: input, shape index: {}]
  %s10 = inlined_call_operand.vmem [shape: f32[32,96], index: 10, kind: input, shape index: {}]
  %s11 = inlined_call_operand.vmem [shape: f32[1,96], index: 11, kind: input, shape index: {}]
  %s12 = inlined_call_operand.vmem [shape: f32[1,96], index: 12, kind: input, shape index: {}]
  %s13 = inlined_call_operand.vmem [shape: f32[1,32], index: 13, kind: input, shape index: {}]
  %s14 = inlined_call_operand.<no memory space> [shape: f32[1,1], index: 14, kind: input, shape index: {}]
  %s15 = inlined_call_operand.vmem [shape: f32[8,4], index: 15, kind: input, shape index: {}]
  %s16 = inlined_call_operand.vmem [shape: f32[1,4], index: 16, kind: input, shape index: {}]
  %s17 = inlined_call_operand.vmem [shape: f32[32,4], index: 17, kind: output, shape index: {}]
  %s18 = sld [smem:[#allocation0]]
  $region180: #{content_forward_pallas.1} parent=0
    _
  %s20 = ssub.s32 1, %s18
  %s21 = scalar_select 0, %s20, %s18
  %v22 = vstv %s14
  %23 = vst [vmem:[#allocation3] sm:$0x1] %v22
  $region1: #{content_forward_pallas.1} parent=0
    #allocation4 [shape = 'u8[65536]{0}', space=vmem, size = 0x10000, scoped, tag = 'input window, operand 0']
    #allocation5 [shape = 'u8[131072]{0}', space=vmem, size = 0x20000, scoped, tag = 'input window, operand 1']
    loop: start=0, step=1, limit=4
    $region2: #{content_forward_pallas.1} parent=1 // loop_pre_header
      _
    $region3: #{content_forward_pallas.1} parent=1 // loop_header
      %s25 = sphi 0, %s29
      %p26 = scmp.ge.s32.totalorder %s25, 4
      %s35 = sphi 0, %s37
      %s38 = sphi 0, %s35
      %s39 = sphi 0, %s38
      %s55 = sphi 0, %s39
      %s61 = sphi 0, %s63
      %s64 = sphi 0, %s61
      %s65 = sphi 0, %s64
      %s81 = sphi 0, %s65
      %s87 = sphi 0, %s89
      %s90 = sphi 0, %s87
      %s91 = sphi 0, %s90
      %s107 = sphi 0, %s91
      %s111 = sphi 0, %s111
      %s113 = sphi 0, %s111
      %s114 = sphi 0, %s113
      %s128 = sphi 0, %s114
      %s132 = sphi 0, %s132
      %s134 = sphi 0, %s132
      %s135 = sphi 0, %s134
      %s149 = sphi 0, %s135
      %s153 = sphi 0, %s153
      %s155 = sphi 0, %s153
      %s156 = sphi 0, %s155
      %s170 = sphi 0, %s156
      %s174 = sphi 0, %s174
      %s176 = sphi 0, %s174
      %s177 = sphi 0, %s176
      %s191 = sphi 0, %s177
      %s195 = sphi 0, %s195
      %s197 = sphi 0, %s195
      %s198 = sphi 0, %s197
      %s212 = sphi 0, %s198
      %s216 = sphi 0, %s216
      %s218 = sphi 0, %s216
      %s219 = sphi 0, %s218
      %s233 = sphi 0, %s219
      %s237 = sphi 0, %s237
      %s239 = sphi 0, %s237
      %s240 = sphi 0, %s239
      %s254 = sphi 0, %s240
      %s258 = sphi 0, %s258
      %s260 = sphi 0, %s258
      %s261 = sphi 0, %s260
      %s275 = sphi 0, %s261
      %s279 = sphi 0, %s279
      %s281 = sphi 0, %s279
      %s282 = sphi 0, %s281
      %s296 = sphi 0, %s282
      %s300 = sphi 0, %s300
      %s302 = sphi 0, %s300
      %s303 = sphi 0, %s302
      %s317 = sphi 0, %s303
      %s321 = sphi 0, %s321
      %s323 = sphi 0, %s321
      %s324 = sphi 0, %s323
      %s338 = sphi 0, %s324
      %s342 = sphi 0, %s342
      %s344 = sphi 0, %s342
      %s345 = sphi 0, %s344
      %s359 = sphi 0, %s345
      %s363 = sphi 0, %s363
      %s365 = sphi 0, %s363
      %s366 = sphi 0, %s365
      %s380 = sphi 0, %s366
      %s384 = sphi 0, %s384
      %s386 = sphi 0, %s384
      %s387 = sphi 0, %s386
      %s401 = sphi 0, %s387
      %s407 = sphi 0, %s409
      %s410 = sphi 0, %s407
      %s411 = sphi 0, %s410
      %s427 = sphi 0, %s411
    $region4: #{content_forward_pallas.1} parent=1 // loop_header_branch
      %28 = sbr.rel (%p26) target = $region8
    $region5: #{content_forward_pallas.1} parent=1 // loop_body
      %s30 = ssub.s32 %s25, 1
      %s31 = ssub.s32 %s25, 2
      %s32 = sadd.s32 %s25, 1
      %s33 = ssub.s32 %s25, %s32
      %p34 = scmp.eq.s32.totalorder %s33, 0
      %s36 = sadd.s32 %s35, 1
      %s37 = scalar_select %p34, %s35, %s36
      %p40 = pneg %p34
      %p41 = scmp.eq.s32.totalorder %s25, 1
      %p42 = por %p40, %p41
      %p43 = scmp.ne.s32.totalorder %s35, %s38
      %p44 = scmp.eq.s32.totalorder %s25, 0
      %p45 = por %p43, %p44
      %p46 = scmp.ne.s32.totalorder %s35, %s38
      %p47 = scmp.eq.s32.totalorder %s30, 1
      %p48 = por %p46, %p47
      %p49 = scmp.ne.s32.totalorder %s38, %s39
      %p50 = scmp.eq.s32.totalorder %s30, 0
      %p51 = por %p49, %p50
      %p52 = scmp.ne.s32.totalorder %s38, %s39
      %p53 = scmp.eq.s32.totalorder %s31, 1
      %p54 = por %p52, %p53
      %p56 = scmp.ne.s32.totalorder %s39, %s55
      %p57 = scmp.eq.s32.totalorder %s31, 0
      %p58 = por %p56, %p57
      %s59 = ssub.s32 %s25, %s32
      %p60 = scmp.eq.s32.totalorder %s59, 0
      %s62 = sadd.s32 %s61, 1
      %s63 = scalar_select %p60, %s61, %s62
      %p66 = pneg %p60
      %p67 = scmp.eq.s32.totalorder %s25, 1
      %p68 = por %p66, %p67
      %p69 = scmp.ne.s32.totalorder %s61, %s64
      %p70 = scmp.eq.s32.totalorder %s25, 0
      %p71 = por %p69, %p70
      %p72 = scmp.ne.s32.totalorder %s61, %s64
      %p73 = scmp.eq.s32.totalorder %s30, 1
      %p74 = por %p72, %p73
      %p75 = scmp.ne.s32.totalorder %s64, %s65
      %p76 = scmp.eq.s32.totalorder %s30, 0
      %p77 = por %p75, %p76
      %p78 = scmp.ne.s32.totalorder %s64, %s65
      %p79 = scmp.eq.s32.totalorder %s31, 1
      %p80 = por %p78, %p79
      %p82 = scmp.ne.s32.totalorder %s65, %s81
      %p83 = scmp.eq.s32.totalorder %s31, 0
      %p84 = por %p82, %p83
      %s85 = ssub.s32 %s25, %s32
      %p86 = scmp.eq.s32.totalorder %s85, 0
      %s88 = sadd.s32 %s87, 1
      %s89 = scalar_select %p86, %s87, %s88
      %p92 = pneg %p86
      %p93 = scmp.eq.s32.totalorder %s25, 1
      %p94 = por %p92, %p93
      %p95 = scmp.ne.s32.totalorder %s87, %s90
      %p96 = scmp.eq.s32.totalorder %s25, 0
      %p97 = por %p95, %p96
      %p98 = scmp.ne.s32.totalorder %s87, %s90
      %p99 = scmp.eq.s32.totalorder %s30, 1
      %p100 = por %p98, %p99
      %p101 = scmp.ne.s32.totalorder %s90, %s91
      %p102 = scmp.eq.s32.totalorder %s30, 0
      %p103 = por %p101, %p102
      %p104 = scmp.ne.s32.totalorder %s90, %s91
      %p105 = scmp.eq.s32.totalorder %s31, 1
      %p106 = por %p104, %p105
      %p108 = scmp.ne.s32.totalorder %s91, %s107
      %p109 = scmp.eq.s32.totalorder %s31, 0
      %p110 = por %p108, %p109
      %s112 = sadd.s32 %s111, 1
      %p115 = scmp.eq.s32.totalorder %s25, 1
      %p116 = scmp.ne.s32.totalorder %s111, %s113
      %p117 = scmp.eq.s32.totalorder %s25, 0
      %p118 = por %p116, %p117
      %p119 = scmp.ne.s32.totalorder %s111, %s113
      %p120 = scmp.eq.s32.totalorder %s30, 1
      %p121 = por %p119, %p120
      %p122 = scmp.ne.s32.totalorder %s113, %s114
      %p123 = scmp.eq.s32.totalorder %s30, 0
      %p124 = por %p122, %p123
      %p125 = scmp.ne.s32.totalorder %s113, %s114
      %p126 = scmp.eq.s32.totalorder %s31, 1
      %p127 = por %p125, %p126
      %p129 = scmp.ne.s32.totalorder %s114, %s128
      %p130 = scmp.eq.s32.totalorder %s31, 0
      %p131 = por %p129, %p130
      %s133 = sadd.s32 %s132, 1
      %p136 = scmp.eq.s32.totalorder %s25, 1
      %p137 = scmp.ne.s32.totalorder %s132, %s134
      %p138 = scmp.eq.s32.totalorder %s25, 0
      %p139 = por %p137, %p138
      %p140 = scmp.ne.s32.totalorder %s132, %s134
      %p141 = scmp.eq.s32.totalorder %s30, 1
      %p142 = por %p140, %p141
      %p143 = scmp.ne.s32.totalorder %s134, %s135
      %p144 = scmp.eq.s32.totalorder %s30, 0
      %p145 = por %p143, %p144
      %p146 = scmp.ne.s32.totalorder %s134, %s135
      %p147 = scmp.eq.s32.totalorder %s31, 1
      %p148 = por %p146, %p147
      %p150 = scmp.ne.s32.totalorder %s135, %s149
      %p151 = scmp.eq.s32.totalorder %s31, 0
      %p152 = por %p150, %p151
      %s154 = sadd.s32 %s153, 1
      %p157 = scmp.eq.s32.totalorder %s25, 1
      %p158 = scmp.ne.s32.totalorder %s153, %s155
      %p159 = scmp.eq.s32.totalorder %s25, 0
      %p160 = por %p158, %p159
      %p161 = scmp.ne.s32.totalorder %s153, %s155
      %p162 = scmp.eq.s32.totalorder %s30, 1
      %p163 = por %p161, %p162
      %p164 = scmp.ne.s32.totalorder %s155, %s156
      %p165 = scmp.eq.s32.totalorder %s30, 0
      %p166 = por %p164, %p165
      %p167 = scmp.ne.s32.totalorder %s155, %s156
      %p168 = scmp.eq.s32.totalorder %s31, 1
      %p169 = por %p167, %p168
      %p171 = scmp.ne.s32.totalorder %s156, %s170
      %p172 = scmp.eq.s32.totalorder %s31, 0
      %p173 = por %p171, %p172
      %s175 = sadd.s32 %s174, 1
      %p178 = scmp.eq.s32.totalorder %s25, 1
      %p179 = scmp.ne.s32.totalorder %s174, %s176
      %p180 = scmp.eq.s32.totalorder %s25, 0
      %p181 = por %p179, %p180
      %p182 = scmp.ne.s32.totalorder %s174, %s176
      %p183 = scmp.eq.s32.totalorder %s30, 1
      %p184 = por %p182, %p183
      %p185 = scmp.ne.s32.totalorder %s176, %s177
      %p186 = scmp.eq.s32.totalorder %s30, 0
      %p187 = por %p185, %p186
      %p188 = scmp.ne.s32.totalorder %s176, %s177
      %p189 = scmp.eq.s32.totalorder %s31, 1
      %p190 = por %p188, %p189
      %p192 = scmp.ne.s32.totalorder %s177, %s191
      %p193 = scmp.eq.s32.totalorder %s31, 0
      %p194 = por %p192, %p193
      %s196 = sadd.s32 %s195, 1
      %p199 = scmp.eq.s32.totalorder %s25, 1
      %p200 = scmp.ne.s32.totalorder %s195, %s197
      %p201 = scmp.eq.s32.totalorder %s25, 0
      %p202 = por %p200, %p201
      %p203 = scmp.ne.s32.totalorder %s195, %s197
      %p204 = scmp.eq.s32.totalorder %s30, 1
      %p205 = por %p203, %p204
      %p206 = scmp.ne.s32.totalorder %s197, %s198
      %p207 = scmp.eq.s32.totalorder %s30, 0
      %p208 = por %p206, %p207
      %p209 = scmp.ne.s32.totalorder %s197, %s198
      %p210 = scmp.eq.s32.totalorder %s31, 1
      %p211 = por %p209, %p210
      %p213 = scmp.ne.s32.totalorder %s198, %s212
      %p214 = scmp.eq.s32.totalorder %s31, 0
      %p215 = por %p213, %p214
      %s217 = sadd.s32 %s216, 1
      %p220 = scmp.eq.s32.totalorder %s25, 1
      %p221 = scmp.ne.s32.totalorder %s216, %s218
      %p222 = scmp.eq.s32.totalorder %s25, 0
      %p223 = por %p221, %p222
      %p224 = scmp.ne.s32.totalorder %s216, %s218
      %p225 = scmp.eq.s32.totalorder %s30, 1
      %p226 = por %p224, %p225
      %p227 = scmp.ne.s32.totalorder %s218, %s219
      %p228 = scmp.eq.s32.totalorder %s30, 0
      %p229 = por %p227, %p228
      %p230 = scmp.ne.s32.totalorder %s218, %s219
      %p231 = scmp.eq.s32.totalorder %s31, 1
      %p232 = por %p230, %p231
      %p234 = scmp.ne.s32.totalorder %s219, %s233
      %p235 = scmp.eq.s32.totalorder %s31, 0
      %p236 = por %p234, %p235
      %s238 = sadd.s32 %s237, 1
      %p241 = scmp.eq.s32.totalorder %s25, 1
      %p242 = scmp.ne.s32.totalorder %s237, %s239
      %p243 = scmp.eq.s32.totalorder %s25, 0
      %p244 = por %p242, %p243
      %p245 = scmp.ne.s32.totalorder %s237, %s239
      %p246 = scmp.eq.s32.totalorder %s30, 1
      %p247 = por %p245, %p246
      %p248 = scmp.ne.s32.totalorder %s239, %s240
      %p249 = scmp.eq.s32.totalorder %s30, 0
      %p250 = por %p248, %p249
      %p251 = scmp.ne.s32.totalorder %s239, %s240
      %p252 = scmp.eq.s32.totalorder %s31, 1
      %p253 = por %p251, %p252
      %p255 = scmp.ne.s32.totalorder %s240, %s254
      %p256 = scmp.eq.s32.totalorder %s31, 0
      %p257 = por %p255, %p256
      %s259 = sadd.s32 %s258, 1
      %p262 = scmp.eq.s32.totalorder %s25, 1
      %p263 = scmp.ne.s32.totalorder %s258, %s260
      %p264 = scmp.eq.s32.totalorder %s25, 0
      %p265 = por %p263, %p264
      %p266 = scmp.ne.s32.totalorder %s258, %s260
      %p267 = scmp.eq.s32.totalorder %s30, 1
      %p268 = por %p266, %p267
      %p269 = scmp.ne.s32.totalorder %s260, %s261
      %p270 = scmp.eq.s32.totalorder %s30, 0
      %p271 = por %p269, %p270
      %p272 = scmp.ne.s32.totalorder %s260, %s261
      %p273 = scmp.eq.s32.totalorder %s31, 1
      %p274 = por %p272, %p273
      %p276 = scmp.ne.s32.totalorder %s261, %s275
      %p277 = scmp.eq.s32.totalorder %s31, 0
      %p278 = por %p276, %p277
      %s280 = sadd.s32 %s279, 1
      %p283 = scmp.eq.s32.totalorder %s25, 1
      %p284 = scmp.ne.s32.totalorder %s279, %s281
      %p285 = scmp.eq.s32.totalorder %s25, 0
      %p286 = por %p284, %p285
      %p287 = scmp.ne.s32.totalorder %s279, %s281
      %p288 = scmp.eq.s32.totalorder %s30, 1
      %p289 = por %p287, %p288
      %p290 = scmp.ne.s32.totalorder %s281, %s282
      %p291 = scmp.eq.s32.totalorder %s30, 0
      %p292 = por %p290, %p291
      %p293 = scmp.ne.s32.totalorder %s281, %s282
      %p294 = scmp.eq.s32.totalorder %s31, 1
      %p295 = por %p293, %p294
      %p297 = scmp.ne.s32.totalorder %s282, %s296
      %p298 = scmp.eq.s32.totalorder %s31, 0
      %p299 = por %p297, %p298
      %s301 = sadd.s32 %s300, 1
      %p304 = scmp.eq.s32.totalorder %s25, 1
      %p305 = scmp.ne.s32.totalorder %s300, %s302
      %p306 = scmp.eq.s32.totalorder %s25, 0
      %p307 = por %p305, %p306
      %p308 = scmp.ne.s32.totalorder %s300, %s302
      %p309 = scmp.eq.s32.totalorder %s30, 1
      %p310 = por %p308, %p309
      %p311 = scmp.ne.s32.totalorder %s302, %s303
      %p312 = scmp.eq.s32.totalorder %s30, 0
      %p313 = por %p311, %p312
      %p314 = scmp.ne.s32.totalorder %s302, %s303
      %p315 = scmp.eq.s32.totalorder %s31, 1
      %p316 = por %p314, %p315
      %p318 = scmp.ne.s32.totalorder %s303, %s317
      %p319 = scmp.eq.s32.totalorder %s31, 0
      %p320 = por %p318, %p319
      %s322 = sadd.s32 %s321, 1
      %p325 = scmp.eq.s32.totalorder %s25, 1
      %p326 = scmp.ne.s32.totalorder %s321, %s323
      %p327 = scmp.eq.s32.totalorder %s25, 0
      %p328 = por %p326, %p327
      %p329 = scmp.ne.s32.totalorder %s321, %s323
      %p330 = scmp.eq.s32.totalorder %s30, 1
      %p331 = por %p329, %p330
      %p332 = scmp.ne.s32.totalorder %s323, %s324
      %p333 = scmp.eq.s32.totalorder %s30, 0
      %p334 = por %p332, %p333
      %p335 = scmp.ne.s32.totalorder %s323, %s324
      %p336 = scmp.eq.s32.totalorder %s31, 1
      %p337 = por %p335, %p336
      %p339 = scmp.ne.s32.totalorder %s324, %s338
      %p340 = scmp.eq.s32.totalorder %s31, 0
      %p341 = por %p339, %p340
      %s343 = sadd.s32 %s342, 1
      %p346 = scmp.eq.s32.totalorder %s25, 1
      %p347 = scmp.ne.s32.totalorder %s342, %s344
      %p348 = scmp.eq.s32.totalorder %s25, 0
      %p349 = por %p347, %p348
      %p350 = scmp.ne.s32.totalorder %s342, %s344
      %p351 = scmp.eq.s32.totalorder %s30, 1
      %p352 = por %p350, %p351
      %p353 = scmp.ne.s32.totalorder %s344, %s345
      %p354 = scmp.eq.s32.totalorder %s30, 0
      %p355 = por %p353, %p354
      %p356 = scmp.ne.s32.totalorder %s344, %s345
      %p357 = scmp.eq.s32.totalorder %s31, 1
      %p358 = por %p356, %p357
      %p360 = scmp.ne.s32.totalorder %s345, %s359
      %p361 = scmp.eq.s32.totalorder %s31, 0
      %p362 = por %p360, %p361
      %s364 = sadd.s32 %s363, 1
      %p367 = scmp.eq.s32.totalorder %s25, 1
      %p368 = scmp.ne.s32.totalorder %s363, %s365
      %p369 = scmp.eq.s32.totalorder %s25, 0
      %p370 = por %p368, %p369
      %p371 = scmp.ne.s32.totalorder %s363, %s365
      %p372 = scmp.eq.s32.totalorder %s30, 1
      %p373 = por %p371, %p372
      %p374 = scmp.ne.s32.totalorder %s365, %s366
      %p375 = scmp.eq.s32.totalorder %s30, 0
      %p376 = por %p374, %p375
      %p377 = scmp.ne.s32.totalorder %s365, %s366
      %p378 = scmp.eq.s32.totalorder %s31, 1
      %p379 = por %p377, %p378
      %p381 = scmp.ne.s32.totalorder %s366, %s380
      %p382 = scmp.eq.s32.totalorder %s31, 0
      %p383 = por %p381, %p382
      %s385 = sadd.s32 %s384, 1
      %p388 = scmp.eq.s32.totalorder %s25, 1
      %p389 = scmp.ne.s32.totalorder %s384, %s386
      %p390 = scmp.eq.s32.totalorder %s25, 0
      %p391 = por %p389, %p390
      %p392 = scmp.ne.s32.totalorder %s384, %s386
      %p393 = scmp.eq.s32.totalorder %s30, 1
      %p394 = por %p392, %p393
      %p395 = scmp.ne.s32.totalorder %s386, %s387
      %p396 = scmp.eq.s32.totalorder %s30, 0
      %p397 = por %p395, %p396
      %p398 = scmp.ne.s32.totalorder %s386, %s387
      %p399 = scmp.eq.s32.totalorder %s31, 1
      %p400 = por %p398, %p399
      %p402 = scmp.ne.s32.totalorder %s387, %s401
      %p403 = scmp.eq.s32.totalorder %s31, 0
      %p404 = por %p402, %p403
      %s405 = ssub.s32 %s25, %s32
      %p406 = scmp.eq.s32.totalorder %s405, 0
      %s408 = sadd.s32 %s407, 1
      %s409 = scalar_select %p406, %s407, %s408
      %p412 = pneg %p406
      %p413 = scmp.eq.s32.totalorder %s25, 1
      %p414 = por %p412, %p413
      %p415 = scmp.ne.s32.totalorder %s407, %s410
      %p416 = scmp.eq.s32.totalorder %s25, 0
      %p417 = por %p415, %p416
      %p418 = scmp.ne.s32.totalorder %s407, %s410
      %p419 = scmp.eq.s32.totalorder %s30, 1
      %p420 = por %p418, %p419
      %p421 = scmp.ne.s32.totalorder %s410, %s411
      %p422 = scmp.eq.s32.totalorder %s30, 0
      %p423 = por %p421, %p422
      %p424 = scmp.ne.s32.totalorder %s410, %s411
      %p425 = scmp.eq.s32.totalorder %s31, 1
      %p426 = por %p424, %p425
      %p428 = scmp.ne.s32.totalorder %s411, %s427
      %p429 = scmp.eq.s32.totalorder %s31, 0
      %p430 = por %p428, %p429
      %p431 = scmp.le.s32.totalorder 1, %s25
      %p432 = scmp.lt.s32.totalorder %s25, 3
      %p433 = pnand %p431, %p432
      %p434 = pneg %p433
      // Predicated region
      $region9: #{content_forward_pallas.1} parent=5 // pred_check
        _
      $region10: #{content_forward_pallas.1} parent=5 // pred_check_branch
        %436 = sbr.rel (%p433) target = $region12
      $region11: #{content_forward_pallas.1} parent=5 // pred_region
        %s437 = ssub.s32 %s25, 1
        // Predicated region
        $region13: #{content_forward_pallas.1} parent=11 // pred_check
          %p438 = pneg %p124
        $region14: #{content_forward_pallas.1} parent=11 // pred_check_branch
          %440 = sbr.rel (%p438) target = $region16
        $region15: #{content_forward_pallas.1} parent=11 // pred_region
          _
        $region16: #{content_forward_pallas.1} parent=11 // pred_fallthru
          _
        // Predicated region
        $region17: #{content_forward_pallas.1} parent=11 // pred_check
          %p441 = pneg %p145
        $region18: #{content_forward_pallas.1} parent=11 // pred_check_branch
          %443 = sbr.rel (%p441) target = $region20
        $region19: #{content_forward_pallas.1} parent=11 // pred_region
          _
        $region20: #{content_forward_pallas.1} parent=11 // pred_fallthru
          _
        // Predicated region
        $region21: #{content_forward_pallas.1} parent=11 // pred_check
          %p444 = pneg %p166
        $region22: #{content_forward_pallas.1} parent=11 // pred_check_branch
          %446 = sbr.rel (%p444) target = $region24
        $region23: #{content_forward_pallas.1} parent=11 // pred_region
          _
        $region24: #{content_forward_pallas.1} parent=11 // pred_fallthru
          _
        // Predicated region
        $region25: #{content_forward_pallas.1} parent=11 // pred_check
          %p447 = pneg %p187
        $region26: #{content_forward_pallas.1} parent=11 // pred_check_branch
          %449 = sbr.rel (%p447) target = $region28
        $region27: #{content_forward_pallas.1} parent=11 // pred_region
          _
        $region28: #{content_forward_pallas.1} parent=11 // pred_fallthru
          _
        // Predicated region
        $region29: #{content_forward_pallas.1} parent=11 // pred_check
          %p450 = pneg %p208
        $region30: #{content_forward_pallas.1} parent=11 // pred_check_branch
          %452 = sbr.rel (%p450) target = $region32
        $region31: #{content_forward_pallas.1} parent=11 // pred_region
          _
        $region32: #{content_forward_pallas.1} parent=11 // pred_fallthru
          _
        // Predicated region
        $region33: #{content_forward_pallas.1} parent=11 // pred_check
          %p453 = pneg %p229
        $region34: #{content_forward_pallas.1} parent=11 // pred_check_branch
          %455 = sbr.rel (%p453) target = $region36
        $region35: #{content_forward_pallas.1} parent=11 // pred_region
          _
        $region36: #{content_forward_pallas.1} parent=11 // pred_fallthru
          _
        // Predicated region
        $region37: #{content_forward_pallas.1} parent=11 // pred_check
          %p456 = pneg %p250
        $region38: #{content_forward_pallas.1} parent=11 // pred_check_branch
          %458 = sbr.rel (%p456) target = $region40
        $region39: #{content_forward_pallas.1} parent=11 // pred_region
          _
        $region40: #{content_forward_pallas.1} parent=11 // pred_fallthru
          _
        // Predicated region
        $region41: #{content_forward_pallas.1} parent=11 // pred_check
          %p459 = pneg %p271
        $region42: #{content_forward_pallas.1} parent=11 // pred_check_branch
          %461 = sbr.rel (%p459) target = $region44
        $region43: #{content_forward_pallas.1} parent=11 // pred_region
          _
        $region44: #{content_forward_pallas.1} parent=11 // pred_fallthru
          _
        // Predicated region
        $region45: #{content_forward_pallas.1} parent=11 // pred_check
          %p462 = pneg %p292
        $region46: #{content_forward_pallas.1} parent=11 // pred_check_branch
          %464 = sbr.rel (%p462) target = $region48
        $region47: #{content_forward_pallas.1} parent=11 // pred_region
          _
        $region48: #{content_forward_pallas.1} parent=11 // pred_fallthru
          _
        // Predicated region
        $region49: #{content_forward_pallas.1} parent=11 // pred_check
          %p465 = pneg %p313
        $region50: #{content_forward_pallas.1} parent=11 // pred_check_branch
          %467 = sbr.rel (%p465) target = $region52
        $region51: #{content_forward_pallas.1} parent=11 // pred_region
          _
        $region52: #{content_forward_pallas.1} parent=11 // pred_fallthru
          _
        // Predicated region
        $region53: #{content_forward_pallas.1} parent=11 // pred_check
          %p468 = pneg %p334
        $region54: #{content_forward_pallas.1} parent=11 // pred_check_branch
          %470 = sbr.rel (%p468) target = $region56
        $region55: #{content_forward_pallas.1} parent=11 // pred_region
          _
        $region56: #{content_forward_pallas.1} parent=11 // pred_fallthru
          _
        // Predicated region
        $region57: #{content_forward_pallas.1} parent=11 // pred_check
          %p471 = pneg %p355
        $region58: #{content_forward_pallas.1} parent=11 // pred_check_branch
          %473 = sbr.rel (%p471) target = $region60
        $region59: #{content_forward_pallas.1} parent=11 // pred_region
          _
        $region60: #{content_forward_pallas.1} parent=11 // pred_fallthru
          _
        // Predicated region
        $region61: #{content_forward_pallas.1} parent=11 // pred_check
          %p474 = pneg %p376
        $region62: #{content_forward_pallas.1} parent=11 // pred_check_branch
          %476 = sbr.rel (%p474) target = $region64
        $region63: #{content_forward_pallas.1} parent=11 // pred_region
          _
        $region64: #{content_forward_pallas.1} parent=11 // pred_fallthru
          _
        // Predicated region
        $region65: #{content_forward_pallas.1} parent=11 // pred_check
          %p477 = pneg %p397
        $region66: #{content_forward_pallas.1} parent=11 // pred_check_branch
          %479 = sbr.rel (%p477) target = $region68
        $region67: #{content_forward_pallas.1} parent=11 // pred_region
          _
        $region68: #{content_forward_pallas.1} parent=11 // pred_fallthru
          _
      $region12: #{content_forward_pallas.1} parent=5 // pred_fallthru
        _
      %p480 = scmp.lt.s32.totalorder %s25, 2
      // Predicated region
      $region69: #{content_forward_pallas.1} parent=5 // pred_check
        %p481 = pneg %p480
      $region70: #{content_forward_pallas.1} parent=5 // pred_check_branch
        %483 = sbr.rel (%p481) target = $region72
      $region71: #{content_forward_pallas.1} parent=5 // pred_region
        // Predicated region
        $region73: #{content_forward_pallas.1} parent=71 // pred_check
          %p484 = pneg %p45
        $region74: #{content_forward_pallas.1} parent=71 // pred_check_branch
          %486 = sbr.rel (%p484) target = $region76
        $region75: #{content_forward_pallas.1} parent=71 // pred_region
          %s487 = sand.u32 %s35, 1
          %s488 = sand.u32 %s35, 1
          %s489 = smul.addr %s488, 64
          %s490 = scalar_lea.vmem [#allocation4], %s489
          %s491 = smul.u32 2, %s25
          %s492 = smul.addr %s491, 4
          %s493 = scalar_lea.vmem %s0, %s492
          // Predicated region
          $region77: #{content_forward_pallas.1} parent=75 // pred_check
            _
          $region78: #{content_forward_pallas.1} parent=75 // pred_check_branch
            %495 = sbr.rel (0) target = $region80
          $region79: #{content_forward_pallas.1} parent=75 // pred_region
            // Predicated region
            $region81: #{content_forward_pallas.1} parent=79 // pred_check
              _
            $region82: #{content_forward_pallas.1} parent=79 // pred_check_branch
              %497 = sbr.rel target = $region84
            $region83: #{content_forward_pallas.1} parent=79 // pred_region
              // Predicated region
              $region96: #{content_forward_pallas.1} parent=83 // pred_check
                _
              $region97: #{content_forward_pallas.1} parent=83 // pred_check_branch
                %543 = sbr.rel (0) target = $region99
              $region98: #{content_forward_pallas.1} parent=83 // pred_region
                loop: start=0, step=1, limit=1
                $region100: #{content_forward_pallas.1} parent=98 // loop_pre_header
                  _
                $region101: #{content_forward_pallas.1} parent=98 // loop_header
                  %s545 = sphi 0, %s549
                  %p546 = scmp.ge.s32.totalorder %s545, 1
                  %s550 = sphi %s493, %s493
                  %s551 = sphi %s490, %s490
                $region102: #{content_forward_pallas.1} parent=98 // loop_header_branch
                  %548 = sbr.rel (%p546) target = $region106
                $region103: #{content_forward_pallas.1} parent=98 // loop_body
                  _
                $region104: #{content_forward_pallas.1} parent=98 // loop_footer
                  %s549 = sadd.s32 1, %s545
                $region105: #{content_forward_pallas.1} parent=98 // loop_footer_branch
                  %544 = sbr.rel target = $region101
                $region106: #{content_forward_pallas.1} parent=98 // loop_exit
                  _
                %s553 = ssub.s32 16, 1
                loop: start=0, step=1, limit=1
                $region107: #{content_forward_pallas.1} parent=98 // loop_pre_header
                  _
                $region108: #{content_forward_pallas.1} parent=98 // loop_header
                  %s555 = sphi 0, %s559
                  %p556 = scmp.ge.s32.totalorder %s555, 1
                  %s560 = sphi %s493, %s493
                  %s561 = sphi %s490, %s490
                $region109: #{content_forward_pallas.1} parent=98 // loop_header_branch
                  %558 = sbr.rel (%p556) target = $region113
                $region110: #{content_forward_pallas.1} parent=98 // loop_body
                  %v562 = vld [vmem:[%s560] sm:%s553]
                  %563 = vst [vmem:[%s561] sm:%s553] %v562
                  %v564 = vld [vmem:[%s560 + $0x4] sm:%s553]
                  %565 = vst [vmem:[%s561 + $0x4] sm:%s553] %v564
                  %v566 = vld [vmem:[%s560 + $0x10] sm:%s553]
                  %567 = vst [vmem:[%s561 + $0x8] sm:%s553] %v566
                  %v568 = vld [vmem:[%s560 + $0x14] sm:%s553]
                  %569 = vst [vmem:[%s561 + $0xc] sm:%s553] %v568
                  %v570 = vld [vmem:[%s560 + $0x20] sm:%s553]
                  %571 = vst [vmem:[%s561 + $0x10] sm:%s553] %v570
                  %v572 = vld [vmem:[%s560 + $0x24] sm:%s553]
                  %573 = vst [vmem:[%s561 + $0x14] sm:%s553] %v572
                  %v574 = vld [vmem:[%s560 + $0x30] sm:%s553]
                  %575 = vst [vmem:[%s561 + $0x18] sm:%s553] %v574
                  %v576 = vld [vmem:[%s560 + $0x34] sm:%s553]
                  %577 = vst [vmem:[%s561 + $0x1c] sm:%s553] %v576
                  %v578 = vld [vmem:[%s560 + $0x40] sm:%s553]
                  %579 = vst [vmem:[%s561 + $0x20] sm:%s553] %v578
                  %v580 = vld [vmem:[%s560 + $0x44] sm:%s553]
                  %581 = vst [vmem:[%s561 + $0x24] sm:%s553] %v580
                  %v582 = vld [vmem:[%s560 + $0x50] sm:%s553]
                  %583 = vst [vmem:[%s561 + $0x28] sm:%s553] %v582
                  %v584 = vld [vmem:[%s560 + $0x54] sm:%s553]
                  %585 = vst [vmem:[%s561 + $0x2c] sm:%s553] %v584
                  %v586 = vld [vmem:[%s560 + $0x60] sm:%s553]
                  %587 = vst [vmem:[%s561 + $0x30] sm:%s553] %v586
                  %v588 = vld [vmem:[%s560 + $0x64] sm:%s553]
                  %589 = vst [vmem:[%s561 + $0x34] sm:%s553] %v588
                  %v590 = vld [vmem:[%s560 + $0x70] sm:%s553]
                  %591 = vst [vmem:[%s561 + $0x38] sm:%s553] %v590
                  %v592 = vld [vmem:[%s560 + $0x74] sm:%s553]
                  %593 = vst [vmem:[%s561 + $0x3c] sm:%s553] %v592
                $region111: #{content_forward_pallas.1} parent=98 // loop_footer
                  %s559 = sadd.s32 1, %s555
                $region112: #{content_forward_pallas.1} parent=98 // loop_footer_branch
                  %554 = sbr.rel target = $region108
                $region113: #{content_forward_pallas.1} parent=98 // loop_exit
                  _
              $region99: #{content_forward_pallas.1} parent=83 // pred_fallthru
                _
            $region84: #{content_forward_pallas.1} parent=79 // pred_fallthru
              _
            // Predicated region
            $region85: #{content_forward_pallas.1} parent=79 // pred_check
              _
            $region86: #{content_forward_pallas.1} parent=79 // pred_check_branch
              %499 = sbr.rel (0) target = $region88
            $region87: #{content_forward_pallas.1} parent=79 // pred_region
              %s501 = ssub.s32 16, 1
              loop: start=0, step=1, limit=1
              $region89: #{content_forward_pallas.1} parent=87 // loop_pre_header
                _
              $region90: #{content_forward_pallas.1} parent=87 // loop_header
                %s503 = sphi 0, %s507
                %p504 = scmp.ge.s32.totalorder %s503, 1
                %s508 = sphi %s493, %s493
                %s509 = sphi %s490, %s490
              $region91: #{content_forward_pallas.1} parent=87 // loop_header_branch
                %506 = sbr.rel (%p504) target = $region95
              $region92: #{content_forward_pallas.1} parent=87 // loop_body
                %v510 = vld [vmem:[%s508] sm:%s501]
                %511 = vst [vmem:[%s509] sm:%s501] %v510
                %v512 = vld [vmem:[%s508 + $0x4] sm:%s501]
                %513 = vst [vmem:[%s509 + $0x4] sm:%s501] %v512
                %v514 = vld [vmem:[%s508 + $0x10] sm:%s501]
                %515 = vst [vmem:[%s509 + $0x8] sm:%s501] %v514
                %v516 = vld [vmem:[%s508 + $0x14] sm:%s501]
                %517 = vst [vmem:[%s509 + $0xc] sm:%s501] %v516
                %v518 = vld [vmem:[%s508 + $0x20] sm:%s501]
                %519 = vst [vmem:[%s509 + $0x10] sm:%s501] %v518
                %v520 = vld [vmem:[%s508 + $0x24] sm:%s501]
                %521 = vst [vmem:[%s509 + $0x14] sm:%s501] %v520
                %v522 = vld [vmem:[%s508 + $0x30] sm:%s501]
                %523 = vst [vmem:[%s509 + $0x18] sm:%s501] %v522
                %v524 = vld [vmem:[%s508 + $0x34] sm:%s501]
                %525 = vst [vmem:[%s509 + $0x1c] sm:%s501] %v524
                %v526 = vld [vmem:[%s508 + $0x40] sm:%s501]
                %527 = vst [vmem:[%s509 + $0x20] sm:%s501] %v526
                %v528 = vld [vmem:[%s508 + $0x44] sm:%s501]
                %529 = vst [vmem:[%s509 + $0x24] sm:%s501] %v528
                %v530 = vld [vmem:[%s508 + $0x50] sm:%s501]
                %531 = vst [vmem:[%s509 + $0x28] sm:%s501] %v530
                %v532 = vld [vmem:[%s508 + $0x54] sm:%s501]
                %533 = vst [vmem:[%s509 + $0x2c] sm:%s501] %v532
                %v534 = vld [vmem:[%s508 + $0x60] sm:%s501]
                %535 = vst [vmem:[%s509 + $0x30] sm:%s501] %v534
                %v536 = vld [vmem:[%s508 + $0x64] sm:%s501]
                %537 = vst [vmem:[%s509 + $0x34] sm:%s501] %v536
                %v538 = vld [vmem:[%s508 + $0x70] sm:%s501]
                %539 = vst [vmem:[%s509 + $0x38] sm:%s501] %v538
                %v540 = vld [vmem:[%s508 + $0x74] sm:%s501]
                %541 = vst [vmem:[%s509 + $0x3c] sm:%s501] %v540
              $region93: #{content_forward_pallas.1} parent=87 // loop_footer
                %s507 = sadd.s32 1, %s503
              $region94: #{content_forward_pallas.1} parent=87 // loop_footer_branch
                %502 = sbr.rel target = $region90
              $region95: #{content_forward_pallas.1} parent=87 // loop_exit
                _
            $region88: #{content_forward_pallas.1} parent=79 // pred_fallthru
              _
          $region80: #{content_forward_pallas.1} parent=75 // pred_fallthru
            _
          %594 = vnop
        $region76: #{content_forward_pallas.1} parent=71 // pred_fallthru
          _
        // Predicated region
        $region114: #{content_forward_pallas.1} parent=71 // pred_check
          %p595 = pneg %p71
        $region115: #{content_forward_pallas.1} parent=71 // pred_check_branch
          %597 = sbr.rel (%p595) target = $region117
        $region116: #{content_forward_pallas.1} parent=71 // pred_region
          %s598 = sand.u32 %s61, 1
          %s599 = sand.u32 %s61, 1
          %s600 = smul.addr %s599, 128
          %s601 = scalar_lea.vmem [#allocation5], %s600
          %s602 = smul.u32 2, %s25
          %s603 = smul.addr %s602, 8
          %s604 = scalar_lea.vmem %s1, %s603
          // Predicated region
          $region118: #{content_forward_pallas.1} parent=116 // pred_check
            _
          $region119: #{content_forward_pallas.1} parent=116 // pred_check_branch
            %606 = sbr.rel (0) target = $region121
          $region120: #{content_forward_pallas.1} parent=116 // pred_region
            // Predicated region
            $region122: #{content_forward_pallas.1} parent=120 // pred_check
              _
            $region123: #{content_forward_pallas.1} parent=120 // pred_check_branch
              %608 = sbr.rel (0) target = $region125
            $region124: #{content_forward_pallas.1} parent=120 // pred_region
              // Predicated region
              $region137: #{content_forward_pallas.1} parent=124 // pred_check
                _
              $region138: #{content_forward_pallas.1} parent=124 // pred_check_branch
                %654 = sbr.rel (0) target = $region140
              $region139: #{content_forward_pallas.1} parent=124 // pred_region
                loop: start=0, step=1, limit=1
                $region141: #{content_forward_pallas.1} parent=139 // loop_pre_header
                  _
                $region142: #{content_forward_pallas.1} parent=139 // loop_header
                  %s656 = sphi 0, %s660
                  %p657 = scmp.ge.s32.totalorder %s656, 1
                  %s661 = sphi %s604, %s604
                  %s662 = sphi %s601, %s601
                $region143: #{content_forward_pallas.1} parent=139 // loop_header_branch
                  %659 = sbr.rel (%p657) target = $region147
                $region144: #{content_forward_pallas.1} parent=139 // loop_body
                  %v663 = vld [vmem:[%s661] sm:$0xff]
                  %664 = vst [vmem:[%s662] sm:$0xff] %v663
                  %v665 = vld [vmem:[%s661 + $0x8] sm:$0xff]
                  %666 = vst [vmem:[%s662 + $0x8] sm:$0xff] %v665
                  %v667 = vld [vmem:[%s661 + $0x20] sm:$0xff]
                  %668 = vst [vmem:[%s662 + $0x10] sm:$0xff] %v667
                  %v669 = vld [vmem:[%s661 + $0x28] sm:$0xff]
                  %670 = vst [vmem:[%s662 + $0x18] sm:$0xff] %v669
                  %v671 = vld [vmem:[%s661 + $0x40] sm:$0xff]
                  %672 = vst [vmem:[%s662 + $0x20] sm:$0xff] %v671
                  %v673 = vld [vmem:[%s661 + $0x48] sm:$0xff]
                  %674 = vst [vmem:[%s662 + $0x28] sm:$0xff] %v673
                  %v675 = vld [vmem:[%s661 + $0x60] sm:$0xff]
                  %676 = vst [vmem:[%s662 + $0x30] sm:$0xff] %v675
                  %v677 = vld [vmem:[%s661 + $0x68] sm:$0xff]
                  %678 = vst [vmem:[%s662 + $0x38] sm:$0xff] %v677
                  %v679 = vld [vmem:[%s661 + $0x80] sm:$0xff]
                  %680 = vst [vmem:[%s662 + $0x40] sm:$0xff] %v679
                  %v681 = vld [vmem:[%s661 + $0x88] sm:$0xff]
                  %682 = vst [vmem:[%s662 + $0x48] sm:$0xff] %v681
                  %v683 = vld [vmem:[%s661 + $0xa0] sm:$0xff]
                  %684 = vst [vmem:[%s662 + $0x50] sm:$0xff] %v683
                  %v685 = vld [vmem:[%s661 + $0xa8] sm:$0xff]
                  %686 = vst [vmem:[%s662 + $0x58] sm:$0xff] %v685
                  %v687 = vld [vmem:[%s661 + $0xc0] sm:$0xff]
                  %688 = vst [vmem:[%s662 + $0x60] sm:$0xff] %v687
                  %v689 = vld [vmem:[%s661 + $0xc8] sm:$0xff]
                  %690 = vst [vmem:[%s662 + $0x68] sm:$0xff] %v689
                  %v691 = vld [vmem:[%s661 + $0xe0] sm:$0xff]
                  %692 = vst [vmem:[%s662 + $0x70] sm:$0xff] %v691
                  %v693 = vld [vmem:[%s661 + $0xe8] sm:$0xff]
                  %694 = vst [vmem:[%s662 + $0x78] sm:$0xff] %v693
                $region145: #{content_forward_pallas.1} parent=139 // loop_footer
                  %s660 = sadd.s32 1, %s656
                $region146: #{content_forward_pallas.1} parent=139 // loop_footer_branch
                  %655 = sbr.rel target = $region142
                $region147: #{content_forward_pallas.1} parent=139 // loop_exit
                  _
              $region140: #{content_forward_pallas.1} parent=124 // pred_fallthru
                _
              // Predicated region
              $region148: #{content_forward_pallas.1} parent=124 // pred_check
                _
              $region149: #{content_forward_pallas.1} parent=124 // pred_check_branch
                %696 = sbr.rel target = $region151
              $region150: #{content_forward_pallas.1} parent=124 // pred_region
                _
              $region151: #{content_forward_pallas.1} parent=124 // pred_fallthru
                _
            $region125: #{content_forward_pallas.1} parent=120 // pred_fallthru
              _
            // Predicated region
            $region126: #{content_forward_pallas.1} parent=120 // pred_check
              _
            $region127: #{content_forward_pallas.1} parent=120 // pred_check_branch
              %610 = sbr.rel target = $region129
            $region128: #{content_forward_pallas.1} parent=120 // pred_region
              %s612 = ssub.s32 256, 1
              loop: start=0, step=1, limit=1
              $region130: #{content_forward_pallas.1} parent=128 // loop_pre_header
                _
              $region131: #{content_forward_pallas.1} parent=128 // loop_header
                %s614 = sphi 0, %s618
                %p615 = scmp.ge.s32.totalorder %s614, 1
                %s619 = sphi %s604, %s604
                %s620 = sphi %s601, %s601
              $region132: #{content_forward_pallas.1} parent=128 // loop_header_branch
                %617 = sbr.rel (%p615) target = $region136
              $region133: #{content_forward_pallas.1} parent=128 // loop_body
                %v621 = vld [vmem:[%s619] sm:%s612]
                %622 = vst [vmem:[%s620] sm:%s612] %v621
                %v623 = vld [vmem:[%s619 + $0x8] sm:%s612]
                %624 = vst [vmem:[%s620 + $0x8] sm:%s612] %v623
                %v625 = vld [vmem:[%s619 + $0x20] sm:%s612]
                %626 = vst [vmem:[%s620 + $0x10] sm:%s612] %v625
                %v627 = vld [vmem:[%s619 + $0x28] sm:%s612]
                %628 = vst [vmem:[%s620 + $0x18] sm:%s612] %v627
                %v629 = vld [vmem:[%s619 + $0x40] sm:%s612]
                %630 = vst [vmem:[%s620 + $0x20] sm:%s612] %v629
                %v631 = vld [vmem:[%s619 + $0x48] sm:%s612]
                %632 = vst [vmem:[%s620 + $0x28] sm:%s612] %v631
                %v633 = vld [vmem:[%s619 + $0x60] sm:%s612]
                %634 = vst [vmem:[%s620 + $0x30] sm:%s612] %v633
                %v635 = vld [vmem:[%s619 + $0x68] sm:%s612]
                %636 = vst [vmem:[%s620 + $0x38] sm:%s612] %v635
                %v637 = vld [vmem:[%s619 + $0x80] sm:%s612]
                %638 = vst [vmem:[%s620 + $0x40] sm:%s612] %v637
                %v639 = vld [vmem:[%s619 + $0x88] sm:%s612]
                %640 = vst [vmem:[%s620 + $0x48] sm:%s612] %v639
                %v641 = vld [vmem:[%s619 + $0xa0] sm:%s612]
                %642 = vst [vmem:[%s620 + $0x50] sm:%s612] %v641
                %v643 = vld [vmem:[%s619 + $0xa8] sm:%s612]
                %644 = vst [vmem:[%s620 + $0x58] sm:%s612] %v643
                %v645 = vld [vmem:[%s619 + $0xc0] sm:%s612]
                %646 = vst [vmem:[%s620 + $0x60] sm:%s612] %v645
                %v647 = vld [vmem:[%s619 + $0xc8] sm:%s612]
                %648 = vst [vmem:[%s620 + $0x68] sm:%s612] %v647
                %v649 = vld [vmem:[%s619 + $0xe0] sm:%s612]
                %650 = vst [vmem:[%s620 + $0x70] sm:%s612] %v649
                %v651 = vld [vmem:[%s619 + $0xe8] sm:%s612]
                %652 = vst [vmem:[%s620 + $0x78] sm:%s612] %v651
              $region134: #{content_forward_pallas.1} parent=128 // loop_footer
                %s618 = sadd.s32 1, %s614
              $region135: #{content_forward_pallas.1} parent=128 // loop_footer_branch
                %613 = sbr.rel target = $region131
              $region136: #{content_forward_pallas.1} parent=128 // loop_exit
                _
            $region129: #{content_forward_pallas.1} parent=120 // pred_fallthru
              _
          $region121: #{content_forward_pallas.1} parent=116 // pred_fallthru
            _
          %697 = vnop
        $region117: #{content_forward_pallas.1} parent=71 // pred_fallthru
          _
        // Predicated region
        $region152: #{content_forward_pallas.1} parent=71 // pred_check
          %p698 = pneg %p97
        $region153: #{content_forward_pallas.1} parent=71 // pred_check_branch
          %700 = sbr.rel (%p698) target = $region155
        $region154: #{content_forward_pallas.1} parent=71 // pred_region
          %s701 = smul.u32 2, %s25
          %p702 = scmp.lt.s32.totalorder %s701, 3
          %s703 = scalar_select %p702, %s701, 3
          %s704 = smul.addr %s703, 8
          %s705 = scalar_lea.vmem %s2, %s704
          %s706 = smul.u32 2, %s25
        $region155: #{content_forward_pallas.1} parent=71 // pred_fallthru
          _
      $region72: #{content_forward_pallas.1} parent=5 // pred_fallthru
        _
      %p707 = scmp.le.s32.totalorder 1, %s25
      %p708 = scmp.lt.s32.totalorder %s25, 3
      %p709 = pnand %p707, %p708
      %p710 = pneg %p709
      // Predicated region
      $region156: #{content_forward_pallas.1} parent=5 // pred_check
        _
      $region157: #{content_forward_pallas.1} parent=5 // pred_check_branch
        %712 = sbr.rel (%p709) target = $region159
      $region158: #{content_forward_pallas.1} parent=5 // pred_region
        %s713 = ssub.s32 %s25, 1
        %s714 = sand.u32 %s38, 1
        %s715 = sand.u32 %s38, 1
        %s716 = smul.addr %s715, 64
        %s717 = scalar_lea.vmem [#allocation4], %s716
        // Predicated region
        $region160: #{content_forward_pallas.1} parent=158 // pred_check
          %p718 = pneg %p51
        $region161: #{content_forward_pallas.1} parent=158 // pred_check_branch
          %720 = sbr.rel (%p718) target = $region163
        $region162: #{content_forward_pallas.1} parent=158 // pred_region
          _
        $region163: #{content_forward_pallas.1} parent=158 // pred_fallthru
          _
        %s721 = sand.u32 %s64, 1
        %s722 = sand.u32 %s64, 1
        %s723 = smul.addr %s722, 128
        %s724 = scalar_lea.vmem [#allocation5], %s723
        // Predicated region
        $region164: #{content_forward_pallas.1} parent=158 // pred_check
          %p725 = pneg %p77
        $region165: #{content_forward_pallas.1} parent=158 // pred_check_branch
          %727 = sbr.rel (%p725) target = $region167
        $region166: #{content_forward_pallas.1} parent=158 // pred_region
          _
        $region167: #{content_forward_pallas.1} parent=158 // pred_fallthru
          _
        %s728 = sand.u32 %s38, 1
        %s729 = sand.u32 %s38, 1
        %s730 = smul.addr %s729, 64
        %s731 = scalar_lea.vmem [#allocation4], %s730
        %p732 = pneg %p51
        %p733 = pneg %p48
        %s734 = sand.u32 %s64, 1
        %s735 = sand.u32 %s64, 1
        %s736 = smul.addr %s735, 128
        %s737 = scalar_lea.vmem [#allocation5], %s736
        %p738 = pneg %p77
        %p739 = pneg %p74
        %s740 = smul.u32 2, %s30
        %p741 = scmp.lt.s32.totalorder %s740, 3
        %s742 = scalar_select %p741, %s740, 3
        %s743 = smul.addr %s742, 8
        %s744 = scalar_lea.vmem %s2, %s743
        %p745 = pneg %p103
        %p746 = pneg %p100
        %p747 = pneg %p124
        %p748 = pneg %p121
        %p749 = pneg %p145
        %p750 = pneg %p142
        %p751 = pneg %p166
        %p752 = pneg %p163
        %p753 = pneg %p187
        %p754 = pneg %p184
        %p755 = pneg %p208
        %p756 = pneg %p205
        %p757 = pneg %p229
        %p758 = pneg %p226
        %p759 = pneg %p250
        %p760 = pneg %p247
        %p761 = pneg %p271
        %p762 = pneg %p268
        %p763 = pneg %p292
        %p764 = pneg %p289
        %p765 = pneg %p313
        %p766 = pneg %p310
        %p767 = pneg %p334
        %p768 = pneg %p331
        %p769 = pneg %p355
        %p770 = pneg %p352
        %p771 = pneg %p376
        %p772 = pneg %p373
        %p773 = pneg %p397
        %p774 = pneg %p394
        %p775 = pneg %p423
        %p776 = pneg %p420
        %s777 = smul.u32 2, %s30
        %p778 = scmp.lt.s32.totalorder %s777, 3
        %s779 = scalar_select %p778, %s777, 3
        %s780 = smul.addr %s779, 8
        %s781 = scalar_lea.vmem %s17, %s780
        %s782 = smul.u32 2, %s30
        %s783 = smul.u32 2, %s30
        %s784 = smul.u32 2, %s30
        %p785 = scmp.lt.s32.totalorder %s784, 3
        %s786 = scalar_select %p785, %s784, 3
        %s787 = smul.addr %s786, 8
        %s788 = scalar_lea.vmem %s2, %s787
        %s789 = smul.u32 2, %s30
        %s790 = smul.u32 2, %s30
        %p791 = scmp.lt.s32.totalorder %s790, 3
        %s792 = scalar_select %p791, %s790, 3
        %s793 = smul.addr %s792, 8
        %s794 = scalar_lea.vmem %s17, %s793
        %s795 = smul.u32 2, %s30
        %v797 = vld [vmem:[%s717] sm:$0xf]
        %v798 = vld [vmem:[%s717 + $0x4] sm:$0xf]
        %v799 = vld [vmem:[%s717 + $0x8] sm:$0xf]
        %v800 = vld [vmem:[%s717 + $0xc] sm:$0xf]
        %v801 = vld [vmem:[%s717 + $0x10] sm:$0xf]
        %v802 = vld [vmem:[%s717 + $0x14] sm:$0xf]
        %v803 = vld [vmem:[%s717 + $0x18] sm:$0xf]
        %v804 = vld [vmem:[%s717 + $0x1c] sm:$0xf]
        %v805 = vld [vmem:[%s717 + $0x20] sm:$0xf]
        %v806 = vld [vmem:[%s717 + $0x24] sm:$0xf]
        %v807 = vld [vmem:[%s717 + $0x28] sm:$0xf]
        %v808 = vld [vmem:[%s717 + $0x2c] sm:$0xf]
        %v809 = vld [vmem:[%s717 + $0x30] sm:$0xf]
        %v810 = vld [vmem:[%s717 + $0x34] sm:$0xf]
        %v811 = vld [vmem:[%s717 + $0x38] sm:$0xf]
        %v812 = vld [vmem:[%s717 + $0x3c] sm:$0xf]
        %v813 = vld [vmem:[%s3] sm:$0xf]
        %v814 = vld [vmem:[%s3 + $0x4] sm:$0xf]
        %v815 = vld [vmem:[%s4] sm:$0x1]
        %v817 = vlaneseq
        %v818 = vshrl.u32 %v817, 7
        %v819 = vsub.s32 0, %v818
        %v820 = vrot.slane %v815, %v819
        %v838 = vunpack.c.l.b16 %v797
        %v839 = vunpack.c.l.b16 %v798
        %v840 = vunpack.c.l.b16 %v799
        %v841 = vunpack.c.l.b16 %v800
        %v842 = vunpack.c.l.b16 %v801
        %v843 = vunpack.c.l.b16 %v802
        %v844 = vunpack.c.l.b16 %v803
        %v845 = vunpack.c.l.b16 %v804
        %v846 = vunpack.c.l.b16 %v805
        %v847 = vunpack.c.l.b16 %v806
        %v848 = vunpack.c.l.b16 %v807
        %v849 = vunpack.c.l.b16 %v808
        %v850 = vunpack.c.l.b16 %v809
        %v851 = vunpack.c.l.b16 %v810
        %v852 = vunpack.c.l.b16 %v811
        %v853 = vunpack.c.l.b16 %v812
        %v854 = vpack.c.b16 %v839, %v838
        %v855 = vpack.c.b16 %v841, %v840
        %v856 = vpack.c.b16 %v843, %v842
        %v857 = vpack.c.b16 %v845, %v844
        %v858 = vpack.c.b16 %v847, %v846
        %v859 = vpack.c.b16 %v849, %v848
        %v860 = vpack.c.b16 %v851, %v850
        %v861 = vpack.c.b16 %v853, %v852
        %v864 = vunpack.c.l.b16 %v813
        %v865 = vunpack.c.l.b16 %v814
        %v866 = vpack.c.b16 %v865, %v864
        %vm868 = vcmask 130048
        %v870 = vsel %vm868, %v854, 0
        %v873 = vsel %vm868, %v855, 0
        %v876 = vsel %vm868, %v856, 0
        %v879 = vsel %vm868, %v857, 0
        %v882 = vsel %vm868, %v858, 0
        %v885 = vsel %vm868, %v859, 0
        %v888 = vsel %vm868, %v860, 0
        %v891 = vsel %vm868, %v861, 0
        %893 = vmatprep.subr.bf16.mxu0 0
        %894 = vmatpush1.bf16.msra.mxu0 0
        %895 = vmatprep.subr.bf16.mxu0 0
        %896 = vmatpush1.bf16.msra.mxu0 0
        %897 = vmatprep.subr.bf16.mxu0 0
        %898 = vmatpush1.bf16.msra.mxu0 0
        %899 = vmatprep.subr.bf16.mxu0 0
        %900 = vmatpush1.bf16.msra.mxu0 0
        %901 = vmatprep.subr.bf16.mxu0 0
        %902 = vmatpush1.bf16.msra.mxu0 0
        %903 = vmatprep.subr.bf16.mxu0 0
        %904 = vmatpush1.bf16.msra.mxu0 0
        %905 = vmatprep.subr.bf16.mxu0 0
        %906 = vmatpush1.bf16.msra.mxu0 0
        %907 = vmatprep.subr.bf16.mxu0 0
        %908 = vmatpush1.bf16.msra.mxu0 %v866
        %909 = vmatprep.subr.bf16.mxu0 0
        %910 = vmatpush2.bf16.msra.mxu0 0
        %911 = vmatprep.subr.bf16.mxu0 0
        %912 = vmatpush2.bf16.msra.mxu0 0
        %913 = vmatprep.subr.bf16.mxu0 0
        %914 = vmatpush2.bf16.msra.mxu0 0
        %915 = vmatprep.subr.bf16.mxu0 0
        %916 = vmatpush2.bf16.msra.mxu0 0
        %917 = vmatprep.subr.bf16.mxu0 0
        %918 = vmatpush2.bf16.msra.mxu0 0
        %919 = vmatprep.subr.bf16.mxu0 0
        %920 = vmatpush2.bf16.msra.mxu0 0
        %921 = vmatprep.subr.bf16.mxu0 0
        %922 = vmatpush2.bf16.msra.mxu0 0
        %923 = vmatprep.subr.bf16.mxu0 0
        %924 = vmatpush2.bf16.msra.mxu0 0
        %925 = vmatprep.mubr.bf16.mxu0 0
        %926 = vmatmul.mubr.bf16.gmra.mxu0 %v870
        %v927 = vpop.f32.mrf.mxu0
        %v928 = vadd.f32 %v820, %v927
        %v929 = vpop.f32.mrf.mxu0
        %v930 = vpop.f32.mrf.mxu0
        %v931 = vadd.f32 %v820, %v930
        %v932 = vpop.f32.mrf.mxu0
        %933 = vmatprep.mubr.bf16.mxu0 0
        %934 = vmatmul.mubr.bf16.gmra.mxu0 %v873
        %v935 = vpop.f32.mrf.mxu0
        %v936 = vadd.f32 %v820, %v935
        %v937 = vpop.f32.mrf.mxu0
        %v938 = vpop.f32.mrf.mxu0
        %v939 = vadd.f32 %v820, %v938
        %v940 = vpop.f32.mrf.mxu0
        %941 = vmatprep.mubr.bf16.mxu0 0
        %942 = vmatmul.mubr.bf16.gmra.mxu0 %v876
        %v943 = vpop.f32.mrf.mxu0
        %v944 = vadd.f32 %v820, %v943
        %v945 = vpop.f32.mrf.mxu0
        %v946 = vpop.f32.mrf.mxu0
        %v947 = vadd.f32 %v820, %v946
        %v948 = vpop.f32.mrf.mxu0
        %949 = vmatprep.mubr.bf16.mxu0 0
        %950 = vmatmul.mubr.bf16.gmra.mxu0 %v879
        %v951 = vpop.f32.mrf.mxu0
        %v952 = vadd.f32 %v820, %v951
        %v953 = vpop.f32.mrf.mxu0
        %v954 = vpop.f32.mrf.mxu0
        %v955 = vadd.f32 %v820, %v954
        %v956 = vpop.f32.mrf.mxu0
        %957 = vmatprep.mubr.bf16.mxu0 0
        %958 = vmatmul.mubr.bf16.gmra.mxu0 %v882
        %v959 = vpop.f32.mrf.mxu0
        %v960 = vadd.f32 %v820, %v959
        %v961 = vpop.f32.mrf.mxu0
        %v962 = vpop.f32.mrf.mxu0
        %v963 = vadd.f32 %v820, %v962
        %v964 = vpop.f32.mrf.mxu0
        %965 = vmatprep.mubr.bf16.mxu0 0
        %966 = vmatmul.mubr.bf16.gmra.mxu0 %v885
        %v967 = vpop.f32.mrf.mxu0
        %v968 = vadd.f32 %v820, %v967
        %v969 = vpop.f32.mrf.mxu0
        %v970 = vpop.f32.mrf.mxu0
        %v971 = vadd.f32 %v820, %v970
        %v972 = vpop.f32.mrf.mxu0
        %973 = vmatprep.mubr.bf16.mxu0 0
        %974 = vmatmul.mubr.bf16.gmra.mxu0 %v888
        %v975 = vpop.f32.mrf.mxu0
        %v976 = vadd.f32 %v820, %v975
        %v977 = vpop.f32.mrf.mxu0
        %v978 = vpop.f32.mrf.mxu0
        %v979 = vadd.f32 %v820, %v978
        %v980 = vpop.f32.mrf.mxu0
        %981 = vmatprep.mubr.bf16.mxu0 0
        %982 = vmatmul.mubr.bf16.gmra.mxu0 %v891
        %v983 = vpop.f32.mrf.mxu0
        %v984 = vadd.f32 %v820, %v983
        %v985 = vpop.f32.mrf.mxu0
        %v986 = vpop.f32.mrf.mxu0
        %v987 = vadd.f32 %v820, %v986
        %v988 = vpop.f32.mrf.mxu0
        %989 = vdwg.mxu0
        %v990 = vmax.f32 %v928, 0.0
        %v991 = vmax.f32 %v931, 0.0
        %v992 = vmax.f32 %v936, 0.0
        %v993 = vmax.f32 %v939, 0.0
        %v994 = vmax.f32 %v944, 0.0
        %v995 = vmax.f32 %v947, 0.0
        %v996 = vmax.f32 %v952, 0.0
        %v997 = vmax.f32 %v955, 0.0
        %v998 = vmax.f32 %v960, 0.0
        %v999 = vmax.f32 %v963, 0.0
        %v1000 = vmax.f32 %v968, 0.0
        %v1001 = vmax.f32 %v971, 0.0
        %v1002 = vmax.f32 %v976, 0.0
        %v1003 = vmax.f32 %v979, 0.0
        %v1004 = vmax.f32 %v984, 0.0
        %v1005 = vmax.f32 %v987, 0.0
        %v1006 = vpack.c.bf16 %v991, %v990
        %v1007 = vpack.c.bf16 %v993, %v992
        %v1008 = vpack.c.bf16 %v995, %v994
        %v1009 = vpack.c.bf16 %v997, %v996
        %v1010 = vpack.c.bf16 %v999, %v998
        %v1011 = vpack.c.bf16 %v1001, %v1000
        %v1012 = vpack.c.bf16 %v1003, %v1002
        %v1013 = vpack.c.bf16 %v1005, %v1004
        %v1014 = vld [vmem:[%s5] sm:$0xf]
        %v1015 = vld [vmem:[%s5 + $0x4] sm:$0xf]
        %v1016 = vld [vmem:[%s5 + $0x8] sm:$0xf]
        %v1017 = vld [vmem:[%s5 + $0xc] sm:$0xf]
        %v1018 = vld [vmem:[%s6] sm:$0x1]
        %v1020 = vlaneseq
        %v1021 = vshrl.u32 %v1020, 7
        %v1022 = vsub.s32 0, %v1021
        %v1023 = vrot.slane %v1018, %v1022
        %1033 = vrot.lane.b32.xlu0 %v1006, 96
        %v1034 = vpop.permute.xlu0 %1033
        %1035 = vrot.lane.b32.xlu0 %v1007, 96
        %v1036 = vpop.permute.xlu0 %1035
        %1037 = vrot.lane.b32.xlu0 %v1008, 96
        %v1038 = vpop.permute.xlu0 %1037
        %1039 = vrot.lane.b32.xlu0 %v1009, 96
        %v1040 = vpop.permute.xlu0 %1039
        %1041 = vrot.lane.b32.xlu0 %v1010, 96
        %v1042 = vpop.permute.xlu0 %1041
        %1043 = vrot.lane.b32.xlu0 %v1011, 96
        %v1044 = vpop.permute.xlu0 %1043
        %1045 = vrot.lane.b32.xlu0 %v1012, 96
        %v1046 = vpop.permute.xlu0 %1045
        %1047 = vrot.lane.b32.xlu0 %v1013, 96
        %v1048 = vpop.permute.xlu0 %1047
        %v1053 = vunpack.c.l.b16 %v1014
        %v1054 = vunpack.c.l.b16 %v1015
        %v1055 = vunpack.c.l.b16 %v1016
        %v1056 = vunpack.c.l.b16 %v1017
        %v1057 = vpack.c.b16 %v1054, %v1053
        %v1058 = vpack.c.b16 %v1056, %v1055
        %vm1061 = vcmask 261120
        %v1063 = vsel %vm1061, %v1034, 0
        %v1066 = vsel %vm1061, %v1036, 0
        %v1069 = vsel %vm1061, %v1038, 0
        %v1072 = vsel %vm1061, %v1040, 0
        %v1075 = vsel %vm1061, %v1042, 0
        %v1078 = vsel %vm1061, %v1044, 0
        %v1081 = vsel %vm1061, %v1046, 0
        %v1084 = vsel %vm1061, %v1048, 0
        %1086 = vmatprep.subr.bf16.mxu0 0
        %1087 = vmatpush1.bf16.msra.mxu0 0
        %1088 = vmatprep.subr.bf16.mxu0 0
        %1089 = vmatpush1.bf16.msra.mxu0 0
        %1090 = vmatprep.subr.bf16.mxu0 0
        %1091 = vmatpush1.bf16.msra.mxu0 0
        %1092 = vmatprep.subr.bf16.mxu0 0
        %1093 = vmatpush1.bf16.msra.mxu0 0
        %1094 = vmatprep.subr.bf16.mxu0 0
        %1095 = vmatpush1.bf16.msra.mxu0 0
        %1096 = vmatprep.subr.bf16.mxu0 0
        %1097 = vmatpush1.bf16.msra.mxu0 0
        %1098 = vmatprep.subr.bf16.mxu0 0
        %1099 = vmatpush1.bf16.msra.mxu0 %v1058
        %1100 = vmatprep.subr.bf16.mxu0 0
        %1101 = vmatpush1.bf16.msra.mxu0 %v1057
        %1102 = vmatprep.subr.bf16.mxu0 0
        %1103 = vmatpush2.bf16.msra.mxu0 0
        %1104 = vmatprep.subr.bf16.mxu0 0
        %1105 = vmatpush2.bf16.msra.mxu0 0
        %1106 = vmatprep.subr.bf16.mxu0 0
        %1107 = vmatpush2.bf16.msra.mxu0 0
        %1108 = vmatprep.subr.bf16.mxu0 0
        %1109 = vmatpush2.bf16.msra.mxu0 0
        %1110 = vmatprep.subr.bf16.mxu0 0
        %1111 = vmatpush2.bf16.msra.mxu0 0
        %1112 = vmatprep.subr.bf16.mxu0 0
        %1113 = vmatpush2.bf16.msra.mxu0 0
        %1114 = vmatprep.subr.bf16.mxu0 0
        %1115 = vmatpush2.bf16.msra.mxu0 0
        %1116 = vmatprep.subr.bf16.mxu0 0
        %1117 = vmatpush2.bf16.msra.mxu0 0
        %1118 = vmatprep.mubr.bf16.mxu0 0
        %1119 = vmatmul.mubr.bf16.gmra.mxu0 %v1063
        %v1120 = vpop.f32.mrf.mxu0
        %v1121 = vadd.f32 %v1023, %v1120
        %v1122 = vpop.f32.mrf.mxu0
        %v1123 = vpop.f32.mrf.mxu0
        %v1124 = vadd.f32 %v1023, %v1123
        %v1125 = vpop.f32.mrf.mxu0
        %1126 = vmatprep.mubr.bf16.mxu0 0
        %1127 = vmatmul.mubr.bf16.gmra.mxu0 %v1066
        %v1128 = vpop.f32.mrf.mxu0
        %v1129 = vadd.f32 %v1023, %v1128
        %v1130 = vpop.f32.mrf.mxu0
        %v1131 = vpop.f32.mrf.mxu0
        %v1132 = vadd.f32 %v1023, %v1131
        %v1133 = vpop.f32.mrf.mxu0
        %1134 = vmatprep.mubr.bf16.mxu0 0
        %1135 = vmatmul.mubr.bf16.gmra.mxu0 %v1069
        %v1136 = vpop.f32.mrf.mxu0
        %v1137 = vadd.f32 %v1023, %v1136
        %v1138 = vpop.f32.mrf.mxu0
        %v1139 = vpop.f32.mrf.mxu0
        %v1140 = vadd.f32 %v1023, %v1139
        %v1141 = vpop.f32.mrf.mxu0
        %1142 = vmatprep.mubr.bf16.mxu0 0
        %1143 = vmatmul.mubr.bf16.gmra.mxu0 %v1072
        %v1144 = vpop.f32.mrf.mxu0
        %v1145 = vadd.f32 %v1023, %v1144
        %v1146 = vpop.f32.mrf.mxu0
        %v1147 = vpop.f32.mrf.mxu0
        %v1148 = vadd.f32 %v1023, %v1147
        %v1149 = vpop.f32.mrf.mxu0
        %1150 = vmatprep.mubr.bf16.mxu0 0
        %1151 = vmatmul.mubr.bf16.gmra.mxu0 %v1075
        %v1152 = vpop.f32.mrf.mxu0
        %v1153 = vadd.f32 %v1023, %v1152
        %v1154 = vpop.f32.mrf.mxu0
        %v1155 = vpop.f32.mrf.mxu0
        %v1156 = vadd.f32 %v1023, %v1155
        %v1157 = vpop.f32.mrf.mxu0
        %1158 = vmatprep.mubr.bf16.mxu0 0
        %1159 = vmatmul.mubr.bf16.gmra.mxu0 %v1078
        %v1160 = vpop.f32.mrf.mxu0
        %v1161 = vadd.f32 %v1023, %v1160
        %v1162 = vpop.f32.mrf.mxu0
        %v1163 = vpop.f32.mrf.mxu0
        %v1164 = vadd.f32 %v1023, %v1163
        %v1165 = vpop.f32.mrf.mxu0
        %1166 = vmatprep.mubr.bf16.mxu0 0
        %1167 = vmatmul.mubr.bf16.gmra.mxu0 %v1081
        %v1168 = vpop.f32.mrf.mxu0
        %v1169 = vadd.f32 %v1023, %v1168
        %v1170 = vpop.f32.mrf.mxu0
        %v1171 = vpop.f32.mrf.mxu0
        %v1172 = vadd.f32 %v1023, %v1171
        %v1173 = vpop.f32.mrf.mxu0
        %1174 = vmatprep.mubr.bf16.mxu0 0
        %1175 = vmatmul.mubr.bf16.gmra.mxu0 %v1084
        %v1176 = vpop.f32.mrf.mxu0
        %v1177 = vadd.f32 %v1023, %v1176
        %v1178 = vpop.f32.mrf.mxu0
        %v1179 = vpop.f32.mrf.mxu0
        %v1180 = vadd.f32 %v1023, %v1179
        %v1181 = vpop.f32.mrf.mxu0
        %1182 = vdwg.mxu0
        %v1183 = vmax.f32 %v1121, 0.0
        %v1184 = vmax.f32 %v1124, 0.0
        %v1185 = vmax.f32 %v1129, 0.0
        %v1186 = vmax.f32 %v1132, 0.0
        %v1187 = vmax.f32 %v1137, 0.0
        %v1188 = vmax.f32 %v1140, 0.0
        %v1189 = vmax.f32 %v1145, 0.0
        %v1190 = vmax.f32 %v1148, 0.0
        %v1191 = vmax.f32 %v1153, 0.0
        %v1192 = vmax.f32 %v1156, 0.0
        %v1193 = vmax.f32 %v1161, 0.0
        %v1194 = vmax.f32 %v1164, 0.0
        %v1195 = vmax.f32 %v1169, 0.0
        %v1196 = vmax.f32 %v1172, 0.0
        %v1197 = vmax.f32 %v1177, 0.0
        %v1198 = vmax.f32 %v1180, 0.0
        %v1199 = vpack.c.bf16 %v1184, %v1183
        %v1200 = vpack.c.bf16 %v1186, %v1185
        %v1201 = vpack.c.bf16 %v1188, %v1187
        %v1202 = vpack.c.bf16 %v1190, %v1189
        %v1203 = vpack.c.bf16 %v1192, %v1191
        %v1204 = vpack.c.bf16 %v1194, %v1193
        %v1205 = vpack.c.bf16 %v1196, %v1195
        %v1206 = vpack.c.bf16 %v1198, %v1197
        %v1207 = vld [vmem:[%s7] sm:$0xf]
        %v1208 = vld [vmem:[%s7 + $0x4] sm:$0xf]
        %v1209 = vld [vmem:[%s7 + $0x8] sm:$0xf]
        %v1210 = vld [vmem:[%s7 + $0xc] sm:$0xf]
        %v1211 = vld [vmem:[%s8] sm:$0x1]
        %v1213 = vlaneseq
        %v1214 = vshrl.u32 %v1213, 7
        %v1215 = vsub.s32 0, %v1214
        %v1216 = vrot.slane %v1211, %v1215
        %v1222 = vunpack.c.l.b16 %v1207
        %v1223 = vunpack.c.l.b16 %v1208
        %v1224 = vunpack.c.l.b16 %v1209
        %v1225 = vunpack.c.l.b16 %v1210
        %v1226 = vpack.c.b16 %v1223, %v1222
        %v1227 = vpack.c.b16 %v1225, %v1224
        %v1231 = vsel %vm1061, %v1199, 0
        %v1234 = vsel %vm1061, %v1200, 0
        %v1237 = vsel %vm1061, %v1201, 0
        %v1240 = vsel %vm1061, %v1202, 0
        %v1243 = vsel %vm1061, %v1203, 0
        %v1246 = vsel %vm1061, %v1204, 0
        %v1249 = vsel %vm1061, %v1205, 0
        %v1252 = vsel %vm1061, %v1206, 0
        %1254 = vmatprep.subr.bf16.mxu0 0
        %1255 = vmatpush1.bf16.msra.mxu0 0
        %1256 = vmatprep.subr.bf16.mxu0 0
        %1257 = vmatpush1.bf16.msra.mxu0 0
        %1258 = vmatprep.subr.bf16.mxu0 0
        %1259 = vmatpush1.bf16.msra.mxu0 0
        %1260 = vmatprep.subr.bf16.mxu0 0
        %1261 = vmatpush1.bf16.msra.mxu0 0
        %1262 = vmatprep.subr.bf16.mxu0 0
        %1263 = vmatpush1.bf16.msra.mxu0 0
        %1264 = vmatprep.subr.bf16.mxu0 0
        %1265 = vmatpush1.bf16.msra.mxu0 0
        %1266 = vmatprep.subr.bf16.mxu0 0
        %1267 = vmatpush1.bf16.msra.mxu0 %v1227
        %1268 = vmatprep.subr.bf16.mxu0 0
        %1269 = vmatpush1.bf16.msra.mxu0 %v1226
        %1270 = vmatprep.subr.bf16.mxu0 0
        %1271 = vmatpush2.bf16.msra.mxu0 0
        %1272 = vmatprep.subr.bf16.mxu0 0
        %1273 = vmatpush2.bf16.msra.mxu0 0
        %1274 = vmatprep.subr.bf16.mxu0 0
        %1275 = vmatpush2.bf16.msra.mxu0 0
        %1276 = vmatprep.subr.bf16.mxu0 0
        %1277 = vmatpush2.bf16.msra.mxu0 0
        %1278 = vmatprep.subr.bf16.mxu0 0
        %1279 = vmatpush2.bf16.msra.mxu0 0
        %1280 = vmatprep.subr.bf16.mxu0 0
        %1281 = vmatpush2.bf16.msra.mxu0 0
        %1282 = vmatprep.subr.bf16.mxu0 0
        %1283 = vmatpush2.bf16.msra.mxu0 0
        %1284 = vmatprep.subr.bf16.mxu0 0
        %1285 = vmatpush2.bf16.msra.mxu0 0
        %1286 = vmatprep.mubr.bf16.mxu0 0
        %1287 = vmatmul.mubr.bf16.gmra.mxu0 %v1231
        %v1288 = vpop.f32.mrf.mxu0
        %v1289 = vadd.f32 %v1216, %v1288
        %v1290 = vpop.f32.mrf.mxu0
        %v1291 = vpop.f32.mrf.mxu0
        %v1292 = vadd.f32 %v1216, %v1291
        %v1293 = vpop.f32.mrf.mxu0
        %1294 = vmatprep.mubr.bf16.mxu0 0
        %1295 = vmatmul.mubr.bf16.gmra.mxu0 %v1234
        %v1296 = vpop.f32.mrf.mxu0
        %v1297 = vadd.f32 %v1216, %v1296
        %v1298 = vpop.f32.mrf.mxu0
        %v1299 = vpop.f32.mrf.mxu0
        %v1300 = vadd.f32 %v1216, %v1299
        %v1301 = vpop.f32.mrf.mxu0
        %1302 = vmatprep.mubr.bf16.mxu0 0
        %1303 = vmatmul.mubr.bf16.gmra.mxu0 %v1237
        %v1304 = vpop.f32.mrf.mxu0
        %v1305 = vadd.f32 %v1216, %v1304
        %v1306 = vpop.f32.mrf.mxu0
        %v1307 = vpop.f32.mrf.mxu0
        %v1308 = vadd.f32 %v1216, %v1307
        %v1309 = vpop.f32.mrf.mxu0
        %1310 = vmatprep.mubr.bf16.mxu0 0
        %1311 = vmatmul.mubr.bf16.gmra.mxu0 %v1240
        %v1312 = vpop.f32.mrf.mxu0
        %v1313 = vadd.f32 %v1216, %v1312
        %v1314 = vpop.f32.mrf.mxu0
        %v1315 = vpop.f32.mrf.mxu0
        %v1316 = vadd.f32 %v1216, %v1315
        %v1317 = vpop.f32.mrf.mxu0
        %1318 = vmatprep.mubr.bf16.mxu0 0
        %1319 = vmatmul.mubr.bf16.gmra.mxu0 %v1243
        %v1320 = vpop.f32.mrf.mxu0
        %v1321 = vadd.f32 %v1216, %v1320
        %v1322 = vpop.f32.mrf.mxu0
        %v1323 = vpop.f32.mrf.mxu0
        %v1324 = vadd.f32 %v1216, %v1323
        %v1325 = vpop.f32.mrf.mxu0
        %1326 = vmatprep.mubr.bf16.mxu0 0
        %1327 = vmatmul.mubr.bf16.gmra.mxu0 %v1246
        %v1328 = vpop.f32.mrf.mxu0
        %v1329 = vadd.f32 %v1216, %v1328
        %v1330 = vpop.f32.mrf.mxu0
        %v1331 = vpop.f32.mrf.mxu0
        %v1332 = vadd.f32 %v1216, %v1331
        %v1333 = vpop.f32.mrf.mxu0
        %1334 = vmatprep.mubr.bf16.mxu0 0
        %1335 = vmatmul.mubr.bf16.gmra.mxu0 %v1249
        %v1336 = vpop.f32.mrf.mxu0
        %v1337 = vadd.f32 %v1216, %v1336
        %v1338 = vpop.f32.mrf.mxu0
        %v1339 = vpop.f32.mrf.mxu0
        %v1340 = vadd.f32 %v1216, %v1339
        %v1341 = vpop.f32.mrf.mxu0
        %1342 = vmatprep.mubr.bf16.mxu0 0
        %1343 = vmatmul.mubr.bf16.gmra.mxu0 %v1252
        %v1344 = vpop.f32.mrf.mxu0
        %v1345 = vadd.f32 %v1216, %v1344
        %v1346 = vpop.f32.mrf.mxu0
        %v1347 = vpop.f32.mrf.mxu0
        %v1348 = vadd.f32 %v1216, %v1347
        %v1349 = vpop.f32.mrf.mxu0
        %1350 = vdwg.mxu0
        %v1351 = vld [vmem:[%s724] sm:$0xff]
        %v1352 = vld [vmem:[%s724 + $0x8] sm:$0xff]
        %v1353 = vld [vmem:[%s724 + $0x10] sm:$0xff]
        %v1354 = vld [vmem:[%s724 + $0x18] sm:$0xff]
        %v1355 = vld [vmem:[%s724 + $0x20] sm:$0xff]
        %v1356 = vld [vmem:[%s724 + $0x28] sm:$0xff]
        %v1357 = vld [vmem:[%s724 + $0x30] sm:$0xff]
        %v1358 = vld [vmem:[%s724 + $0x38] sm:$0xff]
        %v1359 = vld [vmem:[%s724 + $0x40] sm:$0xff]
        %v1360 = vld [vmem:[%s724 + $0x48] sm:$0xff]
        %v1361 = vld [vmem:[%s724 + $0x50] sm:$0xff]
        %v1362 = vld [vmem:[%s724 + $0x58] sm:$0xff]
        %v1363 = vld [vmem:[%s724 + $0x60] sm:$0xff]
        %v1364 = vld [vmem:[%s724 + $0x68] sm:$0xff]
        %v1365 = vld [vmem:[%s724 + $0x70] sm:$0xff]
        %v1366 = vld [vmem:[%s724 + $0x78] sm:$0xff]
        %1383 = vrot.lane.b32.xlu0 %v1351, 8
        %v1384 = vpop.permute.xlu0 %1383
        %1385 = vrot.lane.b32.xlu0 %v1352, 8
        %v1386 = vpop.permute.xlu0 %1385
        %1387 = vrot.lane.b32.xlu0 %v1353, 8
        %v1388 = vpop.permute.xlu0 %1387
        %1389 = vrot.lane.b32.xlu0 %v1354, 8
        %v1390 = vpop.permute.xlu0 %1389
        %1391 = vrot.lane.b32.xlu0 %v1355, 8
        %v1392 = vpop.permute.xlu0 %1391
        %1393 = vrot.lane.b32.xlu0 %v1356, 8
        %v1394 = vpop.permute.xlu0 %1393
        %1395 = vrot.lane.b32.xlu0 %v1357, 8
        %v1396 = vpop.permute.xlu0 %1395
        %1397 = vrot.lane.b32.xlu0 %v1358, 8
        %v1398 = vpop.permute.xlu0 %1397
        %1399 = vrot.lane.b32.xlu0 %v1359, 8
        %v1400 = vpop.permute.xlu0 %1399
        %1401 = vrot.lane.b32.xlu0 %v1360, 8
        %v1402 = vpop.permute.xlu0 %1401
        %1403 = vrot.lane.b32.xlu0 %v1361, 8
        %v1404 = vpop.permute.xlu0 %1403
        %1405 = vrot.lane.b32.xlu0 %v1362, 8
        %v1406 = vpop.permute.xlu0 %1405
        %1407 = vrot.lane.b32.xlu0 %v1363, 8
        %v1408 = vpop.permute.xlu0 %1407
        %1409 = vrot.lane.b32.xlu0 %v1364, 8
        %v1410 = vpop.permute.xlu0 %1409
        %1411 = vrot.lane.b32.xlu0 %v1365, 8
        %v1412 = vpop.permute.xlu0 %1411
        %1413 = vrot.lane.b32.xlu0 %v1366, 8
        %v1414 = vpop.permute.xlu0 %1413
        %v1431 = vmul.f32 %v1289, %v1384
        %v1432 = vmul.f32 %v1292, %v1386
        %v1433 = vmul.f32 %v1297, %v1388
        %v1434 = vmul.f32 %v1300, %v1390
        %v1435 = vmul.f32 %v1305, %v1392
        %v1436 = vmul.f32 %v1308, %v1394
        %v1437 = vmul.f32 %v1313, %v1396
        %v1438 = vmul.f32 %v1316, %v1398
        %v1439 = vmul.f32 %v1321, %v1400
        %v1440 = vmul.f32 %v1324, %v1402
        %v1441 = vmul.f32 %v1329, %v1404
        %v1442 = vmul.f32 %v1332, %v1406
        %v1443 = vmul.f32 %v1337, %v1408
        %v1444 = vmul.f32 %v1340, %v1410
        %v1445 = vmul.f32 %v1345, %v1412
        %v1446 = vmul.f32 %v1348, %v1414
        %1463 = vrot.lane.b32.xlu0 %v1431, 120
        %v1464 = vpop.permute.xlu0 %1463
        %1465 = vrot.lane.b32.xlu0 %v1432, 120
        %v1466 = vpop.permute.xlu0 %1465
        %1467 = vrot.lane.b32.xlu0 %v1433, 120
        %v1468 = vpop.permute.xlu0 %1467
        %1469 = vrot.lane.b32.xlu0 %v1434, 120
        %v1470 = vpop.permute.xlu0 %1469
        %1471 = vrot.lane.b32.xlu0 %v1435, 120
        %v1472 = vpop.permute.xlu0 %1471
        %1473 = vrot.lane.b32.xlu0 %v1436, 120
        %v1474 = vpop.permute.xlu0 %1473
        %1475 = vrot.lane.b32.xlu0 %v1437, 120
        %v1476 = vpop.permute.xlu0 %1475
        %1477 = vrot.lane.b32.xlu0 %v1438, 120
        %v1478 = vpop.permute.xlu0 %1477
        %1479 = vrot.lane.b32.xlu0 %v1439, 120
        %v1480 = vpop.permute.xlu0 %1479
        %1481 = vrot.lane.b32.xlu0 %v1440, 120
        %v1482 = vpop.permute.xlu0 %1481
        %1483 = vrot.lane.b32.xlu0 %v1441, 120
        %v1484 = vpop.permute.xlu0 %1483
        %1485 = vrot.lane.b32.xlu0 %v1442, 120
        %v1486 = vpop.permute.xlu0 %1485
        %1487 = vrot.lane.b32.xlu0 %v1443, 120
        %v1488 = vpop.permute.xlu0 %1487
        %1489 = vrot.lane.b32.xlu0 %v1444, 120
        %v1490 = vpop.permute.xlu0 %1489
        %1491 = vrot.lane.b32.xlu0 %v1445, 120
        %v1492 = vpop.permute.xlu0 %1491
        %1493 = vrot.lane.b32.xlu0 %v1446, 120
        %v1494 = vpop.permute.xlu0 %1493
        %v1511 = vadd.f32 %v1289, %v1464
        %v1512 = vadd.f32 %v1292, %v1466
        %v1513 = vadd.f32 %v1297, %v1468
        %v1514 = vadd.f32 %v1300, %v1470
        %v1515 = vadd.f32 %v1305, %v1472
        %v1516 = vadd.f32 %v1308, %v1474
        %v1517 = vadd.f32 %v1313, %v1476
        %v1518 = vadd.f32 %v1316, %v1478
        %v1519 = vadd.f32 %v1321, %v1480
        %v1520 = vadd.f32 %v1324, %v1482
        %v1521 = vadd.f32 %v1329, %v1484
        %v1522 = vadd.f32 %v1332, %v1486
        %v1523 = vadd.f32 %v1337, %v1488
        %v1524 = vadd.f32 %v1340, %v1490
        %v1525 = vadd.f32 %v1345, %v1492
        %v1526 = vadd.f32 %v1348, %v1494
        %1543 = vrot.lane.b32.xlu0 %v1511, 64
        %v1544 = vpop.permute.xlu0 %1543
        %1545 = vrot.lane.b32.xlu0 %v1512, 64
        %v1546 = vpop.permute.xlu0 %1545
        %1547 = vrot.lane.b32.xlu0 %v1513, 64
        %v1548 = vpop.permute.xlu0 %1547
        %1549 = vrot.lane.b32.xlu0 %v1514, 64
        %v1550 = vpop.permute.xlu0 %1549
        %1551 = vrot.lane.b32.xlu0 %v1515, 64
        %v1552 = vpop.permute.xlu0 %1551
        %1553 = vrot.lane.b32.xlu0 %v1516, 64
        %v1554 = vpop.permute.xlu0 %1553
        %1555 = vrot.lane.b32.xlu0 %v1517, 64
        %v1556 = vpop.permute.xlu0 %1555
        %1557 = vrot.lane.b32.xlu0 %v1518, 64
        %v1558 = vpop.permute.xlu0 %1557
        %1559 = vrot.lane.b32.xlu0 %v1519, 64
        %v1560 = vpop.permute.xlu0 %1559
        %1561 = vrot.lane.b32.xlu0 %v1520, 64
        %v1562 = vpop.permute.xlu0 %1561
        %1563 = vrot.lane.b32.xlu0 %v1521, 64
        %v1564 = vpop.permute.xlu0 %1563
        %1565 = vrot.lane.b32.xlu0 %v1522, 64
        %v1566 = vpop.permute.xlu0 %1565
        %1567 = vrot.lane.b32.xlu0 %v1523, 64
        %v1568 = vpop.permute.xlu0 %1567
        %1569 = vrot.lane.b32.xlu0 %v1524, 64
        %v1570 = vpop.permute.xlu0 %1569
        %1571 = vrot.lane.b32.xlu0 %v1525, 64
        %v1572 = vpop.permute.xlu0 %1571
        %1573 = vrot.lane.b32.xlu0 %v1526, 64
        %v1574 = vpop.permute.xlu0 %1573
        %v1591 = vmul.f32 %v928, %v1544
        %v1592 = vmul.f32 %v931, %v1546
        %v1593 = vmul.f32 %v936, %v1548
        %v1594 = vmul.f32 %v939, %v1550
        %v1595 = vmul.f32 %v944, %v1552
        %v1596 = vmul.f32 %v947, %v1554
        %v1597 = vmul.f32 %v952, %v1556
        %v1598 = vmul.f32 %v955, %v1558
        %v1599 = vmul.f32 %v960, %v1560
        %v1600 = vmul.f32 %v963, %v1562
        %v1601 = vmul.f32 %v968, %v1564
        %v1602 = vmul.f32 %v971, %v1566
        %v1603 = vmul.f32 %v976, %v1568
        %v1604 = vmul.f32 %v979, %v1570
        %v1605 = vmul.f32 %v984, %v1572
        %v1606 = vmul.f32 %v987, %v1574
        %1623 = vrot.lane.b32.xlu0 %v1591, 64
        %v1624 = vpop.permute.xlu0 %1623
        %1625 = vrot.lane.b32.xlu0 %v1592, 64
        %v1626 = vpop.permute.xlu0 %1625
        %1627 = vrot.lane.b32.xlu0 %v1593, 64
        %v1628 = vpop.permute.xlu0 %1627
        %1629 = vrot.lane.b32.xlu0 %v1594, 64
        %v1630 = vpop.permute.xlu0 %1629
        %1631 = vrot.lane.b32.xlu0 %v1595, 64
        %v1632 = vpop.permute.xlu0 %1631
        %1633 = vrot.lane.b32.xlu0 %v1596, 64
        %v1634 = vpop.permute.xlu0 %1633
        %1635 = vrot.lane.b32.xlu0 %v1597, 64
        %v1636 = vpop.permute.xlu0 %1635
        %1637 = vrot.lane.b32.xlu0 %v1598, 64
        %v1638 = vpop.permute.xlu0 %1637
        %1639 = vrot.lane.b32.xlu0 %v1599, 64
        %v1640 = vpop.permute.xlu0 %1639
        %1641 = vrot.lane.b32.xlu0 %v1600, 64
        %v1642 = vpop.permute.xlu0 %1641
        %1643 = vrot.lane.b32.xlu0 %v1601, 64
        %v1644 = vpop.permute.xlu0 %1643
        %1645 = vrot.lane.b32.xlu0 %v1602, 64
        %v1646 = vpop.permute.xlu0 %1645
        %1647 = vrot.lane.b32.xlu0 %v1603, 64
        %v1648 = vpop.permute.xlu0 %1647
        %1649 = vrot.lane.b32.xlu0 %v1604, 64
        %v1650 = vpop.permute.xlu0 %1649
        %1651 = vrot.lane.b32.xlu0 %v1605, 64
        %v1652 = vpop.permute.xlu0 %1651
        %1653 = vrot.lane.b32.xlu0 %v1606, 64
        %v1654 = vpop.permute.xlu0 %1653
        %vm1671 = vcmask 64512
        %v1672 = vsel %vm1671, %v1624, 0.0
        %1673 = vadd.xlane.f32.xlu0 %v1672
        %v1674 = vpop.xlane.xlu0 %1673
        %v1675 = vsel %vm1671, %v1626, 0.0
        %1676 = vadd.xlane.f32.xlu0 %v1675
        %v1677 = vpop.xlane.xlu0 %1676
        %v1678 = vsel %vm1671, %v1628, 0.0
        %1679 = vadd.xlane.f32.xlu0 %v1678
        %v1680 = vpop.xlane.xlu0 %1679
        %v1681 = vsel %vm1671, %v1630, 0.0
        %1682 = vadd.xlane.f32.xlu0 %v1681
        %v1683 = vpop.xlane.xlu0 %1682
        %v1684 = vsel %vm1671, %v1632, 0.0
        %1685 = vadd.xlane.f32.xlu0 %v1684
        %v1686 = vpop.xlane.xlu0 %1685
        %v1687 = vsel %vm1671, %v1634, 0.0
        %1688 = vadd.xlane.f32.xlu0 %v1687
        %v1689 = vpop.xlane.xlu0 %1688
        %v1690 = vsel %vm1671, %v1636, 0.0
        %1691 = vadd.xlane.f32.xlu0 %v1690
        %v1692 = vpop.xlane.xlu0 %1691
        %v1693 = vsel %vm1671, %v1638, 0.0
        %1694 = vadd.xlane.f32.xlu0 %v1693
        %v1695 = vpop.xlane.xlu0 %1694
        %v1696 = vsel %vm1671, %v1640, 0.0
        %1697 = vadd.xlane.f32.xlu0 %v1696
        %v1698 = vpop.xlane.xlu0 %1697
        %v1699 = vsel %vm1671, %v1642, 0.0
        %1700 = vadd.xlane.f32.xlu0 %v1699
        %v1701 = vpop.xlane.xlu0 %1700
        %v1702 = vsel %vm1671, %v1644, 0.0
        %1703 = vadd.xlane.f32.xlu0 %v1702
        %v1704 = vpop.xlane.xlu0 %1703
        %v1705 = vsel %vm1671, %v1646, 0.0
        %1706 = vadd.xlane.f32.xlu0 %v1705
        %v1707 = vpop.xlane.xlu0 %1706
        %v1708 = vsel %vm1671, %v1648, 0.0
        %1709 = vadd.xlane.f32.xlu0 %v1708
        %v1710 = vpop.xlane.xlu0 %1709
        %v1711 = vsel %vm1671, %v1650, 0.0
        %1712 = vadd.xlane.f32.xlu0 %v1711
        %v1713 = vpop.xlane.xlu0 %1712
        %v1714 = vsel %vm1671, %v1652, 0.0
        %1715 = vadd.xlane.f32.xlu0 %v1714
        %v1716 = vpop.xlane.xlu0 %1715
        %v1717 = vsel %vm1671, %v1654, 0.0
        %1718 = vadd.xlane.f32.xlu0 %v1717
        %v1719 = vpop.xlane.xlu0 %1718
        %v1720 = vmul.f32 %v1674, 0.125
        %v1721 = vmul.f32 %v1677, 0.125
        %v1722 = vmul.f32 %v1680, 0.125
        %v1723 = vmul.f32 %v1683, 0.125
        %v1724 = vmul.f32 %v1686, 0.125
        %v1725 = vmul.f32 %v1689, 0.125
        %v1726 = vmul.f32 %v1692, 0.125
        %v1727 = vmul.f32 %v1695, 0.125
        %v1728 = vmul.f32 %v1698, 0.125
        %v1729 = vmul.f32 %v1701, 0.125
        %v1730 = vmul.f32 %v1704, 0.125
        %v1731 = vmul.f32 %v1707, 0.125
        %v1732 = vmul.f32 %v1710, 0.125
        %v1733 = vmul.f32 %v1713, 0.125
        %v1734 = vmul.f32 %v1716, 0.125
        %v1735 = vmul.f32 %v1719, 0.125
        %v1736 = vld [vmem:[%s788] sm:$0xff]
        %v1737 = vld [vmem:[%s788 + $0x8] sm:$0xff]
        %vm1738 = vcmp.gt.s32.totalorder %v1736, 0
        %vm1739 = vcmp.gt.s32.totalorder %v1737, 0
        %vm1740 = vcmp.gt.s32.totalorder %v1736, 1
        %vm1741 = vcmp.gt.s32.totalorder %v1737, 1
        %vm1742 = vcmp.gt.s32.totalorder %v1736, 2
        %vm1743 = vcmp.gt.s32.totalorder %v1737, 2
        %vm1744 = vcmp.gt.s32.totalorder %v1736, 3
        %vm1745 = vcmp.gt.s32.totalorder %v1737, 3
        %vm1746 = vcmp.gt.s32.totalorder %v1736, 4
        %vm1747 = vcmp.gt.s32.totalorder %v1737, 4
        %vm1748 = vcmp.gt.s32.totalorder %v1736, 5
        %vm1749 = vcmp.gt.s32.totalorder %v1737, 5
        %vm1750 = vcmp.gt.s32.totalorder %v1736, 6
        %vm1751 = vcmp.gt.s32.totalorder %v1737, 6
        %vm1752 = vcmp.gt.s32.totalorder %v1736, 7
        %vm1753 = vcmp.gt.s32.totalorder %v1737, 7
        %v1754 = vsel %vm1738, 1, 0
        %v1755 = vsel %vm1739, 1, 0
        %v1756 = vsel %vm1740, 1, 0
        %v1757 = vsel %vm1741, 1, 0
        %v1758 = vsel %vm1742, 1, 0
        %v1759 = vsel %vm1743, 1, 0
        %v1760 = vsel %vm1744, 1, 0
        %v1761 = vsel %vm1745, 1, 0
        %v1762 = vsel %vm1746, 1, 0
        %v1763 = vsel %vm1747, 1, 0
        %v1764 = vsel %vm1748, 1, 0
        %v1765 = vsel %vm1749, 1, 0
        %v1766 = vsel %vm1750, 1, 0
        %v1767 = vsel %vm1751, 1, 0
        %v1768 = vsel %vm1752, 1, 0
        %v1769 = vsel %vm1753, 1, 0
        %v1770 = vcvt.s32.f32 %v1754
        %v1771 = vcvt.s32.f32 %v1755
        %v1772 = vcvt.s32.f32 %v1756
        %v1773 = vcvt.s32.f32 %v1757
        %v1774 = vcvt.s32.f32 %v1758
        %v1775 = vcvt.s32.f32 %v1759
        %v1776 = vcvt.s32.f32 %v1760
        %v1777 = vcvt.s32.f32 %v1761
        %v1778 = vcvt.s32.f32 %v1762
        %v1779 = vcvt.s32.f32 %v1763
        %v1780 = vcvt.s32.f32 %v1764
        %v1781 = vcvt.s32.f32 %v1765
        %v1782 = vcvt.s32.f32 %v1766
        %v1783 = vcvt.s32.f32 %v1767
        %v1784 = vcvt.s32.f32 %v1768
        %v1785 = vcvt.s32.f32 %v1769
        %v1786 = vmul.f32 %v1720, %v1770
        %v1787 = vmul.f32 %v1721, %v1771
        %v1788 = vmul.f32 %v1722, %v1772
        %v1789 = vmul.f32 %v1723, %v1773
        %v1790 = vmul.f32 %v1724, %v1774
        %v1791 = vmul.f32 %v1725, %v1775
        %v1792 = vmul.f32 %v1726, %v1776
        %v1793 = vmul.f32 %v1727, %v1777
        %v1794 = vmul.f32 %v1728, %v1778
        %v1795 = vmul.f32 %v1729, %v1779
        %v1796 = vmul.f32 %v1730, %v1780
        %v1797 = vmul.f32 %v1731, %v1781
        %v1798 = vmul.f32 %v1732, %v1782
        %v1799 = vmul.f32 %v1733, %v1783
        %v1800 = vmul.f32 %v1734, %v1784
        %v1801 = vmul.f32 %v1735, %v1785
        %v1802 = vld [vmem:[%s15] sm:$0xff]
        %v1804 = vcombine.high %v1802, %v1802
        %v1806 = vunpack.c.l.s4 1966171168
        %v1807 = vunpack.c.0.s8 %v1806
        %v1808 = vlaneseq
        %v1809 = vshrl.u32 %v1808, 7
        %v1810 = vsub.s32 %v1807, %v1809
        %v1811 = vrot.slane %v1802, %v1810
        %v1813 = vunpack.c.l.s4 1966171168
        %v1814 = vunpack.c.0.s8 %v1813
        %v1815 = vlaneseq
        %v1816 = vshrl.u32 %v1815, 7
        %v1817 = vsub.s32 %v1814, %v1816
        %v1818 = vrot.slane %v1804, %v1817
        %v1819 = vcombine.high %v1811, %v1811
        %v1820 = vcombine.high %v1818, %v1818
        %v1822 = vunpack.c.l.s4 1966171168
        %v1823 = vunpack.c.0.s8 %v1822
        %v1824 = vlaneseq
        %v1825 = vshrl.u32 %v1824, 7
        %v1826 = vsub.s32 %v1823, %v1825
        %v1827 = vrot.slane %v1811, %v1826
        %v1829 = vunpack.c.l.s4 1966171168
        %v1830 = vunpack.c.0.s8 %v1829
        %v1831 = vlaneseq
        %v1832 = vshrl.u32 %v1831, 7
        %v1833 = vsub.s32 %v1830, %v1832
        %v1834 = vrot.slane %v1818, %v1833
        %v1836 = vunpack.c.l.s4 1966171168
        %v1837 = vunpack.c.0.s8 %v1836
        %v1838 = vlaneseq
        %v1839 = vshrl.u32 %v1838, 7
        %v1840 = vsub.s32 %v1837, %v1839
        %v1841 = vrot.slane %v1819, %v1840
        %v1843 = vunpack.c.l.s4 1966171168
        %v1844 = vunpack.c.0.s8 %v1843
        %v1845 = vlaneseq
        %v1846 = vshrl.u32 %v1845, 7
        %v1847 = vsub.s32 %v1844, %v1846
        %v1848 = vrot.slane %v1820, %v1847
        %v1849 = vcombine.high %v1827, %v1827
        %v1850 = vcombine.high %v1834, %v1834
        %v1851 = vcombine.high %v1841, %v1841
        %v1852 = vcombine.high %v1848, %v1848
        %1854 = vset.pattern.permute.xlu0 0
        %1855 = vperm.xlu0 %1854, %v1786
        %v1856 = vpop.permute.xlu0 %1855
        %1859 = vset.pattern.permute.xlu0 0
        %1860 = vperm.xlu0 %1859, %v1787
        %v1861 = vpop.permute.xlu0 %1860
        %1864 = vset.pattern.permute.xlu0 0
        %1865 = vperm.xlu0 %1864, %v1788
        %v1866 = vpop.permute.xlu0 %1865
        %1869 = vset.pattern.permute.xlu0 0
        %1870 = vperm.xlu0 %1869, %v1789
        %v1871 = vpop.permute.xlu0 %1870
        %1874 = vset.pattern.permute.xlu0 0
        %1875 = vperm.xlu0 %1874, %v1790
        %v1876 = vpop.permute.xlu0 %1875
        %1879 = vset.pattern.permute.xlu0 0
        %1880 = vperm.xlu0 %1879, %v1791
        %v1881 = vpop.permute.xlu0 %1880
        %1884 = vset.pattern.permute.xlu0 0
        %1885 = vperm.xlu0 %1884, %v1792
        %v1886 = vpop.permute.xlu0 %1885
        %1889 = vset.pattern.permute.xlu0 0
        %1890 = vperm.xlu0 %1889, %v1793
        %v1891 = vpop.permute.xlu0 %1890
        %1894 = vset.pattern.permute.xlu0 0
        %1895 = vperm.xlu0 %1894, %v1794
        %v1896 = vpop.permute.xlu0 %1895
        %1899 = vset.pattern.permute.xlu0 0
        %1900 = vperm.xlu0 %1899, %v1795
        %v1901 = vpop.permute.xlu0 %1900
        %1904 = vset.pattern.permute.xlu0 0
        %1905 = vperm.xlu0 %1904, %v1796
        %v1906 = vpop.permute.xlu0 %1905
        %1909 = vset.pattern.permute.xlu0 0
        %1910 = vperm.xlu0 %1909, %v1797
        %v1911 = vpop.permute.xlu0 %1910
        %1914 = vset.pattern.permute.xlu0 0
        %1915 = vperm.xlu0 %1914, %v1798
        %v1916 = vpop.permute.xlu0 %1915
        %1919 = vset.pattern.permute.xlu0 0
        %1920 = vperm.xlu0 %1919, %v1799
        %v1921 = vpop.permute.xlu0 %1920
        %1924 = vset.pattern.permute.xlu0 0
        %1925 = vperm.xlu0 %1924, %v1800
        %v1926 = vpop.permute.xlu0 %1925
        %1929 = vset.pattern.permute.xlu0 0
        %1930 = vperm.xlu0 %1929, %v1801
        %v1931 = vpop.permute.xlu0 %1930
        %v1933 = vlaneseq
        %v1934 = vshrl.u32 %v1933, 7
        %v1935 = vsub.s32 0, %v1934
        %v1936 = vrot.slane %v1827, %v1935
        %v1937 = vlaneseq
        %v1938 = vshrl.u32 %v1937, 7
        %v1939 = vsub.s32 0, %v1938
        %v1940 = vrot.slane %v1841, %v1939
        %v1941 = vlaneseq
        %v1942 = vshrl.u32 %v1941, 7
        %v1943 = vsub.s32 0, %v1942
        %v1944 = vrot.slane %v1849, %v1943
        %v1945 = vlaneseq
        %v1946 = vshrl.u32 %v1945, 7
        %v1947 = vsub.s32 0, %v1946
        %v1948 = vrot.slane %v1851, %v1947
        %v1949 = vlaneseq
        %v1950 = vshrl.u32 %v1949, 7
        %v1951 = vsub.s32 0, %v1950
        %v1952 = vrot.slane %v1834, %v1951
        %v1953 = vlaneseq
        %v1954 = vshrl.u32 %v1953, 7
        %v1955 = vsub.s32 0, %v1954
        %v1956 = vrot.slane %v1848, %v1955
        %v1957 = vlaneseq
        %v1958 = vshrl.u32 %v1957, 7
        %v1959 = vsub.s32 0, %v1958
        %v1960 = vrot.slane %v1850, %v1959
        %v1961 = vlaneseq
        %v1962 = vshrl.u32 %v1961, 7
        %v1963 = vsub.s32 0, %v1962
        %v1964 = vrot.slane %v1852, %v1963
        %v1973 = vmul.f32 %v1856, %v1936
        %v1974 = vmul.f32 %v1861, %v1936
        %v1975 = vmul.f32 %v1866, %v1940
        %v1976 = vmul.f32 %v1871, %v1940
        %v1977 = vmul.f32 %v1876, %v1944
        %v1978 = vmul.f32 %v1881, %v1944
        %v1979 = vmul.f32 %v1886, %v1948
        %v1980 = vmul.f32 %v1891, %v1948
        %v1981 = vmul.f32 %v1896, %v1952
        %v1982 = vmul.f32 %v1901, %v1952
        %v1983 = vmul.f32 %v1906, %v1956
        %v1984 = vmul.f32 %v1911, %v1956
        %v1985 = vmul.f32 %v1916, %v1960
        %v1986 = vmul.f32 %v1921, %v1960
        %v1987 = vmul.f32 %v1926, %v1964
        %v1988 = vmul.f32 %v1931, %v1964
        %vm1989 = vcmask 31744
        %v1990 = vsel %vm1989, %v1973, 0.0
        %v1991 = vsel %vm1989, %v1975, 0.0
        %v1992 = vadd.f32 %v1990, %v1991
        %v1993 = vsel %vm1989, %v1977, 0.0
        %v1994 = vadd.f32 %v1992, %v1993
        %v1995 = vsel %vm1989, %v1979, 0.0
        %v1996 = vadd.f32 %v1994, %v1995
        %v1997 = vsel %vm1989, %v1981, 0.0
        %v1998 = vadd.f32 %v1996, %v1997
        %v1999 = vsel %vm1989, %v1983, 0.0
        %v2000 = vadd.f32 %v1998, %v1999
        %v2001 = vsel %vm1989, %v1985, 0.0
        %v2002 = vadd.f32 %v2000, %v2001
        %v2003 = vsel %vm1989, %v1987, 0.0
        %v2004 = vadd.f32 %v2002, %v2003
        %v2005 = vsel %vm1989, %v1974, 0.0
        %v2006 = vsel %vm1989, %v1976, 0.0
        %v2007 = vadd.f32 %v2005, %v2006
        %v2008 = vsel %vm1989, %v1978, 0.0
        %v2009 = vadd.f32 %v2007, %v2008
        %v2010 = vsel %vm1989, %v1980, 0.0
        %v2011 = vadd.f32 %v2009, %v2010
        %v2012 = vsel %vm1989, %v1982, 0.0
        %v2013 = vadd.f32 %v2011, %v2012
        %v2014 = vsel %vm1989, %v1984, 0.0
        %v2015 = vadd.f32 %v2013, %v2014
        %v2016 = vsel %vm1989, %v1986, 0.0
        %v2017 = vadd.f32 %v2015, %v2016
        %v2018 = vsel %vm1989, %v1988, 0.0
        %v2019 = vadd.f32 %v2017, %v2018
        %v2020 = vld [vmem:[%s9] sm:$0xf]
        %v2021 = vld [vmem:[%s9 + $0x4] sm:$0xf]
        %v2022 = vld [vmem:[%s9 + $0x8] sm:$0xf]
        %v2023 = vld [vmem:[%s9 + $0xc] sm:$0xf]
        %v2024 = vld [vmem:[%s11] sm:$0x1]
        %v2026 = vlaneseq
        %v2027 = vshrl.u32 %v2026, 7
        %v2028 = vsub.s32 0, %v2027
        %v2029 = vrot.slane %v2024, %v2028
        %v2035 = vunpack.c.l.b16 %v2020
        %v2036 = vunpack.c.l.b16 %v2021
        %v2037 = vunpack.c.l.b16 %v2022
        %v2038 = vunpack.c.l.b16 %v2023
        %v2039 = vpack.c.b16 %v2036, %v2035
        %v2040 = vpack.c.b16 %v2038, %v2037
        %v2044 = vsel %vm1061, %v1006, 0
        %v2047 = vsel %vm1061, %v1007, 0
        %v2050 = vsel %vm1061, %v1008, 0
        %v2053 = vsel %vm1061, %v1009, 0
        %v2056 = vsel %vm1061, %v1010, 0
        %v2059 = vsel %vm1061, %v1011, 0
        %v2062 = vsel %vm1061, %v1012, 0
        %v2065 = vsel %vm1061, %v1013, 0
        %2067 = vmatprep.subr.bf16.mxu0 0
        %2068 = vmatpush1.bf16.msra.mxu0 0
        %2069 = vmatprep.subr.bf16.mxu0 0
        %2070 = vmatpush1.bf16.msra.mxu0 0
        %2071 = vmatprep.subr.bf16.mxu0 0
        %2072 = vmatpush1.bf16.msra.mxu0 0
        %2073 = vmatprep.subr.bf16.mxu0 0
        %2074 = vmatpush1.bf16.msra.mxu0 0
        %2075 = vmatprep.subr.bf16.mxu0 0
        %2076 = vmatpush1.bf16.msra.mxu0 0
        %2077 = vmatprep.subr.bf16.mxu0 0
        %2078 = vmatpush1.bf16.msra.mxu0 0
        %2079 = vmatprep.subr.bf16.mxu0 0
        %2080 = vmatpush1.bf16.msra.mxu0 %v2040
        %2081 = vmatprep.subr.bf16.mxu0 0
        %2082 = vmatpush1.bf16.msra.mxu0 %v2039
        %2083 = vmatprep.subr.bf16.mxu0 0
        %2084 = vmatpush2.bf16.msra.mxu0 0
        %2085 = vmatprep.subr.bf16.mxu0 0
        %2086 = vmatpush2.bf16.msra.mxu0 0
        %2087 = vmatprep.subr.bf16.mxu0 0
        %2088 = vmatpush2.bf16.msra.mxu0 0
        %2089 = vmatprep.subr.bf16.mxu0 0
        %2090 = vmatpush2.bf16.msra.mxu0 0
        %2091 = vmatprep.subr.bf16.mxu0 0
        %2092 = vmatpush2.bf16.msra.mxu0 0
        %2093 = vmatprep.subr.bf16.mxu0 0
        %2094 = vmatpush2.bf16.msra.mxu0 0
        %2095 = vmatprep.subr.bf16.mxu0 0
        %2096 = vmatpush2.bf16.msra.mxu0 0
        %2097 = vmatprep.subr.bf16.mxu0 0
        %2098 = vmatpush2.bf16.msra.mxu0 0
        %2099 = vmatprep.mubr.bf16.mxu0 0
        %2100 = vmatmul.mubr.bf16.gmra.mxu0 %v2044
        %v2101 = vpop.f32.mrf.mxu0
        %v2102 = vadd.f32 %v2029, %v2101
        %v2103 = vpop.f32.mrf.mxu0
        %v2104 = vpop.f32.mrf.mxu0
        %v2105 = vadd.f32 %v2029, %v2104
        %v2106 = vpop.f32.mrf.mxu0
        %2107 = vmatprep.mubr.bf16.mxu0 0
        %2108 = vmatmul.mubr.bf16.gmra.mxu0 %v2047
        %v2109 = vpop.f32.mrf.mxu0
        %v2110 = vadd.f32 %v2029, %v2109
        %v2111 = vpop.f32.mrf.mxu0
        %v2112 = vpop.f32.mrf.mxu0
        %v2113 = vadd.f32 %v2029, %v2112
        %v2114 = vpop.f32.mrf.mxu0
        %2115 = vmatprep.mubr.bf16.mxu0 0
        %2116 = vmatmul.mubr.bf16.gmra.mxu0 %v2050
        %v2117 = vpop.f32.mrf.mxu0
        %v2118 = vadd.f32 %v2029, %v2117
        %v2119 = vpop.f32.mrf.mxu0
        %v2120 = vpop.f32.mrf.mxu0
        %v2121 = vadd.f32 %v2029, %v2120
        %v2122 = vpop.f32.mrf.mxu0
        %2123 = vmatprep.mubr.bf16.mxu0 0
        %2124 = vmatmul.mubr.bf16.gmra.mxu0 %v2053
        %v2125 = vpop.f32.mrf.mxu0
        %v2126 = vadd.f32 %v2029, %v2125
        %v2127 = vpop.f32.mrf.mxu0
        %v2128 = vpop.f32.mrf.mxu0
        %v2129 = vadd.f32 %v2029, %v2128
        %v2130 = vpop.f32.mrf.mxu0
        %2131 = vmatprep.mubr.bf16.mxu0 0
        %2132 = vmatmul.mubr.bf16.gmra.mxu0 %v2056
        %v2133 = vpop.f32.mrf.mxu0
        %v2134 = vadd.f32 %v2029, %v2133
        %v2135 = vpop.f32.mrf.mxu0
        %v2136 = vpop.f32.mrf.mxu0
        %v2137 = vadd.f32 %v2029, %v2136
        %v2138 = vpop.f32.mrf.mxu0
        %2139 = vmatprep.mubr.bf16.mxu0 0
        %2140 = vmatmul.mubr.bf16.gmra.mxu0 %v2059
        %v2141 = vpop.f32.mrf.mxu0
        %v2142 = vadd.f32 %v2029, %v2141
        %v2143 = vpop.f32.mrf.mxu0
        %v2144 = vpop.f32.mrf.mxu0
        %v2145 = vadd.f32 %v2029, %v2144
        %v2146 = vpop.f32.mrf.mxu0
        %2147 = vmatprep.mubr.bf16.mxu0 0
        %2148 = vmatmul.mubr.bf16.gmra.mxu0 %v2062
        %v2149 = vpop.f32.mrf.mxu0
        %v2150 = vadd.f32 %v2029, %v2149
        %v2151 = vpop.f32.mrf.mxu0
        %v2152 = vpop.f32.mrf.mxu0
        %v2153 = vadd.f32 %v2029, %v2152
        %v2154 = vpop.f32.mrf.mxu0
        %2155 = vmatprep.mubr.bf16.mxu0 0
        %2156 = vmatmul.mubr.bf16.gmra.mxu0 %v2065
        %v2157 = vpop.f32.mrf.mxu0
        %v2158 = vadd.f32 %v2029, %v2157
        %v2159 = vpop.f32.mrf.mxu0
        %v2160 = vpop.f32.mrf.mxu0
        %v2161 = vadd.f32 %v2029, %v2160
        %v2162 = vpop.f32.mrf.mxu0
        %2163 = vdwg.mxu0
        %vm2164 = vcmask 785408
        %2165 = vst.msk [vmem:[#allocation2] sm:$0xff] %vm2164, %v2102
        %2166 = vst.msk [vmem:[#allocation2 + $0x8] sm:$0xff] %vm2164, %v2105
        %2167 = vst.msk [vmem:[#allocation2 + $0x10] sm:$0xff] %vm2164, %v2110
        %2168 = vst.msk [vmem:[#allocation2 + $0x18] sm:$0xff] %vm2164, %v2113
        %2169 = vst.msk [vmem:[#allocation2 + $0x20] sm:$0xff] %vm2164, %v2118
        %2170 = vst.msk [vmem:[#allocation2 + $0x28] sm:$0xff] %vm2164, %v2121
        %2171 = vst.msk [vmem:[#allocation2 + $0x30] sm:$0xff] %vm2164, %v2126
        %2172 = vst.msk [vmem:[#allocation2 + $0x38] sm:$0xff] %vm2164, %v2129
        %2173 = vst.msk [vmem:[#allocation2 + $0x40] sm:$0xff] %vm2164, %v2134
        %2174 = vst.msk [vmem:[#allocation2 + $0x48] sm:$0xff] %vm2164, %v2137
        %2175 = vst.msk [vmem:[#allocation2 + $0x50] sm:$0xff] %vm2164, %v2142
        %2176 = vst.msk [vmem:[#allocation2 + $0x58] sm:$0xff] %vm2164, %v2145
        %2177 = vst.msk [vmem:[#allocation2 + $0x60] sm:$0xff] %vm2164, %v2150
        %2178 = vst.msk [vmem:[#allocation2 + $0x68] sm:$0xff] %vm2164, %v2153
        %2179 = vst.msk [vmem:[#allocation2 + $0x70] sm:$0xff] %vm2164, %v2158
        %2180 = vst.msk [vmem:[#allocation2 + $0x78] sm:$0xff] %vm2164, %v2161
        %v2181 = vld [vmem:[%s10] sm:$0xff]
        %v2182 = vld [vmem:[%s10 + $0x8] sm:$0xff]
        %v2183 = vld [vmem:[%s10 + $0x10] sm:$0xff]
        %v2184 = vld [vmem:[%s10 + $0x18] sm:$0xff]
        %v2185 = vld [vmem:[%s12] sm:$0x1]
        %v2186 = vld [vmem:[%s788] sm:$0xff]
        %v2187 = vld [vmem:[%s788 + $0x8] sm:$0xff]
        %v2188 = vsub.s32 %v2186, 1
        %v2189 = vsub.s32 %v2187, 1
        %v2190 = vld [vmem:[#allocation2] sm:$0xff]
        %v2191 = vld [vmem:[#allocation2 + $0x8] sm:$0xff]
        %v2193 = vlaneseq
        %v2194 = vshrl.u32 %v2193, 7
        %v2195 = vsub.s32 0, %v2194
        %v2196 = vrot.slane %v2185, %v2195
        %v2199 = vsel %vm1061, 0.0, 0
        %2201 = vmatprep.subr.mxu0 0.0
        %2202 = vmatpush1.msra.mxu0 0.0
        %2203 = vmatprep.subr.mxu0 0.0
        %2204 = vmatpush1.msra.mxu0 0.0
        %2205 = vmatprep.subr.mxu0 0.0
        %2206 = vmatpush1.msra.mxu0 0.0
        %2207 = vmatprep.subr.mxu0 0.0
        %2208 = vmatpush1.msra.mxu0 0.0
        %2209 = vmatprep.subr.mxu0 0.0
        %2210 = vmatpush1.msra.mxu0 0.0
        %2211 = vmatprep.subr.mxu0 0.0
        %2212 = vmatpush1.msra.mxu0 0.0
        %2213 = vmatprep.subr.mxu0 0.0
        %2214 = vmatpush1.msra.mxu0 0.0
        %2215 = vmatprep.subr.mxu0 0.0
        %2216 = vmatpush1.msra.mxu0 0.0
        %2217 = vmatprep.subr.mxu0 0.0
        %2218 = vmatpush1.msra.mxu0 0.0
        %2219 = vmatprep.subr.mxu0 0.0
        %2220 = vmatpush1.msra.mxu0 0.0
        %2221 = vmatprep.subr.mxu0 0.0
        %2222 = vmatpush1.msra.mxu0 0.0
        %2223 = vmatprep.subr.mxu0 0.0
        %2224 = vmatpush1.msra.mxu0 0.0
        %2225 = vmatprep.subr.mxu0 0.0
        %2226 = vmatpush1.msra.mxu0 %v2184
        %2227 = vmatprep.subr.mxu0 0.0
        %2228 = vmatpush1.msra.mxu0 %v2183
        %2229 = vmatprep.subr.mxu0 0.0
        %2230 = vmatpush1.msra.mxu0 %v2182
        %2231 = vmatprep.subr.mxu0 0.0
        %2232 = vmatpush1.msra.mxu0 %v2181
        %2233 = vmatprep.subr.mxu0 0.0
        %2234 = vmatpush2.msra.mxu0 0.0
        %2235 = vmatprep.subr.mxu0 0.0
        %2236 = vmatpush2.msra.mxu0 0.0
        %2237 = vmatprep.subr.mxu0 0.0
        %2238 = vmatpush2.msra.mxu0 0.0
        %2239 = vmatprep.subr.mxu0 0.0
        %2240 = vmatpush2.msra.mxu0 0.0
        %2241 = vmatprep.subr.mxu0 0.0
        %2242 = vmatpush2.msra.mxu0 0.0
        %2243 = vmatprep.subr.mxu0 0.0
        %2244 = vmatpush2.msra.mxu0 0.0
        %2245 = vmatprep.subr.mxu0 0.0
        %2246 = vmatpush2.msra.mxu0 0.0
        %2247 = vmatprep.subr.mxu0 0.0
        %2248 = vmatpush2.msra.mxu0 0.0
        %2249 = vmatprep.subr.mxu0 0.0
        %2250 = vmatpush2.msra.mxu0 0.0
        %2251 = vmatprep.subr.mxu0 0.0
        %2252 = vmatpush2.msra.mxu0 0.0
        %2253 = vmatprep.subr.mxu0 0.0
        %2254 = vmatpush2.msra.mxu0 0.0
        %2255 = vmatprep.subr.mxu0 0.0
        %2256 = vmatpush2.msra.mxu0 0.0
        %2257 = vmatprep.subr.mxu0 0.0
        %2258 = vmatpush2.msra.mxu0 0.0
        %2259 = vmatprep.subr.mxu0 0.0
        %2260 = vmatpush2.msra.mxu0 0.0
        %2261 = vmatprep.subr.mxu0 0.0
        %2262 = vmatpush2.msra.mxu0 0.0
        %2263 = vmatprep.subr.mxu0 0.0
        %2264 = vmatpush2.msra.mxu0 0.0
        %2265 = vmatprep.mubr.f32.mxu0 0.0
        %2266 = vmatmul.mubr.f32.gmra.mxu0 %v2199
        %v2267 = vpop.f32.mrf.mxu0
        %v2268 = vadd.f32 %v2196, %v2267
        %v2269 = vpop.f32.mrf.mxu0
        %2270 = vmatprep.mubr.f32.mxu0 0.0
        %2271 = vmatmul.mubr.f32.gmra.mxu0 %v2199
        %v2272 = vpop.f32.mrf.mxu0
        %v2273 = vadd.f32 %v2196, %v2272
        %v2274 = vpop.f32.mrf.mxu0
        %2275 = vdwg.mxu0
        %v2276 = vadd.f32 %v2190, %v2268
        %v2277 = vadd.f32 %v2191, %v2273
        %v2278 = vxor.u32 %v2276, 2147483648
        %v2279 = vxor.u32 %v2277, 2147483648
        %v2280 = vmul.f32 %v2278, 1.442695
        %v2281 = vpow.pop %v2280
        %v2282 = vmul.f32 %v2279, 1.442695
        %v2283 = vpow.pop %v2282
        %v2284 = vadd.f32 %v2281, 1.0
        %v2285 = vadd.f32 %v2283, 1.0
        %v2286 = vrcp.pop %v2284
        %v2287 = vmul.f32 1.0, %v2286
        %v2288 = vrcp.pop %v2285
        %v2289 = vmul.f32 1.0, %v2288
        %2292 = vrot.lane.b32.xlu0 %v2268, 64
        %v2293 = vpop.permute.xlu0 %2292
        %2294 = vrot.lane.b32.xlu0 %v2273, 64
        %v2295 = vpop.permute.xlu0 %2294
        %v2298 = vmul.f32 %v2287, %v2293
        %v2299 = vmul.f32 %v2289, %v2295
        %2302 = vrot.lane.b32.xlu0 %v2298, 64
        %v2303 = vpop.permute.xlu0 %2302
        %2304 = vrot.lane.b32.xlu0 %v2299, 64
        %v2305 = vpop.permute.xlu0 %2304
        %v2308 = vadd.f32 %v2190, %v2303
        %v2309 = vadd.f32 %v2191, %v2305
        %v2310 = vtanh.pop %v2308
        %v2311 = vtanh.pop %v2309
        %v2312 = vsub.f32 1.0, %v2287
        %v2313 = vsub.f32 1.0, %v2289
        %2316 = vrot.lane.b32.xlu0 %v2310, 96
        %v2317 = vpop.permute.xlu0 %2316
        %2318 = vrot.lane.b32.xlu0 %v2311, 96
        %v2319 = vpop.permute.xlu0 %2318
        %v2322 = vmul.f32 %v2312, %v2317
        %v2323 = vmul.f32 %v2313, %v2319
        %v2324 = vmul.f32 %v2287, 0.0
        %v2325 = vmul.f32 %v2289, 0.0
        %v2326 = vadd.f32 %v2322, %v2324
        %v2327 = vadd.f32 %v2323, %v2325
        %vm2328 = vcmp.eq.s32.totalorder %v2188, 0
        %vm2329 = vcmp.eq.s32.totalorder %v2189, 0
        %v2330 = vsel %vm2328, 1, 0
        %v2331 = vsel %vm2329, 1, 0
        %2332 = vset.pattern.permute.xlu0 0
        %2333 = vperm.xlu0 %2332, %v2330
        %v2334 = vpop.permute.xlu0 %2333
        %2335 = vset.pattern.permute.xlu0 0
        %2336 = vperm.xlu0 %2335, %v2331
        %v2337 = vpop.permute.xlu0 %2336
        %vm2338 = vcmp.eq.s32.totalorder %v2334, 1
        %vm2339 = vcmp.eq.s32.totalorder %v2337, 1
        %v2340 = vsel %vm2338, %v2326, 0.0
        %v2341 = vsel %vm2339, %v2327, 0.0
        %s2342 = scalar_lea.vmem [#allocation2], 16
        %v2343 = vld [vmem:[%s2342] sm:$0xff]
        %v2344 = vld [vmem:[%s2342 + $0x8] sm:$0xff]
        %2347 = vrot.lane.b32.xlu0 %v2326, 96
        %v2348 = vpop.permute.xlu0 %2347
        %2349 = vrot.lane.b32.xlu0 %v2327, 96
        %v2350 = vpop.permute.xlu0 %2349
        %v2351 = vsel %vm1061, %v2348, 0
        %v2353 = vsel %vm1061, %v2350, 0
        %2355 = vmatprep.subr.mxu0 0.0
        %2356 = vmatpush1.msra.mxu0 0.0
        %2357 = vmatprep.subr.mxu0 0.0
        %2358 = vmatpush1.msra.mxu0 0.0
        %2359 = vmatprep.subr.mxu0 0.0
        %2360 = vmatpush1.msra.mxu0 0.0
        %2361 = vmatprep.subr.mxu0 0.0
        %2362 = vmatpush1.msra.mxu0 0.0
        %2363 = vmatprep.subr.mxu0 0.0
        %2364 = vmatpush1.msra.mxu0 0.0
        %2365 = vmatprep.subr.mxu0 0.0
        %2366 = vmatpush1.msra.mxu0 0.0
        %2367 = vmatprep.subr.mxu0 0.0
        %2368 = vmatpush1.msra.mxu0 0.0
        %2369 = vmatprep.subr.mxu0 0.0
        %2370 = vmatpush1.msra.mxu0 0.0
        %2371 = vmatprep.subr.mxu0 0.0
        %2372 = vmatpush1.msra.mxu0 0.0
        %2373 = vmatprep.subr.mxu0 0.0
        %2374 = vmatpush1.msra.mxu0 0.0
        %2375 = vmatprep.subr.mxu0 0.0
        %2376 = vmatpush1.msra.mxu0 0.0
        %2377 = vmatprep.subr.mxu0 0.0
        %2378 = vmatpush1.msra.mxu0 0.0
        %2379 = vmatprep.subr.mxu0 0.0
        %2380 = vmatpush1.msra.mxu0 %v2184
        %2381 = vmatprep.subr.mxu0 0.0
        %2382 = vmatpush1.msra.mxu0 %v2183
        %2383 = vmatprep.subr.mxu0 0.0
        %2384 = vmatpush1.msra.mxu0 %v2182
        %2385 = vmatprep.subr.mxu0 0.0
        %2386 = vmatpush1.msra.mxu0 %v2181
        %2387 = vmatprep.subr.mxu0 0.0
        %2388 = vmatpush2.msra.mxu0 0.0
        %2389 = vmatprep.subr.mxu0 0.0
        %2390 = vmatpush2.msra.mxu0 0.0
        %2391 = vmatprep.subr.mxu0 0.0
        %2392 = vmatpush2.msra.mxu0 0.0
        %2393 = vmatprep.subr.mxu0 0.0
        %2394 = vmatpush2.msra.mxu0 0.0
        %2395 = vmatprep.subr.mxu0 0.0
        %2396 = vmatpush2.msra.mxu0 0.0
        %2397 = vmatprep.subr.mxu0 0.0
        %2398 = vmatpush2.msra.mxu0 0.0
        %2399 = vmatprep.subr.mxu0 0.0
        %2400 = vmatpush2.msra.mxu0 0.0
        %2401 = vmatprep.subr.mxu0 0.0
        %2402 = vmatpush2.msra.mxu0 0.0
        %2403 = vmatprep.subr.mxu0 0.0
        %2404 = vmatpush2.msra.mxu0 0.0
        %2405 = vmatprep.subr.mxu0 0.0
        %2406 = vmatpush2.msra.mxu0 0.0
        %2407 = vmatprep.subr.mxu0 0.0
        %2408 = vmatpush2.msra.mxu0 0.0
        %2409 = vmatprep.subr.mxu0 0.0
        %2410 = vmatpush2.msra.mxu0 0.0
        %2411 = vmatprep.subr.mxu0 0.0
        %2412 = vmatpush2.msra.mxu0 0.0
        %2413 = vmatprep.subr.mxu0 0.0
        %2414 = vmatpush2.msra.mxu0 0.0
        %2415 = vmatprep.subr.mxu0 0.0
        %2416 = vmatpush2.msra.mxu0 0.0
        %2417 = vmatprep.subr.mxu0 0.0
        %2418 = vmatpush2.msra.mxu0 0.0
        %2419 = vmatprep.mubr.f32.mxu0 0.0
        %2420 = vmatmul.mubr.f32.gmra.mxu0 %v2351
        %v2421 = vpop.f32.mrf.mxu0
        %v2422 = vadd.f32 %v2196, %v2421
        %v2423 = vpop.f32.mrf.mxu0
        %2424 = vmatprep.mubr.f32.mxu0 0.0
        %2425 = vmatmul.mubr.f32.gmra.mxu0 %v2353
        %v2426 = vpop.f32.mrf.mxu0
        %v2427 = vadd.f32 %v2196, %v2426
        %v2428 = vpop.f32.mrf.mxu0
        %2429 = vdwg.mxu0
        %v2430 = vadd.f32 %v2343, %v2422
        %v2431 = vadd.f32 %v2344, %v2427
        %v2432 = vxor.u32 %v2430, 2147483648
        %v2433 = vxor.u32 %v2431, 2147483648
        %v2434 = vmul.f32 %v2432, 1.442695
        %v2435 = vpow.pop %v2434
        %v2436 = vmul.f32 %v2433, 1.442695
        %v2437 = vpow.pop %v2436
        %v2438 = vadd.f32 %v2435, 1.0
        %v2439 = vadd.f32 %v2437, 1.0
        %v2440 = vrcp.pop %v2438
        %v2441 = vmul.f32 1.0, %v2440
        %v2442 = vrcp.pop %v2439
        %v2443 = vmul.f32 1.0, %v2442
        %2446 = vrot.lane.b32.xlu0 %v2422, 64
        %v2447 = vpop.permute.xlu0 %2446
        %2448 = vrot.lane.b32.xlu0 %v2427, 64
        %v2449 = vpop.permute.xlu0 %2448
        %v2452 = vmul.f32 %v2441, %v2447
        %v2453 = vmul.f32 %v2443, %v2449
        %2456 = vrot.lane.b32.xlu0 %v2452, 64
        %v2457 = vpop.permute.xlu0 %2456
        %2458 = vrot.lane.b32.xlu0 %v2453, 64
        %v2459 = vpop.permute.xlu0 %2458
        %v2462 = vadd.f32 %v2343, %v2457
        %v2463 = vadd.f32 %v2344, %v2459
        %v2464 = vtanh.pop %v2462
        %v2465 = vtanh.pop %v2463
        %v2466 = vsub.f32 1.0, %v2441
        %v2467 = vsub.f32 1.0, %v2443
        %2470 = vrot.lane.b32.xlu0 %v2464, 96
        %v2471 = vpop.permute.xlu0 %2470
        %2472 = vrot.lane.b32.xlu0 %v2465, 96
        %v2473 = vpop.permute.xlu0 %2472
        %v2476 = vmul.f32 %v2466, %v2471
        %v2477 = vmul.f32 %v2467, %v2473
        %v2478 = vmul.f32 %v2441, %v2326
        %v2479 = vmul.f32 %v2443, %v2327
        %v2480 = vadd.f32 %v2476, %v2478
        %v2481 = vadd.f32 %v2477, %v2479
        %vm2482 = vcmp.eq.s32.totalorder %v2188, 1
        %vm2483 = vcmp.eq.s32.totalorder %v2189, 1
        %v2484 = vsel %vm2482, 1, 0
        %v2485 = vsel %vm2483, 1, 0
        %2486 = vset.pattern.permute.xlu0 0
        %2487 = vperm.xlu0 %2486, %v2484
        %v2488 = vpop.permute.xlu0 %2487
        %2489 = vset.pattern.permute.xlu0 0
        %2490 = vperm.xlu0 %2489, %v2485
        %v2491 = vpop.permute.xlu0 %2490
        %vm2492 = vcmp.eq.s32.totalorder %v2488, 1
        %vm2493 = vcmp.eq.s32.totalorder %v2491, 1
        %v2494 = vsel %vm2492, %v2480, %v2340
        %v2495 = vsel %vm2493, %v2481, %v2341
        %s2496 = scalar_lea.vmem [#allocation2], 32
        %v2497 = vld [vmem:[%s2496] sm:$0xff]
        %v2498 = vld [vmem:[%s2496 + $0x8] sm:$0xff]
        %2501 = vrot.lane.b32.xlu0 %v2480, 96
        %v2502 = vpop.permute.xlu0 %2501
        %2503 = vrot.lane.b32.xlu0 %v2481, 96
        %v2504 = vpop.permute.xlu0 %2503
        %v2505 = vsel %vm1061, %v2502, 0
        %v2507 = vsel %vm1061, %v2504, 0
        %2509 = vmatprep.subr.mxu0 0.0
        %2510 = vmatpush1.msra.mxu0 0.0
        %2511 = vmatprep.subr.mxu0 0.0
        %2512 = vmatpush1.msra.mxu0 0.0
        %2513 = vmatprep.subr.mxu0 0.0
        %2514 = vmatpush1.msra.mxu0 0.0
        %2515 = vmatprep.subr.mxu0 0.0
        %2516 = vmatpush1.msra.mxu0 0.0
        %2517 = vmatprep.subr.mxu0 0.0
        %2518 = vmatpush1.msra.mxu0 0.0
        %2519 = vmatprep.subr.mxu0 0.0
        %2520 = vmatpush1.msra.mxu0 0.0
        %2521 = vmatprep.subr.mxu0 0.0
        %2522 = vmatpush1.msra.mxu0 0.0
        %2523 = vmatprep.subr.mxu0 0.0
        %2524 = vmatpush1.msra.mxu0 0.0
        %2525 = vmatprep.subr.mxu0 0.0
        %2526 = vmatpush1.msra.mxu0 0.0
        %2527 = vmatprep.subr.mxu0 0.0
        %2528 = vmatpush1.msra.mxu0 0.0
        %2529 = vmatprep.subr.mxu0 0.0
        %2530 = vmatpush1.msra.mxu0 0.0
        %2531 = vmatprep.subr.mxu0 0.0
        %2532 = vmatpush1.msra.mxu0 0.0
        %2533 = vmatprep.subr.mxu0 0.0
        %2534 = vmatpush1.msra.mxu0 %v2184
        %2535 = vmatprep.subr.mxu0 0.0
        %2536 = vmatpush1.msra.mxu0 %v2183
        %2537 = vmatprep.subr.mxu0 0.0
        %2538 = vmatpush1.msra.mxu0 %v2182
        %2539 = vmatprep.subr.mxu0 0.0
        %2540 = vmatpush1.msra.mxu0 %v2181
        %2541 = vmatprep.subr.mxu0 0.0
        %2542 = vmatpush2.msra.mxu0 0.0
        %2543 = vmatprep.subr.mxu0 0.0
        %2544 = vmatpush2.msra.mxu0 0.0
        %2545 = vmatprep.subr.mxu0 0.0
        %2546 = vmatpush2.msra.mxu0 0.0
        %2547 = vmatprep.subr.mxu0 0.0
        %2548 = vmatpush2.msra.mxu0 0.0
        %2549 = vmatprep.subr.mxu0 0.0
        %2550 = vmatpush2.msra.mxu0 0.0
        %2551 = vmatprep.subr.mxu0 0.0
        %2552 = vmatpush2.msra.mxu0 0.0
        %2553 = vmatprep.subr.mxu0 0.0
        %2554 = vmatpush2.msra.mxu0 0.0
        %2555 = vmatprep.subr.mxu0 0.0
        %2556 = vmatpush2.msra.mxu0 0.0
        %2557 = vmatprep.subr.mxu0 0.0
        %2558 = vmatpush2.msra.mxu0 0.0
        %2559 = vmatprep.subr.mxu0 0.0
        %2560 = vmatpush2.msra.mxu0 0.0
        %2561 = vmatprep.subr.mxu0 0.0
        %2562 = vmatpush2.msra.mxu0 0.0
        %2563 = vmatprep.subr.mxu0 0.0
        %2564 = vmatpush2.msra.mxu0 0.0
        %2565 = vmatprep.subr.mxu0 0.0
        %2566 = vmatpush2.msra.mxu0 0.0
        %2567 = vmatprep.subr.mxu0 0.0
        %2568 = vmatpush2.msra.mxu0 0.0
        %2569 = vmatprep.subr.mxu0 0.0
        %2570 = vmatpush2.msra.mxu0 0.0
        %2571 = vmatprep.subr.mxu0 0.0
        %2572 = vmatpush2.msra.mxu0 0.0
        %2573 = vmatprep.mubr.f32.mxu0 0.0
        %2574 = vmatmul.mubr.f32.gmra.mxu0 %v2505
        %v2575 = vpop.f32.mrf.mxu0
        %v2576 = vadd.f32 %v2196, %v2575
        %v2577 = vpop.f32.mrf.mxu0
        %2578 = vmatprep.mubr.f32.mxu0 0.0
        %2579 = vmatmul.mubr.f32.gmra.mxu0 %v2507
        %v2580 = vpop.f32.mrf.mxu0
        %v2581 = vadd.f32 %v2196, %v2580
        %v2582 = vpop.f32.mrf.mxu0
        %2583 = vdwg.mxu0
        %v2584 = vadd.f32 %v2497, %v2576
        %v2585 = vadd.f32 %v2498, %v2581
        %v2586 = vxor.u32 %v2584, 2147483648
        %v2587 = vxor.u32 %v2585, 2147483648
        %v2588 = vmul.f32 %v2586, 1.442695
        %v2589 = vpow.pop %v2588
        %v2590 = vmul.f32 %v2587, 1.442695
        %v2591 = vpow.pop %v2590
        %v2592 = vadd.f32 %v2589, 1.0
        %v2593 = vadd.f32 %v2591, 1.0
        %v2594 = vrcp.pop %v2592
        %v2595 = vmul.f32 1.0, %v2594
        %v2596 = vrcp.pop %v2593
        %v2597 = vmul.f32 1.0, %v2596
        %2600 = vrot.lane.b32.xlu0 %v2576, 64
        %v2601 = vpop.permute.xlu0 %2600
        %2602 = vrot.lane.b32.xlu0 %v2581, 64
        %v2603 = vpop.permute.xlu0 %2602
        %v2606 = vmul.f32 %v2595, %v2601
        %v2607 = vmul.f32 %v2597, %v2603
        %2610 = vrot.lane.b32.xlu0 %v2606, 64
        %v2611 = vpop.permute.xlu0 %2610
        %2612 = vrot.lane.b32.xlu0 %v2607, 64
        %v2613 = vpop.permute.xlu0 %2612
        %v2616 = vadd.f32 %v2497, %v2611
        %v2617 = vadd.f32 %v2498, %v2613
        %v2618 = vtanh.pop %v2616
        %v2619 = vtanh.pop %v2617
        %v2620 = vsub.f32 1.0, %v2595
        %v2621 = vsub.f32 1.0, %v2597
        %2624 = vrot.lane.b32.xlu0 %v2618, 96
        %v2625 = vpop.permute.xlu0 %2624
        %2626 = vrot.lane.b32.xlu0 %v2619, 96
        %v2627 = vpop.permute.xlu0 %2626
        %v2630 = vmul.f32 %v2620, %v2625
        %v2631 = vmul.f32 %v2621, %v2627
        %v2632 = vmul.f32 %v2595, %v2480
        %v2633 = vmul.f32 %v2597, %v2481
        %v2634 = vadd.f32 %v2630, %v2632
        %v2635 = vadd.f32 %v2631, %v2633
        %vm2636 = vcmp.eq.s32.totalorder %v2188, 2
        %vm2637 = vcmp.eq.s32.totalorder %v2189, 2
        %v2638 = vsel %vm2636, 1, 0
        %v2639 = vsel %vm2637, 1, 0
        %2640 = vset.pattern.permute.xlu0 0
        %2641 = vperm.xlu0 %2640, %v2638
        %v2642 = vpop.permute.xlu0 %2641
        %2643 = vset.pattern.permute.xlu0 0
        %2644 = vperm.xlu0 %2643, %v2639
        %v2645 = vpop.permute.xlu0 %2644
        %vm2646 = vcmp.eq.s32.totalorder %v2642, 1
        %vm2647 = vcmp.eq.s32.totalorder %v2645, 1
        %v2648 = vsel %vm2646, %v2634, %v2494
        %v2649 = vsel %vm2647, %v2635, %v2495
        %s2650 = scalar_lea.vmem [#allocation2], 48
        %v2651 = vld [vmem:[%s2650] sm:$0xff]
        %v2652 = vld [vmem:[%s2650 + $0x8] sm:$0xff]
        %2655 = vrot.lane.b32.xlu0 %v2634, 96
        %v2656 = vpop.permute.xlu0 %2655
        %2657 = vrot.lane.b32.xlu0 %v2635, 96
        %v2658 = vpop.permute.xlu0 %2657
        %v2659 = vsel %vm1061, %v2656, 0
        %v2661 = vsel %vm1061, %v2658, 0
        %2663 = vmatprep.subr.mxu0 0.0
        %2664 = vmatpush1.msra.mxu0 0.0
        %2665 = vmatprep.subr.mxu0 0.0
        %2666 = vmatpush1.msra.mxu0 0.0
        %2667 = vmatprep.subr.mxu0 0.0
        %2668 = vmatpush1.msra.mxu0 0.0
        %2669 = vmatprep.subr.mxu0 0.0
        %2670 = vmatpush1.msra.mxu0 0.0
        %2671 = vmatprep.subr.mxu0 0.0
        %2672 = vmatpush1.msra.mxu0 0.0
        %2673 = vmatprep.subr.mxu0 0.0
        %2674 = vmatpush1.msra.mxu0 0.0
        %2675 = vmatprep.subr.mxu0 0.0
        %2676 = vmatpush1.msra.mxu0 0.0
        %2677 = vmatprep.subr.mxu0 0.0
        %2678 = vmatpush1.msra.mxu0 0.0
        %2679 = vmatprep.subr.mxu0 0.0
        %2680 = vmatpush1.msra.mxu0 0.0
        %2681 = vmatprep.subr.mxu0 0.0
        %2682 = vmatpush1.msra.mxu0 0.0
        %2683 = vmatprep.subr.mxu0 0.0
        %2684 = vmatpush1.msra.mxu0 0.0
        %2685 = vmatprep.subr.mxu0 0.0
        %2686 = vmatpush1.msra.mxu0 0.0
        %2687 = vmatprep.subr.mxu0 0.0
        %2688 = vmatpush1.msra.mxu0 %v2184
        %2689 = vmatprep.subr.mxu0 0.0
        %2690 = vmatpush1.msra.mxu0 %v2183
        %2691 = vmatprep.subr.mxu0 0.0
        %2692 = vmatpush1.msra.mxu0 %v2182
        %2693 = vmatprep.subr.mxu0 0.0
        %2694 = vmatpush1.msra.mxu0 %v2181
        %2695 = vmatprep.subr.mxu0 0.0
        %2696 = vmatpush2.msra.mxu0 0.0
        %2697 = vmatprep.subr.mxu0 0.0
        %2698 = vmatpush2.msra.mxu0 0.0
        %2699 = vmatprep.subr.mxu0 0.0
        %2700 = vmatpush2.msra.mxu0 0.0
        %2701 = vmatprep.subr.mxu0 0.0
        %2702 = vmatpush2.msra.mxu0 0.0
        %2703 = vmatprep.subr.mxu0 0.0
        %2704 = vmatpush2.msra.mxu0 0.0
        %2705 = vmatprep.subr.mxu0 0.0
        %2706 = vmatpush2.msra.mxu0 0.0
        %2707 = vmatprep.subr.mxu0 0.0
        %2708 = vmatpush2.msra.mxu0 0.0
        %2709 = vmatprep.subr.mxu0 0.0
        %2710 = vmatpush2.msra.mxu0 0.0
        %2711 = vmatprep.subr.mxu0 0.0
        %2712 = vmatpush2.msra.mxu0 0.0
        %2713 = vmatprep.subr.mxu0 0.0
        %2714 = vmatpush2.msra.mxu0 0.0
        %2715 = vmatprep.subr.mxu0 0.0
        %2716 = vmatpush2.msra.mxu0 0.0
        %2717 = vmatprep.subr.mxu0 0.0
        %2718 = vmatpush2.msra.mxu0 0.0
        %2719 = vmatprep.subr.mxu0 0.0
        %2720 = vmatpush2.msra.mxu0 0.0
        %2721 = vmatprep.subr.mxu0 0.0
        %2722 = vmatpush2.msra.mxu0 0.0
        %2723 = vmatprep.subr.mxu0 0.0
        %2724 = vmatpush2.msra.mxu0 0.0
        %2725 = vmatprep.subr.mxu0 0.0
        %2726 = vmatpush2.msra.mxu0 0.0
        %2727 = vmatprep.mubr.f32.mxu0 0.0
        %2728 = vmatmul.mubr.f32.gmra.mxu0 %v2659
        %v2729 = vpop.f32.mrf.mxu0
        %v2730 = vadd.f32 %v2196, %v2729
        %v2731 = vpop.f32.mrf.mxu0
        %2732 = vmatprep.mubr.f32.mxu0 0.0
        %2733 = vmatmul.mubr.f32.gmra.mxu0 %v2661
        %v2734 = vpop.f32.mrf.mxu0
        %v2735 = vadd.f32 %v2196, %v2734
        %v2736 = vpop.f32.mrf.mxu0
        %2737 = vdwg.mxu0
        %v2738 = vadd.f32 %v2651, %v2730
        %v2739 = vadd.f32 %v2652, %v2735
        %v2740 = vxor.u32 %v2738, 2147483648
        %v2741 = vxor.u32 %v2739, 2147483648
        %v2742 = vmul.f32 %v2740, 1.442695
        %v2743 = vpow.pop %v2742
        %v2744 = vmul.f32 %v2741, 1.442695
        %v2745 = vpow.pop %v2744
        %v2746 = vadd.f32 %v2743, 1.0
        %v2747 = vadd.f32 %v2745, 1.0
        %v2748 = vrcp.pop %v2746
        %v2749 = vmul.f32 1.0, %v2748
        %v2750 = vrcp.pop %v2747
        %v2751 = vmul.f32 1.0, %v2750
        %2754 = vrot.lane.b32.xlu0 %v2730, 64
        %v2755 = vpop.permute.xlu0 %2754
        %2756 = vrot.lane.b32.xlu0 %v2735, 64
        %v2757 = vpop.permute.xlu0 %2756
        %v2760 = vmul.f32 %v2749, %v2755
        %v2761 = vmul.f32 %v2751, %v2757
        %2764 = vrot.lane.b32.xlu0 %v2760, 64
        %v2765 = vpop.permute.xlu0 %2764
        %2766 = vrot.lane.b32.xlu0 %v2761, 64
        %v2767 = vpop.permute.xlu0 %2766
        %v2770 = vadd.f32 %v2651, %v2765
        %v2771 = vadd.f32 %v2652, %v2767
        %v2772 = vtanh.pop %v2770
        %v2773 = vtanh.pop %v2771
        %v2774 = vsub.f32 1.0, %v2749
        %v2775 = vsub.f32 1.0, %v2751
        %2778 = vrot.lane.b32.xlu0 %v2772, 96
        %v2779 = vpop.permute.xlu0 %2778
        %2780 = vrot.lane.b32.xlu0 %v2773, 96
        %v2781 = vpop.permute.xlu0 %2780
        %v2784 = vmul.f32 %v2774, %v2779
        %v2785 = vmul.f32 %v2775, %v2781
        %v2786 = vmul.f32 %v2749, %v2634
        %v2787 = vmul.f32 %v2751, %v2635
        %v2788 = vadd.f32 %v2784, %v2786
        %v2789 = vadd.f32 %v2785, %v2787
        %vm2790 = vcmp.eq.s32.totalorder %v2188, 3
        %vm2791 = vcmp.eq.s32.totalorder %v2189, 3
        %v2792 = vsel %vm2790, 1, 0
        %v2793 = vsel %vm2791, 1, 0
        %2794 = vset.pattern.permute.xlu0 0
        %2795 = vperm.xlu0 %2794, %v2792
        %v2796 = vpop.permute.xlu0 %2795
        %2797 = vset.pattern.permute.xlu0 0
        %2798 = vperm.xlu0 %2797, %v2793
        %v2799 = vpop.permute.xlu0 %2798
        %vm2800 = vcmp.eq.s32.totalorder %v2796, 1
        %vm2801 = vcmp.eq.s32.totalorder %v2799, 1
        %v2802 = vsel %vm2800, %v2788, %v2648
        %v2803 = vsel %vm2801, %v2789, %v2649
        %s2804 = scalar_lea.vmem [#allocation2], 64
        %v2805 = vld [vmem:[%s2804] sm:$0xff]
        %v2806 = vld [vmem:[%s2804 + $0x8] sm:$0xff]
        %2809 = vrot.lane.b32.xlu0 %v2788, 96
        %v2810 = vpop.permute.xlu0 %2809
        %2811 = vrot.lane.b32.xlu0 %v2789, 96
        %v2812 = vpop.permute.xlu0 %2811
        %v2813 = vsel %vm1061, %v2810, 0
        %v2815 = vsel %vm1061, %v2812, 0
        %2817 = vmatprep.subr.mxu0 0.0
        %2818 = vmatpush1.msra.mxu0 0.0
        %2819 = vmatprep.subr.mxu0 0.0
        %2820 = vmatpush1.msra.mxu0 0.0
        %2821 = vmatprep.subr.mxu0 0.0
        %2822 = vmatpush1.msra.mxu0 0.0
        %2823 = vmatprep.subr.mxu0 0.0
        %2824 = vmatpush1.msra.mxu0 0.0
        %2825 = vmatprep.subr.mxu0 0.0
        %2826 = vmatpush1.msra.mxu0 0.0
        %2827 = vmatprep.subr.mxu0 0.0
        %2828 = vmatpush1.msra.mxu0 0.0
        %2829 = vmatprep.subr.mxu0 0.0
        %2830 = vmatpush1.msra.mxu0 0.0
        %2831 = vmatprep.subr.mxu0 0.0
        %2832 = vmatpush1.msra.mxu0 0.0
        %2833 = vmatprep.subr.mxu0 0.0
        %2834 = vmatpush1.msra.mxu0 0.0
        %2835 = vmatprep.subr.mxu0 0.0
        %2836 = vmatpush1.msra.mxu0 0.0
        %2837 = vmatprep.subr.mxu0 0.0
        %2838 = vmatpush1.msra.mxu0 0.0
        %2839 = vmatprep.subr.mxu0 0.0
        %2840 = vmatpush1.msra.mxu0 0.0
        %2841 = vmatprep.subr.mxu0 0.0
        %2842 = vmatpush1.msra.mxu0 %v2184
        %2843 = vmatprep.subr.mxu0 0.0
        %2844 = vmatpush1.msra.mxu0 %v2183
        %2845 = vmatprep.subr.mxu0 0.0
        %2846 = vmatpush1.msra.mxu0 %v2182
        %2847 = vmatprep.subr.mxu0 0.0
        %2848 = vmatpush1.msra.mxu0 %v2181
        %2849 = vmatprep.subr.mxu0 0.0
        %2850 = vmatpush2.msra.mxu0 0.0
        %2851 = vmatprep.subr.mxu0 0.0
        %2852 = vmatpush2.msra.mxu0 0.0
        %2853 = vmatprep.subr.mxu0 0.0
        %2854 = vmatpush2.msra.mxu0 0.0
        %2855 = vmatprep.subr.mxu0 0.0
        %2856 = vmatpush2.msra.mxu0 0.0
        %2857 = vmatprep.subr.mxu0 0.0
        %2858 = vmatpush2.msra.mxu0 0.0
        %2859 = vmatprep.subr.mxu0 0.0
        %2860 = vmatpush2.msra.mxu0 0.0
        %2861 = vmatprep.subr.mxu0 0.0
        %2862 = vmatpush2.msra.mxu0 0.0
        %2863 = vmatprep.subr.mxu0 0.0
        %2864 = vmatpush2.msra.mxu0 0.0
        %2865 = vmatprep.subr.mxu0 0.0
        %2866 = vmatpush2.msra.mxu0 0.0
        %2867 = vmatprep.subr.mxu0 0.0
        %2868 = vmatpush2.msra.mxu0 0.0
        %2869 = vmatprep.subr.mxu0 0.0
        %2870 = vmatpush2.msra.mxu0 0.0
        %2871 = vmatprep.subr.mxu0 0.0
        %2872 = vmatpush2.msra.mxu0 0.0
        %2873 = vmatprep.subr.mxu0 0.0
        %2874 = vmatpush2.msra.mxu0 0.0
        %2875 = vmatprep.subr.mxu0 0.0
        %2876 = vmatpush2.msra.mxu0 0.0
        %2877 = vmatprep.subr.mxu0 0.0
        %2878 = vmatpush2.msra.mxu0 0.0
        %2879 = vmatprep.subr.mxu0 0.0
        %2880 = vmatpush2.msra.mxu0 0.0
        %2881 = vmatprep.mubr.f32.mxu0 0.0
        %2882 = vmatmul.mubr.f32.gmra.mxu0 %v2813
        %v2883 = vpop.f32.mrf.mxu0
        %v2884 = vadd.f32 %v2196, %v2883
        %v2885 = vpop.f32.mrf.mxu0
        %2886 = vmatprep.mubr.f32.mxu0 0.0
        %2887 = vmatmul.mubr.f32.gmra.mxu0 %v2815
        %v2888 = vpop.f32.mrf.mxu0
        %v2889 = vadd.f32 %v2196, %v2888
        %v2890 = vpop.f32.mrf.mxu0
        %2891 = vdwg.mxu0
        %v2892 = vadd.f32 %v2805, %v2884
        %v2893 = vadd.f32 %v2806, %v2889
        %v2894 = vxor.u32 %v2892, 2147483648
        %v2895 = vxor.u32 %v2893, 2147483648
        %v2896 = vmul.f32 %v2894, 1.442695
        %v2897 = vpow.pop %v2896
        %v2898 = vmul.f32 %v2895, 1.442695
        %v2899 = vpow.pop %v2898
        %v2900 = vadd.f32 %v2897, 1.0
        %v2901 = vadd.f32 %v2899, 1.0
        %v2902 = vrcp.pop %v2900
        %v2903 = vmul.f32 1.0, %v2902
        %v2904 = vrcp.pop %v2901
        %v2905 = vmul.f32 1.0, %v2904
        %2908 = vrot.lane.b32.xlu0 %v2884, 64
        %v2909 = vpop.permute.xlu0 %2908
        %2910 = vrot.lane.b32.xlu0 %v2889, 64
        %v2911 = vpop.permute.xlu0 %2910
        %v2914 = vmul.f32 %v2903, %v2909
        %v2915 = vmul.f32 %v2905, %v2911
        %2918 = vrot.lane.b32.xlu0 %v2914, 64
        %v2919 = vpop.permute.xlu0 %2918
        %2920 = vrot.lane.b32.xlu0 %v2915, 64
        %v2921 = vpop.permute.xlu0 %2920
        %v2924 = vadd.f32 %v2805, %v2919
        %v2925 = vadd.f32 %v2806, %v2921
        %v2926 = vtanh.pop %v2924
        %v2927 = vtanh.pop %v2925
        %v2928 = vsub.f32 1.0, %v2903
        %v2929 = vsub.f32 1.0, %v2905
        %2932 = vrot.lane.b32.xlu0 %v2926, 96
        %v2933 = vpop.permute.xlu0 %2932
        %2934 = vrot.lane.b32.xlu0 %v2927, 96
        %v2935 = vpop.permute.xlu0 %2934
        %v2938 = vmul.f32 %v2928, %v2933
        %v2939 = vmul.f32 %v2929, %v2935
        %v2940 = vmul.f32 %v2903, %v2788
        %v2941 = vmul.f32 %v2905, %v2789
        %v2942 = vadd.f32 %v2938, %v2940
        %v2943 = vadd.f32 %v2939, %v2941
        %vm2944 = vcmp.eq.s32.totalorder %v2188, 4
        %vm2945 = vcmp.eq.s32.totalorder %v2189, 4
        %v2946 = vsel %vm2944, 1, 0
        %v2947 = vsel %vm2945, 1, 0
        %2948 = vset.pattern.permute.xlu0 0
        %2949 = vperm.xlu0 %2948, %v2946
        %v2950 = vpop.permute.xlu0 %2949
        %2951 = vset.pattern.permute.xlu0 0
        %2952 = vperm.xlu0 %2951, %v2947
        %v2953 = vpop.permute.xlu0 %2952
        %vm2954 = vcmp.eq.s32.totalorder %v2950, 1
        %vm2955 = vcmp.eq.s32.totalorder %v2953, 1
        %v2956 = vsel %vm2954, %v2942, %v2802
        %v2957 = vsel %vm2955, %v2943, %v2803
        %s2958 = scalar_lea.vmem [#allocation2], 80
        %v2959 = vld [vmem:[%s2958] sm:$0xff]
        %v2960 = vld [vmem:[%s2958 + $0x8] sm:$0xff]
        %2963 = vrot.lane.b32.xlu0 %v2942, 96
        %v2964 = vpop.permute.xlu0 %2963
        %2965 = vrot.lane.b32.xlu0 %v2943, 96
        %v2966 = vpop.permute.xlu0 %2965
        %v2967 = vsel %vm1061, %v2964, 0
        %v2969 = vsel %vm1061, %v2966, 0
        %2971 = vmatprep.subr.mxu0 0.0
        %2972 = vmatpush1.msra.mxu0 0.0
        %2973 = vmatprep.subr.mxu0 0.0
        %2974 = vmatpush1.msra.mxu0 0.0
        %2975 = vmatprep.subr.mxu0 0.0
        %2976 = vmatpush1.msra.mxu0 0.0
        %2977 = vmatprep.subr.mxu0 0.0
        %2978 = vmatpush1.msra.mxu0 0.0
        %2979 = vmatprep.subr.mxu0 0.0
        %2980 = vmatpush1.msra.mxu0 0.0
        %2981 = vmatprep.subr.mxu0 0.0
        %2982 = vmatpush1.msra.mxu0 0.0
        %2983 = vmatprep.subr.mxu0 0.0
        %2984 = vmatpush1.msra.mxu0 0.0
        %2985 = vmatprep.subr.mxu0 0.0
        %2986 = vmatpush1.msra.mxu0 0.0
        %2987 = vmatprep.subr.mxu0 0.0
        %2988 = vmatpush1.msra.mxu0 0.0
        %2989 = vmatprep.subr.mxu0 0.0
        %2990 = vmatpush1.msra.mxu0 0.0
        %2991 = vmatprep.subr.mxu0 0.0
        %2992 = vmatpush1.msra.mxu0 0.0
        %2993 = vmatprep.subr.mxu0 0.0
        %2994 = vmatpush1.msra.mxu0 0.0
        %2995 = vmatprep.subr.mxu0 0.0
        %2996 = vmatpush1.msra.mxu0 %v2184
        %2997 = vmatprep.subr.mxu0 0.0
        %2998 = vmatpush1.msra.mxu0 %v2183
        %2999 = vmatprep.subr.mxu0 0.0
        %3000 = vmatpush1.msra.mxu0 %v2182
        %3001 = vmatprep.subr.mxu0 0.0
        %3002 = vmatpush1.msra.mxu0 %v2181
        %3003 = vmatprep.subr.mxu0 0.0
        %3004 = vmatpush2.msra.mxu0 0.0
        %3005 = vmatprep.subr.mxu0 0.0
        %3006 = vmatpush2.msra.mxu0 0.0
        %3007 = vmatprep.subr.mxu0 0.0
        %3008 = vmatpush2.msra.mxu0 0.0
        %3009 = vmatprep.subr.mxu0 0.0
        %3010 = vmatpush2.msra.mxu0 0.0
        %3011 = vmatprep.subr.mxu0 0.0
        %3012 = vmatpush2.msra.mxu0 0.0
        %3013 = vmatprep.subr.mxu0 0.0
        %3014 = vmatpush2.msra.mxu0 0.0
        %3015 = vmatprep.subr.mxu0 0.0
        %3016 = vmatpush2.msra.mxu0 0.0
        %3017 = vmatprep.subr.mxu0 0.0
        %3018 = vmatpush2.msra.mxu0 0.0
        %3019 = vmatprep.subr.mxu0 0.0
        %3020 = vmatpush2.msra.mxu0 0.0
        %3021 = vmatprep.subr.mxu0 0.0
        %3022 = vmatpush2.msra.mxu0 0.0
        %3023 = vmatprep.subr.mxu0 0.0
        %3024 = vmatpush2.msra.mxu0 0.0
        %3025 = vmatprep.subr.mxu0 0.0
        %3026 = vmatpush2.msra.mxu0 0.0
        %3027 = vmatprep.subr.mxu0 0.0
        %3028 = vmatpush2.msra.mxu0 0.0
        %3029 = vmatprep.subr.mxu0 0.0
        %3030 = vmatpush2.msra.mxu0 0.0
        %3031 = vmatprep.subr.mxu0 0.0
        %3032 = vmatpush2.msra.mxu0 0.0
        %3033 = vmatprep.subr.mxu0 0.0
        %3034 = vmatpush2.msra.mxu0 0.0
        %3035 = vmatprep.mubr.f32.mxu0 0.0
        %3036 = vmatmul.mubr.f32.gmra.mxu0 %v2967
        %v3037 = vpop.f32.mrf.mxu0
        %v3038 = vadd.f32 %v2196, %v3037
        %v3039 = vpop.f32.mrf.mxu0
        %3040 = vmatprep.mubr.f32.mxu0 0.0
        %3041 = vmatmul.mubr.f32.gmra.mxu0 %v2969
        %v3042 = vpop.f32.mrf.mxu0
        %v3043 = vadd.f32 %v2196, %v3042
        %v3044 = vpop.f32.mrf.mxu0
        %3045 = vdwg.mxu0
        %v3046 = vadd.f32 %v2959, %v3038
        %v3047 = vadd.f32 %v2960, %v3043
        %v3048 = vxor.u32 %v3046, 2147483648
        %v3049 = vxor.u32 %v3047, 2147483648
        %v3050 = vmul.f32 %v3048, 1.442695
        %v3051 = vpow.pop %v3050
        %v3052 = vmul.f32 %v3049, 1.442695
        %v3053 = vpow.pop %v3052
        %v3054 = vadd.f32 %v3051, 1.0
        %v3055 = vadd.f32 %v3053, 1.0
        %v3056 = vrcp.pop %v3054
        %v3057 = vmul.f32 1.0, %v3056
        %v3058 = vrcp.pop %v3055
        %v3059 = vmul.f32 1.0, %v3058
        %3062 = vrot.lane.b32.xlu0 %v3038, 64
        %v3063 = vpop.permute.xlu0 %3062
        %3064 = vrot.lane.b32.xlu0 %v3043, 64
        %v3065 = vpop.permute.xlu0 %3064
        %v3068 = vmul.f32 %v3057, %v3063
        %v3069 = vmul.f32 %v3059, %v3065
        %3072 = vrot.lane.b32.xlu0 %v3068, 64
        %v3073 = vpop.permute.xlu0 %3072
        %3074 = vrot.lane.b32.xlu0 %v3069, 64
        %v3075 = vpop.permute.xlu0 %3074
        %v3078 = vadd.f32 %v2959, %v3073
        %v3079 = vadd.f32 %v2960, %v3075
        %v3080 = vtanh.pop %v3078
        %v3081 = vtanh.pop %v3079
        %v3082 = vsub.f32 1.0, %v3057
        %v3083 = vsub.f32 1.0, %v3059
        %3086 = vrot.lane.b32.xlu0 %v3080, 96
        %v3087 = vpop.permute.xlu0 %3086
        %3088 = vrot.lane.b32.xlu0 %v3081, 96
        %v3089 = vpop.permute.xlu0 %3088
        %v3092 = vmul.f32 %v3082, %v3087
        %v3093 = vmul.f32 %v3083, %v3089
        %v3094 = vmul.f32 %v3057, %v2942
        %v3095 = vmul.f32 %v3059, %v2943
        %v3096 = vadd.f32 %v3092, %v3094
        %v3097 = vadd.f32 %v3093, %v3095
        %vm3098 = vcmp.eq.s32.totalorder %v2188, 5
        %vm3099 = vcmp.eq.s32.totalorder %v2189, 5
        %v3100 = vsel %vm3098, 1, 0
        %v3101 = vsel %vm3099, 1, 0
        %3102 = vset.pattern.permute.xlu0 0
        %3103 = vperm.xlu0 %3102, %v3100
        %v3104 = vpop.permute.xlu0 %3103
        %3105 = vset.pattern.permute.xlu0 0
        %3106 = vperm.xlu0 %3105, %v3101
        %v3107 = vpop.permute.xlu0 %3106
        %vm3108 = vcmp.eq.s32.totalorder %v3104, 1
        %vm3109 = vcmp.eq.s32.totalorder %v3107, 1
        %v3110 = vsel %vm3108, %v3096, %v2956
        %v3111 = vsel %vm3109, %v3097, %v2957
        %s3112 = scalar_lea.vmem [#allocation2], 96
        %v3113 = vld [vmem:[%s3112] sm:$0xff]
        %v3114 = vld [vmem:[%s3112 + $0x8] sm:$0xff]
        %3117 = vrot.lane.b32.xlu0 %v3096, 96
        %v3118 = vpop.permute.xlu0 %3117
        %3119 = vrot.lane.b32.xlu0 %v3097, 96
        %v3120 = vpop.permute.xlu0 %3119
        %v3121 = vsel %vm1061, %v3118, 0
        %v3123 = vsel %vm1061, %v3120, 0
        %3125 = vmatprep.subr.mxu0 0.0
        %3126 = vmatpush1.msra.mxu0 0.0
        %3127 = vmatprep.subr.mxu0 0.0
        %3128 = vmatpush1.msra.mxu0 0.0
        %3129 = vmatprep.subr.mxu0 0.0
        %3130 = vmatpush1.msra.mxu0 0.0
        %3131 = vmatprep.subr.mxu0 0.0
        %3132 = vmatpush1.msra.mxu0 0.0
        %3133 = vmatprep.subr.mxu0 0.0
        %3134 = vmatpush1.msra.mxu0 0.0
        %3135 = vmatprep.subr.mxu0 0.0
        %3136 = vmatpush1.msra.mxu0 0.0
        %3137 = vmatprep.subr.mxu0 0.0
        %3138 = vmatpush1.msra.mxu0 0.0
        %3139 = vmatprep.subr.mxu0 0.0
        %3140 = vmatpush1.msra.mxu0 0.0
        %3141 = vmatprep.subr.mxu0 0.0
        %3142 = vmatpush1.msra.mxu0 0.0
        %3143 = vmatprep.subr.mxu0 0.0
        %3144 = vmatpush1.msra.mxu0 0.0
        %3145 = vmatprep.subr.mxu0 0.0
        %3146 = vmatpush1.msra.mxu0 0.0
        %3147 = vmatprep.subr.mxu0 0.0
        %3148 = vmatpush1.msra.mxu0 0.0
        %3149 = vmatprep.subr.mxu0 0.0
        %3150 = vmatpush1.msra.mxu0 %v2184
        %3151 = vmatprep.subr.mxu0 0.0
        %3152 = vmatpush1.msra.mxu0 %v2183
        %3153 = vmatprep.subr.mxu0 0.0
        %3154 = vmatpush1.msra.mxu0 %v2182
        %3155 = vmatprep.subr.mxu0 0.0
        %3156 = vmatpush1.msra.mxu0 %v2181
        %3157 = vmatprep.subr.mxu0 0.0
        %3158 = vmatpush2.msra.mxu0 0.0
        %3159 = vmatprep.subr.mxu0 0.0
        %3160 = vmatpush2.msra.mxu0 0.0
        %3161 = vmatprep.subr.mxu0 0.0
        %3162 = vmatpush2.msra.mxu0 0.0
        %3163 = vmatprep.subr.mxu0 0.0
        %3164 = vmatpush2.msra.mxu0 0.0
        %3165 = vmatprep.subr.mxu0 0.0
        %3166 = vmatpush2.msra.mxu0 0.0
        %3167 = vmatprep.subr.mxu0 0.0
        %3168 = vmatpush2.msra.mxu0 0.0
        %3169 = vmatprep.subr.mxu0 0.0
        %3170 = vmatpush2.msra.mxu0 0.0
        %3171 = vmatprep.subr.mxu0 0.0
        %3172 = vmatpush2.msra.mxu0 0.0
        %3173 = vmatprep.subr.mxu0 0.0
        %3174 = vmatpush2.msra.mxu0 0.0
        %3175 = vmatprep.subr.mxu0 0.0
        %3176 = vmatpush2.msra.mxu0 0.0
        %3177 = vmatprep.subr.mxu0 0.0
        %3178 = vmatpush2.msra.mxu0 0.0
        %3179 = vmatprep.subr.mxu0 0.0
        %3180 = vmatpush2.msra.mxu0 0.0
        %3181 = vmatprep.subr.mxu0 0.0
        %3182 = vmatpush2.msra.mxu0 0.0
        %3183 = vmatprep.subr.mxu0 0.0
        %3184 = vmatpush2.msra.mxu0 0.0
        %3185 = vmatprep.subr.mxu0 0.0
        %3186 = vmatpush2.msra.mxu0 0.0
        %3187 = vmatprep.subr.mxu0 0.0
        %3188 = vmatpush2.msra.mxu0 0.0
        %3189 = vmatprep.mubr.f32.mxu0 0.0
        %3190 = vmatmul.mubr.f32.gmra.mxu0 %v3121
        %v3191 = vpop.f32.mrf.mxu0
        %v3192 = vadd.f32 %v2196, %v3191
        %v3193 = vpop.f32.mrf.mxu0
        %3194 = vmatprep.mubr.f32.mxu0 0.0
        %3195 = vmatmul.mubr.f32.gmra.mxu0 %v3123
        %v3196 = vpop.f32.mrf.mxu0
        %v3197 = vadd.f32 %v2196, %v3196
        %v3198 = vpop.f32.mrf.mxu0
        %3199 = vdwg.mxu0
        %v3200 = vadd.f32 %v3113, %v3192
        %v3201 = vadd.f32 %v3114, %v3197
        %v3202 = vxor.u32 %v3200, 2147483648
        %v3203 = vxor.u32 %v3201, 2147483648
        %v3204 = vmul.f32 %v3202, 1.442695
        %v3205 = vpow.pop %v3204
        %v3206 = vmul.f32 %v3203, 1.442695
        %v3207 = vpow.pop %v3206
        %v3208 = vadd.f32 %v3205, 1.0
        %v3209 = vadd.f32 %v3207, 1.0
        %v3210 = vrcp.pop %v3208
        %v3211 = vmul.f32 1.0, %v3210
        %v3212 = vrcp.pop %v3209
        %v3213 = vmul.f32 1.0, %v3212
        %3216 = vrot.lane.b32.xlu0 %v3192, 64
        %v3217 = vpop.permute.xlu0 %3216
        %3218 = vrot.lane.b32.xlu0 %v3197, 64
        %v3219 = vpop.permute.xlu0 %3218
        %v3222 = vmul.f32 %v3211, %v3217
        %v3223 = vmul.f32 %v3213, %v3219
        %3226 = vrot.lane.b32.xlu0 %v3222, 64
        %v3227 = vpop.permute.xlu0 %3226
        %3228 = vrot.lane.b32.xlu0 %v3223, 64
        %v3229 = vpop.permute.xlu0 %3228
        %v3232 = vadd.f32 %v3113, %v3227
        %v3233 = vadd.f32 %v3114, %v3229
        %v3234 = vtanh.pop %v3232
        %v3235 = vtanh.pop %v3233
        %v3236 = vsub.f32 1.0, %v3211
        %v3237 = vsub.f32 1.0, %v3213
        %3240 = vrot.lane.b32.xlu0 %v3234, 96
        %v3241 = vpop.permute.xlu0 %3240
        %3242 = vrot.lane.b32.xlu0 %v3235, 96
        %v3243 = vpop.permute.xlu0 %3242
        %v3246 = vmul.f32 %v3236, %v3241
        %v3247 = vmul.f32 %v3237, %v3243
        %v3248 = vmul.f32 %v3211, %v3096
        %v3249 = vmul.f32 %v3213, %v3097
        %v3250 = vadd.f32 %v3246, %v3248
        %v3251 = vadd.f32 %v3247, %v3249
        %vm3252 = vcmp.eq.s32.totalorder %v2188, 6
        %vm3253 = vcmp.eq.s32.totalorder %v2189, 6
        %v3254 = vsel %vm3252, 1, 0
        %v3255 = vsel %vm3253, 1, 0
        %3256 = vset.pattern.permute.xlu0 0
        %3257 = vperm.xlu0 %3256, %v3254
        %v3258 = vpop.permute.xlu0 %3257
        %3259 = vset.pattern.permute.xlu0 0
        %3260 = vperm.xlu0 %3259, %v3255
        %v3261 = vpop.permute.xlu0 %3260
        %vm3262 = vcmp.eq.s32.totalorder %v3258, 1
        %vm3263 = vcmp.eq.s32.totalorder %v3261, 1
        %v3264 = vsel %vm3262, %v3250, %v3110
        %v3265 = vsel %vm3263, %v3251, %v3111
        %s3266 = scalar_lea.vmem [#allocation2], 112
        %v3267 = vld [vmem:[%s3266] sm:$0xff]
        %v3268 = vld [vmem:[%s3266 + $0x8] sm:$0xff]
        %3271 = vrot.lane.b32.xlu0 %v3250, 96
        %v3272 = vpop.permute.xlu0 %3271
        %3273 = vrot.lane.b32.xlu0 %v3251, 96
        %v3274 = vpop.permute.xlu0 %3273
        %v3275 = vsel %vm1061, %v3272, 0
        %v3277 = vsel %vm1061, %v3274, 0
        %3279 = vmatprep.subr.mxu0 0.0
        %3280 = vmatpush1.msra.mxu0 0.0
        %3281 = vmatprep.subr.mxu0 0.0
        %3282 = vmatpush1.msra.mxu0 0.0
        %3283 = vmatprep.subr.mxu0 0.0
        %3284 = vmatpush1.msra.mxu0 0.0
        %3285 = vmatprep.subr.mxu0 0.0
        %3286 = vmatpush1.msra.mxu0 0.0
        %3287 = vmatprep.subr.mxu0 0.0
        %3288 = vmatpush1.msra.mxu0 0.0
        %3289 = vmatprep.subr.mxu0 0.0
        %3290 = vmatpush1.msra.mxu0 0.0
        %3291 = vmatprep.subr.mxu0 0.0
        %3292 = vmatpush1.msra.mxu0 0.0
        %3293 = vmatprep.subr.mxu0 0.0
        %3294 = vmatpush1.msra.mxu0 0.0
        %3295 = vmatprep.subr.mxu0 0.0
        %3296 = vmatpush1.msra.mxu0 0.0
        %3297 = vmatprep.subr.mxu0 0.0
        %3298 = vmatpush1.msra.mxu0 0.0
        %3299 = vmatprep.subr.mxu0 0.0
        %3300 = vmatpush1.msra.mxu0 0.0
        %3301 = vmatprep.subr.mxu0 0.0
        %3302 = vmatpush1.msra.mxu0 0.0
        %3303 = vmatprep.subr.mxu0 0.0
        %3304 = vmatpush1.msra.mxu0 %v2184
        %3305 = vmatprep.subr.mxu0 0.0
        %3306 = vmatpush1.msra.mxu0 %v2183
        %3307 = vmatprep.subr.mxu0 0.0
        %3308 = vmatpush1.msra.mxu0 %v2182
        %3309 = vmatprep.subr.mxu0 0.0
        %3310 = vmatpush1.msra.mxu0 %v2181
        %3311 = vmatprep.subr.mxu0 0.0
        %3312 = vmatpush2.msra.mxu0 0.0
        %3313 = vmatprep.subr.mxu0 0.0
        %3314 = vmatpush2.msra.mxu0 0.0
        %3315 = vmatprep.subr.mxu0 0.0
        %3316 = vmatpush2.msra.mxu0 0.0
        %3317 = vmatprep.subr.mxu0 0.0
        %3318 = vmatpush2.msra.mxu0 0.0
        %3319 = vmatprep.subr.mxu0 0.0
        %3320 = vmatpush2.msra.mxu0 0.0
        %3321 = vmatprep.subr.mxu0 0.0
        %3322 = vmatpush2.msra.mxu0 0.0
        %3323 = vmatprep.subr.mxu0 0.0
        %3324 = vmatpush2.msra.mxu0 0.0
        %3325 = vmatprep.subr.mxu0 0.0
        %3326 = vmatpush2.msra.mxu0 0.0
        %3327 = vmatprep.subr.mxu0 0.0
        %3328 = vmatpush2.msra.mxu0 0.0
        %3329 = vmatprep.subr.mxu0 0.0
        %3330 = vmatpush2.msra.mxu0 0.0
        %3331 = vmatprep.subr.mxu0 0.0
        %3332 = vmatpush2.msra.mxu0 0.0
        %3333 = vmatprep.subr.mxu0 0.0
        %3334 = vmatpush2.msra.mxu0 0.0
        %3335 = vmatprep.subr.mxu0 0.0
        %3336 = vmatpush2.msra.mxu0 0.0
        %3337 = vmatprep.subr.mxu0 0.0
        %3338 = vmatpush2.msra.mxu0 0.0
        %3339 = vmatprep.subr.mxu0 0.0
        %3340 = vmatpush2.msra.mxu0 0.0
        %3341 = vmatprep.subr.mxu0 0.0
        %3342 = vmatpush2.msra.mxu0 0.0
        %3343 = vmatprep.mubr.f32.mxu0 0.0
        %3344 = vmatmul.mubr.f32.gmra.mxu0 %v3275
        %v3345 = vpop.f32.mrf.mxu0
        %v3346 = vadd.f32 %v2196, %v3345
        %v3347 = vpop.f32.mrf.mxu0
        %3348 = vmatprep.mubr.f32.mxu0 0.0
        %3349 = vmatmul.mubr.f32.gmra.mxu0 %v3277
        %v3350 = vpop.f32.mrf.mxu0
        %v3351 = vadd.f32 %v2196, %v3350
        %v3352 = vpop.f32.mrf.mxu0
        %3353 = vdwg.mxu0
        %v3354 = vadd.f32 %v3267, %v3346
        %v3355 = vadd.f32 %v3268, %v3351
        %v3356 = vxor.u32 %v3354, 2147483648
        %v3357 = vxor.u32 %v3355, 2147483648
        %v3358 = vmul.f32 %v3356, 1.442695
        %v3359 = vpow.pop %v3358
        %v3360 = vmul.f32 %v3357, 1.442695
        %v3361 = vpow.pop %v3360
        %v3362 = vadd.f32 %v3359, 1.0
        %v3363 = vadd.f32 %v3361, 1.0
        %v3364 = vrcp.pop %v3362
        %v3365 = vmul.f32 1.0, %v3364
        %v3366 = vrcp.pop %v3363
        %v3367 = vmul.f32 1.0, %v3366
        %3370 = vrot.lane.b32.xlu0 %v3346, 64
        %v3371 = vpop.permute.xlu0 %3370
        %3372 = vrot.lane.b32.xlu0 %v3351, 64
        %v3373 = vpop.permute.xlu0 %3372
        %v3376 = vmul.f32 %v3365, %v3371
        %v3377 = vmul.f32 %v3367, %v3373
        %3380 = vrot.lane.b32.xlu0 %v3376, 64
        %v3381 = vpop.permute.xlu0 %3380
        %3382 = vrot.lane.b32.xlu0 %v3377, 64
        %v3383 = vpop.permute.xlu0 %3382
        %v3386 = vadd.f32 %v3267, %v3381
        %v3387 = vadd.f32 %v3268, %v3383
        %v3388 = vtanh.pop %v3386
        %v3389 = vtanh.pop %v3387
        %v3390 = vsub.f32 1.0, %v3365
        %v3391 = vsub.f32 1.0, %v3367
        %3394 = vrot.lane.b32.xlu0 %v3388, 96
        %v3395 = vpop.permute.xlu0 %3394
        %3396 = vrot.lane.b32.xlu0 %v3389, 96
        %v3397 = vpop.permute.xlu0 %3396
        %v3400 = vmul.f32 %v3390, %v3395
        %v3401 = vmul.f32 %v3391, %v3397
        %v3402 = vmul.f32 %v3365, %v3250
        %v3403 = vmul.f32 %v3367, %v3251
        %v3404 = vadd.f32 %v3400, %v3402
        %v3405 = vadd.f32 %v3401, %v3403
        %vm3406 = vcmp.eq.s32.totalorder %v2188, 7
        %vm3407 = vcmp.eq.s32.totalorder %v2189, 7
        %v3408 = vsel %vm3406, 1, 0
        %v3409 = vsel %vm3407, 1, 0
        %3410 = vset.pattern.permute.xlu0 0
        %3411 = vperm.xlu0 %3410, %v3408
        %v3412 = vpop.permute.xlu0 %3411
        %3413 = vset.pattern.permute.xlu0 0
        %3414 = vperm.xlu0 %3413, %v3409
        %v3415 = vpop.permute.xlu0 %3414
        %vm3416 = vcmp.eq.s32.totalorder %v3412, 1
        %vm3417 = vcmp.eq.s32.totalorder %v3415, 1
        %v3418 = vsel %vm3416, %v3404, %v3264
        %v3419 = vsel %vm3417, %v3405, %v3265
        %v3420 = vld [vmem:[%s13] sm:$0x1]
        %v3422 = vlaneseq
        %v3423 = vshrl.u32 %v3422, 7
        %v3424 = vsub.s32 0, %v3423
        %v3425 = vrot.slane %v3420, %v3424
        %3426 = vrot.lane.b32.xlu0 %v3425, 32
        %v3427 = vpop.permute.xlu0 %3426
        %v3429 = vmul.f32 %v3418, %v3427
        %v3430 = vmul.f32 %v3419, %v3427
        %3433 = vrot.lane.b32.xlu0 %v3429, 96
        %v3434 = vpop.permute.xlu0 %3433
        %3435 = vrot.lane.b32.xlu0 %v3430, 96
        %v3436 = vpop.permute.xlu0 %3435
        %v3439 = vsel %vm1061, %v3434, 0.0
        %3440 = vadd.xlane.f32.xlu0 %v3439
        %v3441 = vpop.xlane.xlu0 %3440
        %v3442 = vsel %vm1061, %v3436, 0.0
        %3443 = vadd.xlane.f32.xlu0 %v3442
        %v3444 = vpop.xlane.xlu0 %3443
        %v3445 = vld [vmem:[#allocation3] sm:$0x1]
        %v3447 = vlaneseq
        %v3448 = vshrl.u32 %v3447, 7
        %v3449 = vsub.s32 0, %v3448
        %v3450 = vrot.slane %v3445, %v3449
        %v3452 = vadd.f32 %v3441, %v3450
        %v3453 = vadd.f32 %v3444, %v3450
        %v3454 = vld [vmem:[%s15] sm:$0xff]
        %v3455 = vsel %vm1989, %v3454, 0.0
        %v3456 = vrot.slane %v3455, 4
        %v3457 = vadd.f32 %v3455, %v3456
        %v3458 = vrot.slane %v3457, 2
        %v3459 = vadd.f32 %v3457, %v3458
        %v3460 = vrot.slane %v3459, 1
        %v3461 = vadd.f32 %v3459, %v3460
        %3463 = vset.pattern.permute.xlu0 0
        %3464 = vperm.xlu0 %3463, %v3452
        %v3465 = vpop.permute.xlu0 %3464
        %3468 = vset.pattern.permute.xlu0 0
        %3469 = vperm.xlu0 %3468, %v3453
        %v3470 = vpop.permute.xlu0 %3469
        %v3472 = vmul.f32 %v3465, %v3461
        %v3473 = vmul.f32 %v3470, %v3461
        %v3474 = vadd.f32 %v3472, %v2004
        %v3475 = vadd.f32 %v3473, %v2019
        %v3476 = vld [vmem:[%s16] sm:$0x1]
        %v3478 = vlaneseq
        %v3479 = vshrl.u32 %v3478, 7
        %v3480 = vsub.s32 0, %v3479
        %v3481 = vrot.slane %v3476, %v3480
        %v3483 = vadd.f32 %v3474, %v3481
        %v3484 = vadd.f32 %v3475, %v3481
        %3485 = vst.msk [vmem:[%s794] sm:$0xff] %vm1989, %v3483
        %3486 = vst.msk [vmem:[%s794 + $0x8] sm:$0xff] %vm1989, %v3484
        %s3487 = smul.u32 2, %s30
        %p3488 = scmp.lt.s32.totalorder %s3487, 3
        %s3489 = scalar_select %p3488, %s3487, 3
        %s3490 = smul.addr %s3489, 8
        %s3491 = scalar_lea.vmem %s17, %s3490
        // Predicated region
        $region168: #{content_forward_pallas.1} parent=158 // pred_check
          %p3492 = pneg %p420
        $region169: #{content_forward_pallas.1} parent=158 // pred_check_branch
          %3494 = sbr.rel (%p3492) target = $region171
        $region170: #{content_forward_pallas.1} parent=158 // pred_region
          %s3495 = smul.u32 2, %s30
        $region171: #{content_forward_pallas.1} parent=158 // pred_fallthru
          _
      $region159: #{content_forward_pallas.1} parent=5 // pred_fallthru
        _
      %p3496 = scmp.le.s32.totalorder 2, %s25
      // Predicated region
      $region172: #{content_forward_pallas.1} parent=5 // pred_check
        %p3497 = pneg %p3496
      $region173: #{content_forward_pallas.1} parent=5 // pred_check_branch
        %3499 = sbr.rel (%p3497) target = $region175
      $region174: #{content_forward_pallas.1} parent=5 // pred_region
        %s3500 = ssub.s32 %s25, 2
        // Predicated region
        $region176: #{content_forward_pallas.1} parent=174 // pred_check
          %p3501 = pneg %p426
        $region177: #{content_forward_pallas.1} parent=174 // pred_check_branch
          %3503 = sbr.rel (%p3501) target = $region179
        $region178: #{content_forward_pallas.1} parent=174 // pred_region
          %s3504 = smul.u32 2, %s31
          %p3505 = scmp.lt.s32.totalorder %s3504, 3
          %s3506 = scalar_select %p3505, %s3504, 3
          %s3507 = smul.addr %s3506, 8
          %s3508 = scalar_lea.vmem %s17, %s3507
        $region179: #{content_forward_pallas.1} parent=174 // pred_fallthru
          _
      $region175: #{content_forward_pallas.1} parent=5 // pred_fallthru
        _
    $region6: #{content_forward_pallas.1} parent=1 // loop_footer
      %s29 = sadd.s32 1, %s25
    $region7: #{content_forward_pallas.1} parent=1 // loop_footer_branch
      %24 = sbr.rel target = $region3
    $region8: #{content_forward_pallas.1} parent=1 // loop_exit
      _

</llo_original>
